<compile_context>
chip_gen: v7x
topology: tpu7x:2x2x1
jax: 0.10.0
libtpu: 0.0.40
codegen_flags: <defaults>
</compile_context>

<pallas_src>
import numpy as np
import jax
import jax.numpy as jnp
from jax import lax
from jax.experimental import pallas as pl
from jax.experimental.pallas import tpu as pltpu

MAX_TILE_B = 512   # cap on the MXU-aligned batch tile
ALIGN_B = 128      # batch tile alignment (MXU / (8,128) friendly)


# ------------------------------ Pallas kernel ------------------------------

def discriminator_kernel(x_ref,
                         w1_ref, b1_ref,
                         w2_ref, b2_ref,
                         w3_ref, b3_ref,
                         w4_ref, b4_ref,
                         out_ref):
    # x: (tile_b, F_img + 10) bf16 -- flatten(img) and one-hot labels already
    # concatenated in the wrapper; the label-embedding Linear(10,128,False) is
    # folded into w1, so layer 1 is a single MXU pass.
    x = x_ref[...]

    # Layer 1: Linear(F_img+128, 1024) (+ folded label embed) + LeakyReLU(0.2)
    h = jnp.dot(x, w1_ref[...], preferred_element_type=jnp.float32) + b1_ref[...]
    h = jnp.maximum(h, 0.2 * h)

    # Layer 2: Linear(1024, 512) + Dropout(0.4) + LeakyReLU(0.2)
    # TODO(synk): Dropout(0.4) is identity at inference; training-mode RNG mask not implemented.
    h = jnp.dot(h.astype(jnp.bfloat16), w2_ref[...],
                preferred_element_type=jnp.float32) + b2_ref[...]
    h = jnp.maximum(h, 0.2 * h)

    # Layer 3: Linear(512, 512) + Dropout(0.4) + LeakyReLU(0.2)
    h = jnp.dot(h.astype(jnp.bfloat16), w3_ref[...],
                preferred_element_type=jnp.float32) + b3_ref[...]
    h = jnp.maximum(h, 0.2 * h)

    # Layer 4: Linear(512, 1) + Sigmoid, computed lane-major:
    #   logit = w4 (1,512) . h^T (512, tile_b)  ->  (1, tile_b)
    # so the store is a single lane-dense row (batch on the lane axis) and no
    # relayout/transpose of a (tile_b, 1) column is needed.
    logit = lax.dot_general(
        w4_ref[...], h.astype(jnp.bfloat16),
        dimension_numbers=(((1,), (1,)), ((), ())),
        preferred_element_type=jnp.float32) + b4_ref[...]
    prob = jax.nn.sigmoid(logit)                    # (1, tile_b) f32
    out_ref[...] = prob[None]                       # (1, 1, tile_b)


# ------------------------------ Param prep (one-time) ------------------------------

def prepare_params(params, f_img):
    """Fold the label embedding into layer 1, pre-transpose, cast to bf16."""
    Wl, W1, b1, W2, b2, W3, b3, W4, b4 = params
    w1_img = W1[:, :f_img].T                     # (F_img, 1024)
    w1_lab = (W1[:, f_img:] @ Wl).T              # (10, 1024)  folded label embed
    w1 = jnp.concatenate([w1_img, w1_lab], axis=0).astype(jnp.bfloat16)  # (F_img+10, 1024)
    w2 = jnp.asarray(W2.T, jnp.bfloat16)         # (1024, 512)
    w3 = jnp.asarray(W3.T, jnp.bfloat16)         # (512, 512)
    w4 = jnp.asarray(W4, jnp.bfloat16)           # (1, 512)
    b1r = jnp.asarray(b1[None, :], jnp.float32)  # (1, 1024)
    b2r = jnp.asarray(b2[None, :], jnp.float32)  # (1, 512)
    b3r = jnp.asarray(b3[None, :], jnp.float32)  # (1, 512)
    b4r = jnp.asarray(b4.reshape(1, 1), jnp.float32)  # (1, 1)
    return (w1, b1r, w2, b2r, w3, b3r, w4, b4r)


# ------------------------------ Tiling heuristic ------------------------------

def _tiling(batch, max_tile=MAX_TILE_B, align=ALIGN_B):
    """Large tiles to amortize per-step overhead and fill the 256-wide MXU,
    but keep >=2 tiles where possible so v7x's two TCs both get work."""
    b_al = pl.cdiv(batch, align) * align
    half = pl.cdiv(b_al, 2 * align) * align      # round_up(b_al / 2, align)
    tile = min(max_tile, max(align, half))
    num_tiles = pl.cdiv(b_al, tile)
    return tile, num_tiles, num_tiles * tile


# ------------------------------ JAX wrapper ------------------------------

def discriminator_forward(image, labels, prepared):
    """image: (B, C, H, W) f32 NCHW;  labels: (B, 10) f32  ->  (B, 1) f32."""
    w1, b1r, w2, b2r, w3, b3r, w4, b4r = prepared
    B = image.shape[0]
    f_in = w1.shape[0]                               # F_img + 10

    # Flatten (== nn.Flatten on NCHW), concat labels, cast to bf16; under jit
    # these fuse into a single producer feeding the kernel's streamed operand.
    img_flat = image.reshape(B, -1).astype(jnp.bfloat16)
    x = jnp.concatenate([img_flat, labels.astype(jnp.bfloat16)], axis=1)
    assert x.shape[1] == f_in

    tile_b, num_tiles, b_pad = _tiling(B)
    if b_pad != B:
        x = jnp.pad(x, ((0, b_pad - B), (0, 0)))

    def resident(arr):       # weights / biases: constant block -> fetched once
        return pl.BlockSpec(arr.shape, lambda i: (0,) * arr.ndim)

    out = pl.pallas_call(
        discriminator_kernel,
        out_shape=jax.ShapeDtypeStruct((num_tiles, 1, tile_b), jnp.float32),
        grid=(num_tiles,),
        in_specs=[
            pl.BlockSpec((tile_b, f_in), lambda i: (i, 0)),   # streamed input
            resident(w1), resident(b1r),
            resident(w2), resident(b2r),
            resident(w3), resident(b3r),
            resident(w4), resident(b4r),
        ],
        out_specs=pl.BlockSpec((1, 1, tile_b), lambda i: (i, 0, 0)),
        compiler_params=pltpu.CompilerParams(
            dimension_semantics=("parallel",),
            vmem_limit_bytes=32 * 1024 * 1024),
    )(x, w1, b1r, w2, b2r, w3, b3r, w4, b4r)

    return out.reshape(-1)[:B][:, None]              # (B, 1) f32


discriminator_forward_jit = jax.jit(discriminator_forward)


# ------------------------------ Param init & reference ------------------------------

def init_params(key, img_feat):
    ks = jax.random.split(key, 9)
    s = 0.02
    Wl = jax.random.normal(ks[0], (128, 10), jnp.float32) * s
    W1 = jax.random.normal(ks[1], (1024, img_feat + 128), jnp.float32) * s
    b1 = jax.random.normal(ks[2], (1024,), jnp.float32) * s
    W2 = jax.random.normal(ks[3], (512, 1024), jnp.float32) * s
    b2 = jax.random.normal(ks[4], (512,), jnp.float32) * s
    W3 = jax.random.normal(ks[5], (512, 512), jnp.float32) * s
    b3 = jax.random.normal(ks[6], (512,), jnp.float32) * s
    W4 = jax.random.normal(ks[7], (1, 512), jnp.float32) * s
    b4 = jax.random.normal(ks[8], (1,), jnp.float32) * s
    return (Wl, W1, b1, W2, b2, W3, b3, W4, b4)


def reference_forward(image, labels, params):
    """Pure-JAX f32 reference mirroring the PyTorch module (eval mode)."""
    Wl, W1, b1, W2, b2, W3, b3, W4, b4 = params
    a = image.reshape(image.shape[0], -1)
    b = labels @ Wl.T
    x = jnp.concatenate([a, b], axis=1)
    lrelu = lambda v: jnp.where(v > 0, v, 0.2 * v)
    h = lrelu(x @ W1.T + b1)
    h = lrelu(h @ W2.T + b2)
    h = lrelu(h @ W3.T + b3)
    return jax.nn.sigmoid(h @ W4.T + b4)


# ------------------------------ Main ------------------------------

if __name__ == "__main__":
    # config.img_shape = (1, 16, 16)  -> prod = 256
    img_shape = (1, 16, 16)
    f_img = int(np.prod(img_shape))

    key = jax.random.PRNGKey(0)
    k_par, *keys = jax.random.split(key, 7)

    params = init_params(k_par, f_img)
    prepared = prepare_params(params, f_img)     # one-time weight prep

    def run_case(kimg, klab, batch):
        image = jax.random.normal(kimg, (batch,) + img_shape, jnp.float32)
        labels = jax.nn.one_hot(jax.random.randint(klab, (batch,), 0, 10), 10,
                                dtype=jnp.float32)
        out = jax.block_until_ready(
            discriminator_forward_jit(image, labels, prepared))
        ref = reference_forward(image, labels, params)
        np.testing.assert_allclose(np.asarray(out), np.asarray(ref),
                                   rtol=2e-2, atol=1e-2)   # bf16 vs f32 ref
        assert out.shape == (batch, 1)

    run_case(keys[0], keys[1], 2)      # pads to a single 128-row tile
    run_case(keys[2], keys[3], 256)    # two 128-row tiles (dual-TC path)
    run_case(keys[4], keys[5], 1000)   # pads to 2 x 512-row tiles (large-M MXU)

    print("KERNEL_OK")
</pallas_src>

<mosaic_0001>
module attributes {stable_mosaic.version = 11 : i64} {
  func.func @discriminator_kernel(%arg0: i32, %arg1: memref<128x266xbf16, #tpu.memory_space<vmem>>, %arg2: memref<266x1024xbf16, #tpu.memory_space<vmem>>, %arg3: memref<1x1024xf32, #tpu.memory_space<vmem>>, %arg4: memref<1024x512xbf16, #tpu.memory_space<vmem>>, %arg5: memref<1x512xf32, #tpu.memory_space<vmem>>, %arg6: memref<512x512xbf16, #tpu.memory_space<vmem>>, %arg7: memref<1x512xf32, #tpu.memory_space<vmem>>, %arg8: memref<1x512xbf16, #tpu.memory_space<vmem>>, %arg9: memref<1x1xf32, #tpu.memory_space<vmem>>, %arg10: memref<1x1x128xf32, #tpu.memory_space<vmem>>) attributes {dimension_semantics = [#tpu.dimension_semantics<parallel>], iteration_bounds = array<i64: 1>, scalar_prefetch = 0 : i64, scratch_operands = 0 : i64, tpu.core_type = #tpu.core_type<tc>, window_params = [{transform_indices = @transform_0, window_bounds = array<i64: 128, 266>}, {pipeline_mode = #tpu.pipeline_mode<synchronous>, transform_indices = @transform_1, window_bounds = array<i64: 266, 1024>}, {pipeline_mode = #tpu.pipeline_mode<synchronous>, transform_indices = @transform_2, window_bounds = array<i64: 1, 1024>}, {pipeline_mode = #tpu.pipeline_mode<synchronous>, transform_indices = @transform_3, window_bounds = array<i64: 1024, 512>}, {pipeline_mode = #tpu.pipeline_mode<synchronous>, transform_indices = @transform_4, window_bounds = array<i64: 1, 512>}, {pipeline_mode = #tpu.pipeline_mode<synchronous>, transform_indices = @transform_5, window_bounds = array<i64: 512, 512>}, {pipeline_mode = #tpu.pipeline_mode<synchronous>, transform_indices = @transform_6, window_bounds = array<i64: 1, 512>}, {pipeline_mode = #tpu.pipeline_mode<synchronous>, transform_indices = @transform_7, window_bounds = array<i64: 1, 512>}, {pipeline_mode = #tpu.pipeline_mode<synchronous>, transform_indices = @transform_8, window_bounds = array<i64: 1, 1>}, {transform_indices = @transform_9, window_bounds = array<i64: 1, 1, 128>}]} {
    %c0 = arith.constant 0 : index
    %c0_0 = arith.constant 0 : index
    %0 = vector.load %arg1[%c0, %c0_0] : memref<128x266xbf16, #tpu.memory_space<vmem>>, vector<128x266xbf16>
    %c0_1 = arith.constant 0 : index
    %c0_2 = arith.constant 0 : index
    %1 = vector.load %arg2[%c0_1, %c0_2] : memref<266x1024xbf16, #tpu.memory_space<vmem>>, vector<266x1024xbf16>
    %cst = arith.constant dense<0.000000e+00> : vector<128x1024xf32>
    %2 = tpu.matmul %0, %1, %cst {dimension_numbers = #tpu.dot_dimension_numbers<[1], [0], [0], [1], [0, 0, 1, 1], [], []>} : vector<128x266xbf16>, vector<266x1024xbf16>, vector<128x1024xf32> -> vector<128x1024xf32>
    %c0_3 = arith.constant 0 : index
    %c0_4 = arith.constant 0 : index
    %3 = vector.load %arg3[%c0_3, %c0_4] : memref<1x1024xf32, #tpu.memory_space<vmem>>, vector<1x1024xf32>
    %4 = vector.broadcast %3 : vector<1x1024xf32> to vector<128x1024xf32>
    %5 = arith.addf %2, %4 : vector<128x1024xf32>
    %cst_5 = arith.constant 2.000000e-01 : f32
    %6 = vector.broadcast %cst_5 : f32 to vector<128x1024xf32>
    %7 = arith.mulf %6, %5 : vector<128x1024xf32>
    %8 = arith.maximumf %5, %7 : vector<128x1024xf32>
    %9 = arith.truncf %8 : vector<128x1024xf32> to vector<128x1024xbf16>
    %c0_6 = arith.constant 0 : index
    %c0_7 = arith.constant 0 : index
    %10 = vector.load %arg4[%c0_6, %c0_7] : memref<1024x512xbf16, #tpu.memory_space<vmem>>, vector<1024x512xbf16>
    %cst_8 = arith.constant dense<0.000000e+00> : vector<128x512xf32>
    %11 = tpu.matmul %9, %10, %cst_8 {dimension_numbers = #tpu.dot_dimension_numbers<[1], [0], [0], [1], [0, 0, 1, 1], [], []>} : vector<128x1024xbf16>, vector<1024x512xbf16>, vector<128x512xf32> -> vector<128x512xf32>
    %c0_9 = arith.constant 0 : index
    %c0_10 = arith.constant 0 : index
    %12 = vector.load %arg5[%c0_9, %c0_10] : memref<1x512xf32, #tpu.memory_space<vmem>>, vector<1x512xf32>
    %13 = vector.broadcast %12 : vector<1x512xf32> to vector<128x512xf32>
    %14 = arith.addf %11, %13 : vector<128x512xf32>
    %cst_11 = arith.constant 2.000000e-01 : f32
    %15 = vector.broadcast %cst_11 : f32 to vector<128x512xf32>
    %16 = arith.mulf %15, %14 : vector<128x512xf32>
    %17 = arith.maximumf %14, %16 : vector<128x512xf32>
    %18 = arith.truncf %17 : vector<128x512xf32> to vector<128x512xbf16>
    %c0_12 = arith.constant 0 : index
    %c0_13 = arith.constant 0 : index
    %19 = vector.load %arg6[%c0_12, %c0_13] : memref<512x512xbf16, #tpu.memory_space<vmem>>, vector<512x512xbf16>
    %cst_14 = arith.constant dense<0.000000e+00> : vector<128x512xf32>
    %20 = tpu.matmul %18, %19, %cst_14 {dimension_numbers = #tpu.dot_dimension_numbers<[1], [0], [0], [1], [0, 0, 1, 1], [], []>} : vector<128x512xbf16>, vector<512x512xbf16>, vector<128x512xf32> -> vector<128x512xf32>
    %c0_15 = arith.constant 0 : index
    %c0_16 = arith.constant 0 : index
    %21 = vector.load %arg7[%c0_15, %c0_16] : memref<1x512xf32, #tpu.memory_space<vmem>>, vector<1x512xf32>
    %22 = vector.broadcast %21 : vector<1x512xf32> to vector<128x512xf32>
    %23 = arith.addf %20, %22 : vector<128x512xf32>
    %cst_17 = arith.constant 2.000000e-01 : f32
    %24 = vector.broadcast %cst_17 : f32 to vector<128x512xf32>
    %25 = arith.mulf %24, %23 : vector<128x512xf32>
    %26 = arith.maximumf %23, %25 : vector<128x512xf32>
    %c0_18 = arith.constant 0 : index
    %c0_19 = arith.constant 0 : index
    %27 = vector.load %arg8[%c0_18, %c0_19] : memref<1x512xbf16, #tpu.memory_space<vmem>>, vector<1x512xbf16>
    %28 = arith.truncf %26 : vector<128x512xf32> to vector<128x512xbf16>
    %cst_20 = arith.constant dense<0.000000e+00> : vector<1x128xf32>
    %29 = tpu.matmul %27, %28, %cst_20 {dimension_numbers = #tpu.dot_dimension_numbers<[1], [1], [0], [0], [0, 0, 1, 0], [], []>} : vector<1x512xbf16>, vector<128x512xbf16>, vector<1x128xf32> -> vector<1x128xf32>
    %c0_21 = arith.constant 0 : index
    %c0_22 = arith.constant 0 : index
    %30 = vector.load %arg9[%c0_21, %c0_22] : memref<1x1xf32, #tpu.memory_space<vmem>>, vector<1x1xf32>
    %31 = vector.broadcast %30 : vector<1x1xf32> to vector<1x128xf32>
    %32 = arith.addf %29, %31 : vector<1x128xf32>
    %33 = arith.negf %32 : vector<1x128xf32>
    %34 = math.exp %33 : vector<1x128xf32>
    %cst_23 = arith.constant 1.000000e+00 : f32
    %35 = vector.broadcast %cst_23 : f32 to vector<1x128xf32>
    %36 = arith.addf %35, %34 : vector<1x128xf32>
    %37 = arith.divf %35, %36 : vector<1x128xf32>
    %38 = vector.shape_cast %37 : vector<1x128xf32> to vector<1x1x128xf32>
    %c0_24 = arith.constant 0 : index
    %c0_25 = arith.constant 0 : index
    %c0_26 = arith.constant 0 : index
    %39 = vector.load %arg10[%c0_24, %c0_25, %c0_26] : memref<1x1x128xf32, #tpu.memory_space<vmem>>, vector<1x1x128xf32>
    tpu.vector_store %arg10[%c0_24, %c0_25, %c0_26], %38 {strides = array<i32>} : memref<1x1x128xf32, #tpu.memory_space<vmem>>, vector<1x1x128xf32>,
    return
  }
  func.func @transform_0(%arg0: i32) -> (i32, i32) {
    %c0_i32 = arith.constant 0 : i32
    %c0_i32_0 = arith.constant 0 : i32
    return %arg0, %c0_i32 : i32, i32
  }
  func.func @transform_1(%arg0: i32) -> (i32, i32) {
    %c0_i32 = arith.constant 0 : i32
    %c0_i32_0 = arith.constant 0 : i32
    %c0_i32_1 = arith.constant 0 : i32
    return %c0_i32, %c0_i32_0 : i32, i32
  }
  func.func @transform_2(%arg0: i32) -> (i32, i32) {
    %c0_i32 = arith.constant 0 : i32
    %c0_i32_0 = arith.constant 0 : i32
    %c0_i32_1 = arith.constant 0 : i32
    return %c0_i32, %c0_i32_0 : i32, i32
  }
  func.func @transform_3(%arg0: i32) -> (i32, i32) {
    %c0_i32 = arith.constant 0 : i32
    %c0_i32_0 = arith.constant 0 : i32
    %c0_i32_1 = arith.constant 0 : i32
    return %c0_i32, %c0_i32_0 : i32, i32
  }
  func.func @transform_4(%arg0: i32) -> (i32, i32) {
    %c0_i32 = arith.constant 0 : i32
    %c0_i32_0 = arith.constant 0 : i32
    %c0_i32_1 = arith.constant 0 : i32
    return %c0_i32, %c0_i32_0 : i32, i32
  }
  func.func @transform_5(%arg0: i32) -> (i32, i32) {
    %c0_i32 = arith.constant 0 : i32
    %c0_i32_0 = arith.constant 0 : i32
    %c0_i32_1 = arith.constant 0 : i32
    return %c0_i32, %c0_i32_0 : i32, i32
  }
  func.func @transform_6(%arg0: i32) -> (i32, i32) {
    %c0_i32 = arith.constant 0 : i32
    %c0_i32_0 = arith.constant 0 : i32
    %c0_i32_1 = arith.constant 0 : i32
    return %c0_i32, %c0_i32_0 : i32, i32
  }
  func.func @transform_7(%arg0: i32) -> (i32, i32) {
    %c0_i32 = arith.constant 0 : i32
    %c0_i32_0 = arith.constant 0 : i32
    %c0_i32_1 = arith.constant 0 : i32
    return %c0_i32, %c0_i32_0 : i32, i32
  }
  func.func @transform_8(%arg0: i32) -> (i32, i32) {
    %c0_i32 = arith.constant 0 : i32
    %c0_i32_0 = arith.constant 0 : i32
    %c0_i32_1 = arith.constant 0 : i32
    return %c0_i32, %c0_i32_0 : i32, i32
  }
  func.func @transform_9(%arg0: i32) -> (i32, i32, i32) {
    %c0_i32 = arith.constant 0 : i32
    %c0_i32_0 = arith.constant 0 : i32
    %c0_i32_1 = arith.constant 0 : i32
    return %arg0, %c0_i32, %c0_i32_0 : i32, i32, i32
  }
}

</mosaic_0001>

<llo_original>
// kernel: discriminator_forward.1
$region0: #{discriminator_forward.1}
  #allocation0 [shape = 'u32[]', space=smem, size = 0x4, offset = 0x4, fixed_abs, tag = 'smem constant byte address 0x4 - core index']
  #allocation1 [shape = 'u32[144,128]{1,0:T(1,128)}', space=vmem, size = 0x12000, scoped, tag = 'internal scratch']
  #allocation2 [shape = 'f32[1,1]{1,0:T(1,128)S(1)}', space=vmem, size = 0x200, scoped, tag = 'scoped memory for discriminator_forward.1']
  %s0 = inlined_call_operand.vmem [shape: bf16[128,266], index: 0, kind: input, shape index: {}]
  %s1 = inlined_call_operand.hbm [shape: bf16[266,1024], index: 1, kind: input, shape index: {}]
  %s2 = inlined_call_operand.vmem [shape: f32[1,1024], index: 2, kind: input, shape index: {}]
  %s3 = inlined_call_operand.hbm [shape: bf16[1024,512], index: 3, kind: input, shape index: {}]
  %s4 = inlined_call_operand.vmem [shape: f32[1,512], index: 4, kind: input, shape index: {}]
  %s5 = inlined_call_operand.hbm [shape: bf16[512,512], index: 5, kind: input, shape index: {}]
  %s6 = inlined_call_operand.vmem [shape: f32[1,512], index: 6, kind: input, shape index: {}]
  %s7 = inlined_call_operand.vmem [shape: bf16[1,512], index: 7, kind: input, shape index: {}]
  %s8 = inlined_call_operand.<no memory space> [shape: f32[1,1], index: 8, kind: input, shape index: {}]
  %s9 = inlined_call_operand.vmem [shape: f32[1,1,128], index: 9, kind: output, shape index: {}]
  %s10 = sld [smem:[#allocation0]]
  $region58: #{discriminator_forward.1} parent=0
    _
  %s12 = ssub.s32 1, %s10
  %s13 = scalar_select 0, %s12, %s10
  %v14 = vstv %s8
  %15 = vst [vmem:[#allocation2] sm:$0x1] %v14
  $region1: #{discriminator_forward.1} parent=0
    #allocation3 [shape = 'u8[557056]{0}', space=vmem, size = 0x88000, scoped, tag = 'input window, operand 1, single buffered']
    #allocation4 [shape = 's32[1]{0}', space=sflag, size = 0x4, scoped, tag = 'scoped memory for discriminator_forward.1']
    #allocation5 [shape = 'u8[1048576]{0}', space=vmem, size = 0x100000, scoped, tag = 'input window, operand 3, single buffered']
    #allocation6 [shape = 's32[1]{0}', space=sflag, size = 0x4, scoped, tag = 'scoped memory for discriminator_forward.1']
    #allocation7 [shape = 'u8[524288]{0}', space=vmem, size = 0x80000, scoped, tag = 'input window, operand 5, single buffered']
    %16 = vsyncpa [#allocation4], 0
    %17 = vsyncpa [#allocation6], 0
    // Predicated region
    $region2: #{discriminator_forward.1} parent=1 // pred_check
      _
    $region3: #{discriminator_forward.1} parent=1 // pred_check_branch
      %19 = sbr.rel (0) target = $region5
    $region4: #{discriminator_forward.1} parent=1 // pred_region
      _
    $region5: #{discriminator_forward.1} parent=1 // pred_fallthru
      _
    // Predicated region
    $region6: #{discriminator_forward.1} parent=1 // pred_check
      _
    $region7: #{discriminator_forward.1} parent=1 // pred_check_branch
      %21 = sbr.rel (0) target = $region9
    $region8: #{discriminator_forward.1} parent=1 // pred_region
      %s23 = ssub.s32 17408, 17408
      %24 = vsyncadd [#allocation4], %s23
      %s25 = sshll.u32 [#allocation3], 4
      %s26 = int_to_ptr.vmem [resolvable:$true] %s25
      %31 = dma.hbm_to_vmem [thread:$0]  %s1, 17408, %s26, [#allocation4], 512, 512, 32
    $region9: #{discriminator_forward.1} parent=1 // pred_fallthru
      _
    // Predicated region
    $region10: #{discriminator_forward.1} parent=1 // pred_check
      _
    $region11: #{discriminator_forward.1} parent=1 // pred_check_branch
      %33 = sbr.rel (0) target = $region13
    $region12: #{discriminator_forward.1} parent=1 // pred_region
      _
    $region13: #{discriminator_forward.1} parent=1 // pred_fallthru
      _
    // Predicated region
    $region14: #{discriminator_forward.1} parent=1 // pred_check
      _
    $region15: #{discriminator_forward.1} parent=1 // pred_check_branch
      %35 = sbr.rel (0) target = $region17
    $region16: #{discriminator_forward.1} parent=1 // pred_region
      %s37 = ssub.s32 32768, 32768
      %38 = vsyncadd [#allocation6], %s37
      %s39 = sshll.u32 [#allocation5], 4
      %s40 = int_to_ptr.vmem [resolvable:$true] %s39
      %45 = dma.hbm_to_vmem [thread:$0]  %s3, 32768, %s40, [#allocation6], 256, 256, 16
    $region17: #{discriminator_forward.1} parent=1 // pred_fallthru
      _
    // Predicated region
    $region18: #{discriminator_forward.1} parent=1 // pred_check
      _
    $region19: #{discriminator_forward.1} parent=1 // pred_check_branch
      %47 = sbr.rel (0) target = $region21
    $region20: #{discriminator_forward.1} parent=1 // pred_region
      _
    $region21: #{discriminator_forward.1} parent=1 // pred_fallthru
      _
    // Predicated region
    $region22: #{discriminator_forward.1} parent=1 // pred_check
      _
    $region23: #{discriminator_forward.1} parent=1 // pred_check_branch
      %49 = sbr.rel (0) target = $region25
    $region24: #{discriminator_forward.1} parent=1 // pred_region
      %s51 = ssub.s32 16384, 16384
      %52 = vsyncadd [#allocation6], %s51
      %s53 = sshll.u32 [#allocation7], 4
      %s54 = int_to_ptr.vmem [resolvable:$true] %s53
      %59 = dma.hbm_to_vmem [thread:$0]  %s5, 16384, %s54, [#allocation6], 256, 256, 16
    $region25: #{discriminator_forward.1} parent=1 // pred_fallthru
      _
    // Predicated region
    $region26: #{discriminator_forward.1} parent=1 // pred_check
      _
    $region27: #{discriminator_forward.1} parent=1 // pred_check_branch
      %61 = sbr.rel (0) target = $region29
    $region28: #{discriminator_forward.1} parent=1 // pred_region
      _
    $region29: #{discriminator_forward.1} parent=1 // pred_fallthru
      _
    // Predicated region
    $region30: #{discriminator_forward.1} parent=1 // pred_check
      _
    $region31: #{discriminator_forward.1} parent=1 // pred_check_branch
      %63 = sbr.rel (0) target = $region33
    $region32: #{discriminator_forward.1} parent=1 // pred_region
      _
    $region33: #{discriminator_forward.1} parent=1 // pred_fallthru
      _
    // Predicated region
    $region34: #{discriminator_forward.1} parent=1 // pred_check
      _
    $region35: #{discriminator_forward.1} parent=1 // pred_check_branch
      %65 = sbr.rel (0) target = $region37
    $region36: #{discriminator_forward.1} parent=1 // pred_region
      _
    $region37: #{discriminator_forward.1} parent=1 // pred_fallthru
      _
    // Predicated region
    $region38: #{discriminator_forward.1} parent=1 // pred_check
      _
    $region39: #{discriminator_forward.1} parent=1 // pred_check_branch
      %67 = sbr.rel (0) target = $region41
    $region40: #{discriminator_forward.1} parent=1 // pred_region
      %68 = dma.done [#allocation4], 17408
    $region41: #{discriminator_forward.1} parent=1 // pred_fallthru
      _
    // Predicated region
    $region42: #{discriminator_forward.1} parent=1 // pred_check
      _
    $region43: #{discriminator_forward.1} parent=1 // pred_check_branch
      %70 = sbr.rel (0) target = $region45
    $region44: #{discriminator_forward.1} parent=1 // pred_region
      %71 = dma.done [#allocation6], 32768
    $region45: #{discriminator_forward.1} parent=1 // pred_fallthru
      _
    // Predicated region
    $region46: #{discriminator_forward.1} parent=1 // pred_check
      _
    $region47: #{discriminator_forward.1} parent=1 // pred_check_branch
      %73 = sbr.rel (0) target = $region49
    $region48: #{discriminator_forward.1} parent=1 // pred_region
      %74 = dma.done [#allocation6], 16384
    $region49: #{discriminator_forward.1} parent=1 // pred_fallthru
      _
    %v76 = vld [vmem:[%s0] sm:$0xff]
    %v77 = vld [vmem:[%s0 + $0x8] sm:$0xf]
    %v78 = vld [vmem:[%s0 + $0xc] sm:$0xff]
    %v79 = vld [vmem:[%s0 + $0x14] sm:$0xf]
    %v80 = vld [vmem:[%s0 + $0x18] sm:$0xff]
    %v81 = vld [vmem:[%s0 + $0x20] sm:$0xf]
    %v82 = vld [vmem:[%s0 + $0x24] sm:$0xff]
    %v83 = vld [vmem:[%s0 + $0x2c] sm:$0xf]
    %v84 = vld [vmem:[%s0 + $0x30] sm:$0xff]
    %v85 = vld [vmem:[%s0 + $0x38] sm:$0xf]
    %v86 = vld [vmem:[%s0 + $0x3c] sm:$0xff]
    %v87 = vld [vmem:[%s0 + $0x44] sm:$0xf]
    %v88 = vld [vmem:[%s0 + $0x48] sm:$0xff]
    %v89 = vld [vmem:[%s0 + $0x50] sm:$0xf]
    %v90 = vld [vmem:[%s0 + $0x54] sm:$0xff]
    %v91 = vld [vmem:[%s0 + $0x5c] sm:$0xf]
    %v92 = vld [vmem:[%s0 + $0x60] sm:$0xff]
    %v93 = vld [vmem:[%s0 + $0x68] sm:$0xf]
    %v94 = vld [vmem:[%s0 + $0x6c] sm:$0xff]
    %v95 = vld [vmem:[%s0 + $0x74] sm:$0xf]
    %v96 = vld [vmem:[%s0 + $0x78] sm:$0xff]
    %v97 = vld [vmem:[%s0 + $0x80] sm:$0xf]
    %v98 = vld [vmem:[%s0 + $0x84] sm:$0xff]
    %v99 = vld [vmem:[%s0 + $0x8c] sm:$0xf]
    %v100 = vld [vmem:[%s0 + $0x90] sm:$0xff]
    %v101 = vld [vmem:[%s0 + $0x98] sm:$0xf]
    %v102 = vld [vmem:[%s0 + $0x9c] sm:$0xff]
    %v103 = vld [vmem:[%s0 + $0xa4] sm:$0xf]
    %v104 = vld [vmem:[%s0 + $0xa8] sm:$0xff]
    %v105 = vld [vmem:[%s0 + $0xb0] sm:$0xf]
    %v106 = vld [vmem:[%s0 + $0xb4] sm:$0xff]
    %v107 = vld [vmem:[%s0 + $0xbc] sm:$0xf]
    %v108 = vld [vmem:[#allocation3] sm:$0xff]
    %v109 = vld [vmem:[#allocation3 + $0x8] sm:$0xff]
    %v110 = vld [vmem:[#allocation3 + $0x10] sm:$0xff]
    %v111 = vld [vmem:[#allocation3 + $0x18] sm:$0xff]
    %v112 = vld [vmem:[#allocation3 + $0x20] sm:$0xff]
    %v113 = vld [vmem:[#allocation3 + $0x28] sm:$0xff]
    %v114 = vld [vmem:[#allocation3 + $0x30] sm:$0xff]
    %v115 = vld [vmem:[#allocation3 + $0x38] sm:$0xff]
    %v116 = vld [vmem:[#allocation3 + $0x40] sm:$0xff]
    %v117 = vld [vmem:[#allocation3 + $0x48] sm:$0xff]
    %v118 = vld [vmem:[#allocation3 + $0x50] sm:$0xff]
    %v119 = vld [vmem:[#allocation3 + $0x58] sm:$0xff]
    %v120 = vld [vmem:[#allocation3 + $0x60] sm:$0xff]
    %v121 = vld [vmem:[#allocation3 + $0x68] sm:$0xff]
    %v122 = vld [vmem:[#allocation3 + $0x70] sm:$0xff]
    %v123 = vld [vmem:[#allocation3 + $0x78] sm:$0xff]
    %v124 = vld [vmem:[#allocation3 + $0x80] sm:$0xff]
    %v125 = vld [vmem:[#allocation3 + $0x88] sm:$0xff]
    %v126 = vld [vmem:[#allocation3 + $0x90] sm:$0xff]
    %v127 = vld [vmem:[#allocation3 + $0x98] sm:$0xff]
    %v128 = vld [vmem:[#allocation3 + $0xa0] sm:$0xff]
    %v129 = vld [vmem:[#allocation3 + $0xa8] sm:$0xff]
    %v130 = vld [vmem:[#allocation3 + $0xb0] sm:$0xff]
    %v131 = vld [vmem:[#allocation3 + $0xb8] sm:$0xff]
    %v132 = vld [vmem:[#allocation3 + $0xc0] sm:$0xff]
    %v133 = vld [vmem:[#allocation3 + $0xc8] sm:$0xff]
    %v134 = vld [vmem:[#allocation3 + $0xd0] sm:$0xff]
    %v135 = vld [vmem:[#allocation3 + $0xd8] sm:$0xff]
    %v136 = vld [vmem:[#allocation3 + $0xe0] sm:$0xff]
    %v137 = vld [vmem:[#allocation3 + $0xe8] sm:$0xff]
    %v138 = vld [vmem:[#allocation3 + $0xf0] sm:$0xff]
    %v139 = vld [vmem:[#allocation3 + $0xf8] sm:$0xff]
    %v140 = vld [vmem:[#allocation3 + $0x100] sm:$0xff]
    %v141 = vld [vmem:[#allocation3 + $0x108] sm:$0xff]
    %v142 = vld [vmem:[#allocation3 + $0x110] sm:$0xff]
    %v143 = vld [vmem:[#allocation3 + $0x118] sm:$0xff]
    %v144 = vld [vmem:[#allocation3 + $0x120] sm:$0xff]
    %v145 = vld [vmem:[#allocation3 + $0x128] sm:$0xff]
    %v146 = vld [vmem:[#allocation3 + $0x130] sm:$0xff]
    %v147 = vld [vmem:[#allocation3 + $0x138] sm:$0xff]
    %v148 = vld [vmem:[#allocation3 + $0x140] sm:$0xff]
    %v149 = vld [vmem:[#allocation3 + $0x148] sm:$0xff]
    %v150 = vld [vmem:[#allocation3 + $0x150] sm:$0xff]
    %v151 = vld [vmem:[#allocation3 + $0x158] sm:$0xff]
    %v152 = vld [vmem:[#allocation3 + $0x160] sm:$0xff]
    %v153 = vld [vmem:[#allocation3 + $0x168] sm:$0xff]
    %v154 = vld [vmem:[#allocation3 + $0x170] sm:$0xff]
    %v155 = vld [vmem:[#allocation3 + $0x178] sm:$0xff]
    %v156 = vld [vmem:[#allocation3 + $0x180] sm:$0xff]
    %v157 = vld [vmem:[#allocation3 + $0x188] sm:$0xff]
    %v158 = vld [vmem:[#allocation3 + $0x190] sm:$0xff]
    %v159 = vld [vmem:[#allocation3 + $0x198] sm:$0xff]
    %v160 = vld [vmem:[#allocation3 + $0x1a0] sm:$0xff]
    %v161 = vld [vmem:[#allocation3 + $0x1a8] sm:$0xff]
    %v162 = vld [vmem:[#allocation3 + $0x1b0] sm:$0xff]
    %v163 = vld [vmem:[#allocation3 + $0x1b8] sm:$0xff]
    %v164 = vld [vmem:[#allocation3 + $0x1c0] sm:$0xff]
    %v165 = vld [vmem:[#allocation3 + $0x1c8] sm:$0xff]
    %v166 = vld [vmem:[#allocation3 + $0x1d0] sm:$0xff]
    %v167 = vld [vmem:[#allocation3 + $0x1d8] sm:$0xff]
    %v168 = vld [vmem:[#allocation3 + $0x1e0] sm:$0xff]
    %v169 = vld [vmem:[#allocation3 + $0x1e8] sm:$0xff]
    %v170 = vld [vmem:[#allocation3 + $0x1f0] sm:$0xff]
    %v171 = vld [vmem:[#allocation3 + $0x1f8] sm:$0xff]
    %v172 = vld [vmem:[#allocation3 + $0x200] sm:$0xff]
    %v173 = vld [vmem:[#allocation3 + $0x208] sm:$0xff]
    %v174 = vld [vmem:[#allocation3 + $0x210] sm:$0xff]
    %v175 = vld [vmem:[#allocation3 + $0x218] sm:$0xff]
    %v176 = vld [vmem:[#allocation3 + $0x220] sm:$0xff]
    %v177 = vld [vmem:[#allocation3 + $0x228] sm:$0xff]
    %v178 = vld [vmem:[#allocation3 + $0x230] sm:$0xff]
    %v179 = vld [vmem:[#allocation3 + $0x238] sm:$0xff]
    %v180 = vld [vmem:[#allocation3 + $0x240] sm:$0xff]
    %v181 = vld [vmem:[#allocation3 + $0x248] sm:$0xff]
    %v182 = vld [vmem:[#allocation3 + $0x250] sm:$0xff]
    %v183 = vld [vmem:[#allocation3 + $0x258] sm:$0xff]
    %v184 = vld [vmem:[#allocation3 + $0x260] sm:$0xff]
    %v185 = vld [vmem:[#allocation3 + $0x268] sm:$0xff]
    %v186 = vld [vmem:[#allocation3 + $0x270] sm:$0xff]
    %v187 = vld [vmem:[#allocation3 + $0x278] sm:$0xff]
    %v188 = vld [vmem:[#allocation3 + $0x280] sm:$0xff]
    %v189 = vld [vmem:[#allocation3 + $0x288] sm:$0xff]
    %v190 = vld [vmem:[#allocation3 + $0x290] sm:$0xff]
    %v191 = vld [vmem:[#allocation3 + $0x298] sm:$0xff]
    %v192 = vld [vmem:[#allocation3 + $0x2a0] sm:$0xff]
    %v193 = vld [vmem:[#allocation3 + $0x2a8] sm:$0xff]
    %v194 = vld [vmem:[#allocation3 + $0x2b0] sm:$0xff]
    %v195 = vld [vmem:[#allocation3 + $0x2b8] sm:$0xff]
    %v196 = vld [vmem:[#allocation3 + $0x2c0] sm:$0xff]
    %v197 = vld [vmem:[#allocation3 + $0x2c8] sm:$0xff]
    %v198 = vld [vmem:[#allocation3 + $0x2d0] sm:$0xff]
    %v199 = vld [vmem:[#allocation3 + $0x2d8] sm:$0xff]
    %v200 = vld [vmem:[#allocation3 + $0x2e0] sm:$0xff]
    %v201 = vld [vmem:[#allocation3 + $0x2e8] sm:$0xff]
    %v202 = vld [vmem:[#allocation3 + $0x2f0] sm:$0xff]
    %v203 = vld [vmem:[#allocation3 + $0x2f8] sm:$0xff]
    %v204 = vld [vmem:[#allocation3 + $0x300] sm:$0xff]
    %v205 = vld [vmem:[#allocation3 + $0x308] sm:$0xff]
    %v206 = vld [vmem:[#allocation3 + $0x310] sm:$0xff]
    %v207 = vld [vmem:[#allocation3 + $0x318] sm:$0xff]
    %v208 = vld [vmem:[#allocation3 + $0x320] sm:$0xff]
    %v209 = vld [vmem:[#allocation3 + $0x328] sm:$0xff]
    %v210 = vld [vmem:[#allocation3 + $0x330] sm:$0xff]
    %v211 = vld [vmem:[#allocation3 + $0x338] sm:$0xff]
    %v212 = vld [vmem:[#allocation3 + $0x340] sm:$0xff]
    %v213 = vld [vmem:[#allocation3 + $0x348] sm:$0xff]
    %v214 = vld [vmem:[#allocation3 + $0x350] sm:$0xff]
    %v215 = vld [vmem:[#allocation3 + $0x358] sm:$0xff]
    %v216 = vld [vmem:[#allocation3 + $0x360] sm:$0xff]
    %v217 = vld [vmem:[#allocation3 + $0x368] sm:$0xff]
    %v218 = vld [vmem:[#allocation3 + $0x370] sm:$0xff]
    %v219 = vld [vmem:[#allocation3 + $0x378] sm:$0xff]
    %v220 = vld [vmem:[#allocation3 + $0x380] sm:$0xff]
    %v221 = vld [vmem:[#allocation3 + $0x388] sm:$0xff]
    %v222 = vld [vmem:[#allocation3 + $0x390] sm:$0xff]
    %v223 = vld [vmem:[#allocation3 + $0x398] sm:$0xff]
    %v224 = vld [vmem:[#allocation3 + $0x3a0] sm:$0xff]
    %v225 = vld [vmem:[#allocation3 + $0x3a8] sm:$0xff]
    %v226 = vld [vmem:[#allocation3 + $0x3b0] sm:$0xff]
    %v227 = vld [vmem:[#allocation3 + $0x3b8] sm:$0xff]
    %v228 = vld [vmem:[#allocation3 + $0x3c0] sm:$0xff]
    %v229 = vld [vmem:[#allocation3 + $0x3c8] sm:$0xff]
    %v230 = vld [vmem:[#allocation3 + $0x3d0] sm:$0xff]
    %v231 = vld [vmem:[#allocation3 + $0x3d8] sm:$0xff]
    %v232 = vld [vmem:[#allocation3 + $0x3e0] sm:$0xff]
    %v233 = vld [vmem:[#allocation3 + $0x3e8] sm:$0xff]
    %v234 = vld [vmem:[#allocation3 + $0x3f0] sm:$0xff]
    %v235 = vld [vmem:[#allocation3 + $0x3f8] sm:$0xff]
    %v236 = vld [vmem:[#allocation3 + $0x400] sm:$0xff]
    %v237 = vld [vmem:[#allocation3 + $0x408] sm:$0xff]
    %v238 = vld [vmem:[#allocation3 + $0x410] sm:$0xff]
    %v239 = vld [vmem:[#allocation3 + $0x418] sm:$0xff]
    %v240 = vld [vmem:[#allocation3 + $0x420] sm:$0x11]
    %v241 = vld [vmem:[#allocation3 + $0x428] sm:$0x11]
    %v242 = vld [vmem:[#allocation3 + $0x430] sm:$0x11]
    %v243 = vld [vmem:[#allocation3 + $0x438] sm:$0x11]
    %v244 = vld [vmem:[%s2] sm:$0xff]
    %v246 = vlaneseq
    %v247 = vshrl.u32 %v246, 7
    %v248 = vsub.s32 0, %v247
    %v249 = vrot.slane %v244, %v248
    %v250 = vlaneseq
    %v251 = vshrl.u32 %v250, 7
    %v252 = vsub.s32 1, %v251
    %v253 = vrot.slane %v244, %v252
    %v254 = vlaneseq
    %v255 = vshrl.u32 %v254, 7
    %v256 = vsub.s32 2, %v255
    %v257 = vrot.slane %v244, %v256
    %v258 = vlaneseq
    %v259 = vshrl.u32 %v258, 7
    %v260 = vsub.s32 3, %v259
    %v261 = vrot.slane %v244, %v260
    %v262 = vlaneseq
    %v263 = vshrl.u32 %v262, 7
    %v264 = vsub.s32 4, %v263
    %v265 = vrot.slane %v244, %v264
    %v266 = vlaneseq
    %v267 = vshrl.u32 %v266, 7
    %v268 = vsub.s32 5, %v267
    %v269 = vrot.slane %v244, %v268
    %v270 = vlaneseq
    %v271 = vshrl.u32 %v270, 7
    %v272 = vsub.s32 6, %v271
    %v273 = vrot.slane %v244, %v272
    %v274 = vlaneseq
    %v275 = vshrl.u32 %v274, 7
    %v276 = vsub.s32 7, %v275
    %v277 = vrot.slane %v244, %v276
    %v318 = vunpack.c.l.b16 %v76
    %v319 = vunpack.c.h.b16 %v76
    %v320 = vunpack.c.l.b16 %v77
    %v321 = vunpack.c.l.b16 %v78
    %v322 = vunpack.c.h.b16 %v78
    %v323 = vunpack.c.l.b16 %v79
    %v324 = vunpack.c.l.b16 %v80
    %v325 = vunpack.c.h.b16 %v80
    %v326 = vunpack.c.l.b16 %v81
    %v327 = vunpack.c.l.b16 %v82
    %v328 = vunpack.c.h.b16 %v82
    %v329 = vunpack.c.l.b16 %v83
    %v330 = vunpack.c.l.b16 %v84
    %v331 = vunpack.c.h.b16 %v84
    %v332 = vunpack.c.l.b16 %v85
    %v333 = vunpack.c.l.b16 %v86
    %v334 = vunpack.c.h.b16 %v86
    %v335 = vunpack.c.l.b16 %v87
    %v336 = vunpack.c.l.b16 %v88
    %v337 = vunpack.c.h.b16 %v88
    %v338 = vunpack.c.l.b16 %v89
    %v339 = vunpack.c.l.b16 %v90
    %v340 = vunpack.c.h.b16 %v90
    %v341 = vunpack.c.l.b16 %v91
    %v342 = vunpack.c.l.b16 %v92
    %v343 = vunpack.c.h.b16 %v92
    %v344 = vunpack.c.l.b16 %v93
    %v345 = vunpack.c.l.b16 %v94
    %v346 = vunpack.c.h.b16 %v94
    %v347 = vunpack.c.l.b16 %v95
    %v348 = vunpack.c.l.b16 %v96
    %v349 = vunpack.c.h.b16 %v96
    %v350 = vunpack.c.l.b16 %v97
    %v351 = vunpack.c.l.b16 %v98
    %v352 = vunpack.c.h.b16 %v98
    %v353 = vunpack.c.l.b16 %v99
    %v354 = vunpack.c.l.b16 %v100
    %v355 = vunpack.c.h.b16 %v100
    %v356 = vunpack.c.l.b16 %v101
    %v357 = vunpack.c.l.b16 %v102
    %v358 = vunpack.c.h.b16 %v102
    %v359 = vunpack.c.l.b16 %v103
    %v360 = vunpack.c.l.b16 %v104
    %v361 = vunpack.c.h.b16 %v104
    %v362 = vunpack.c.l.b16 %v105
    %v363 = vunpack.c.l.b16 %v106
    %v364 = vunpack.c.h.b16 %v106
    %v365 = vunpack.c.l.b16 %v107
    %v366 = vpack.c.b16 %v321, %v318
    %v367 = vpack.c.b16 %v322, %v319
    %v368 = vpack.c.b16 %v323, %v320
    %v369 = vpack.c.b16 %v327, %v324
    %v370 = vpack.c.b16 %v328, %v325
    %v371 = vpack.c.b16 %v329, %v326
    %v372 = vpack.c.b16 %v333, %v330
    %v373 = vpack.c.b16 %v334, %v331
    %v374 = vpack.c.b16 %v335, %v332
    %v375 = vpack.c.b16 %v339, %v336
    %v376 = vpack.c.b16 %v340, %v337
    %v377 = vpack.c.b16 %v341, %v338
    %v378 = vpack.c.b16 %v345, %v342
    %v379 = vpack.c.b16 %v346, %v343
    %v380 = vpack.c.b16 %v347, %v344
    %v381 = vpack.c.b16 %v351, %v348
    %v382 = vpack.c.b16 %v352, %v349
    %v383 = vpack.c.b16 %v353, %v350
    %v384 = vpack.c.b16 %v357, %v354
    %v385 = vpack.c.b16 %v358, %v355
    %v386 = vpack.c.b16 %v359, %v356
    %v387 = vpack.c.b16 %v363, %v360
    %v388 = vpack.c.b16 %v364, %v361
    %v389 = vpack.c.b16 %v365, %v362
    %v542 = vunpack.c.l.b16 %v108
    %v543 = vunpack.c.h.b16 %v108
    %v544 = vunpack.c.l.b16 %v109
    %v545 = vunpack.c.h.b16 %v109
    %v546 = vunpack.c.l.b16 %v110
    %v547 = vunpack.c.h.b16 %v110
    %v548 = vunpack.c.l.b16 %v111
    %v549 = vunpack.c.h.b16 %v111
    %v550 = vunpack.c.l.b16 %v112
    %v551 = vunpack.c.h.b16 %v112
    %v552 = vunpack.c.l.b16 %v113
    %v553 = vunpack.c.h.b16 %v113
    %v554 = vunpack.c.l.b16 %v114
    %v555 = vunpack.c.h.b16 %v114
    %v556 = vunpack.c.l.b16 %v115
    %v557 = vunpack.c.h.b16 %v115
    %v558 = vunpack.c.l.b16 %v116
    %v559 = vunpack.c.h.b16 %v116
    %v560 = vunpack.c.l.b16 %v117
    %v561 = vunpack.c.h.b16 %v117
    %v562 = vunpack.c.l.b16 %v118
    %v563 = vunpack.c.h.b16 %v118
    %v564 = vunpack.c.l.b16 %v119
    %v565 = vunpack.c.h.b16 %v119
    %v566 = vunpack.c.l.b16 %v120
    %v567 = vunpack.c.h.b16 %v120
    %v568 = vunpack.c.l.b16 %v121
    %v569 = vunpack.c.h.b16 %v121
    %v570 = vunpack.c.l.b16 %v122
    %v571 = vunpack.c.h.b16 %v122
    %v572 = vunpack.c.l.b16 %v123
    %v573 = vunpack.c.h.b16 %v123
    %v574 = vunpack.c.l.b16 %v124
    %v575 = vunpack.c.h.b16 %v124
    %v576 = vunpack.c.l.b16 %v125
    %v577 = vunpack.c.h.b16 %v125
    %v578 = vunpack.c.l.b16 %v126
    %v579 = vunpack.c.h.b16 %v126
    %v580 = vunpack.c.l.b16 %v127
    %v581 = vunpack.c.h.b16 %v127
    %v582 = vunpack.c.l.b16 %v128
    %v583 = vunpack.c.h.b16 %v128
    %v584 = vunpack.c.l.b16 %v129
    %v585 = vunpack.c.h.b16 %v129
    %v586 = vunpack.c.l.b16 %v130
    %v587 = vunpack.c.h.b16 %v130
    %v588 = vunpack.c.l.b16 %v131
    %v589 = vunpack.c.h.b16 %v131
    %v590 = vunpack.c.l.b16 %v132
    %v591 = vunpack.c.h.b16 %v132
    %v592 = vunpack.c.l.b16 %v133
    %v593 = vunpack.c.h.b16 %v133
    %v594 = vunpack.c.l.b16 %v134
    %v595 = vunpack.c.h.b16 %v134
    %v596 = vunpack.c.l.b16 %v135
    %v597 = vunpack.c.h.b16 %v135
    %v598 = vunpack.c.l.b16 %v136
    %v599 = vunpack.c.h.b16 %v136
    %v600 = vunpack.c.l.b16 %v137
    %v601 = vunpack.c.h.b16 %v137
    %v602 = vunpack.c.l.b16 %v138
    %v603 = vunpack.c.h.b16 %v138
    %v604 = vunpack.c.l.b16 %v139
    %v605 = vunpack.c.h.b16 %v139
    %v606 = vunpack.c.l.b16 %v140
    %v607 = vunpack.c.h.b16 %v140
    %v608 = vunpack.c.l.b16 %v141
    %v609 = vunpack.c.h.b16 %v141
    %v610 = vunpack.c.l.b16 %v142
    %v611 = vunpack.c.h.b16 %v142
    %v612 = vunpack.c.l.b16 %v143
    %v613 = vunpack.c.h.b16 %v143
    %v614 = vunpack.c.l.b16 %v144
    %v615 = vunpack.c.h.b16 %v144
    %v616 = vunpack.c.l.b16 %v145
    %v617 = vunpack.c.h.b16 %v145
    %v618 = vunpack.c.l.b16 %v146
    %v619 = vunpack.c.h.b16 %v146
    %v620 = vunpack.c.l.b16 %v147
    %v621 = vunpack.c.h.b16 %v147
    %v622 = vunpack.c.l.b16 %v148
    %v623 = vunpack.c.h.b16 %v148
    %v624 = vunpack.c.l.b16 %v149
    %v625 = vunpack.c.h.b16 %v149
    %v626 = vunpack.c.l.b16 %v150
    %v627 = vunpack.c.h.b16 %v150
    %v628 = vunpack.c.l.b16 %v151
    %v629 = vunpack.c.h.b16 %v151
    %v630 = vunpack.c.l.b16 %v152
    %v631 = vunpack.c.h.b16 %v152
    %v632 = vunpack.c.l.b16 %v153
    %v633 = vunpack.c.h.b16 %v153
    %v634 = vunpack.c.l.b16 %v154
    %v635 = vunpack.c.h.b16 %v154
    %v636 = vunpack.c.l.b16 %v155
    %v637 = vunpack.c.h.b16 %v155
    %v638 = vunpack.c.l.b16 %v156
    %v639 = vunpack.c.h.b16 %v156
    %v640 = vunpack.c.l.b16 %v157
    %v641 = vunpack.c.h.b16 %v157
    %v642 = vunpack.c.l.b16 %v158
    %v643 = vunpack.c.h.b16 %v158
    %v644 = vunpack.c.l.b16 %v159
    %v645 = vunpack.c.h.b16 %v159
    %v646 = vunpack.c.l.b16 %v160
    %v647 = vunpack.c.h.b16 %v160
    %v648 = vunpack.c.l.b16 %v161
    %v649 = vunpack.c.h.b16 %v161
    %v650 = vunpack.c.l.b16 %v162
    %v651 = vunpack.c.h.b16 %v162
    %v652 = vunpack.c.l.b16 %v163
    %v653 = vunpack.c.h.b16 %v163
    %v654 = vunpack.c.l.b16 %v164
    %v655 = vunpack.c.h.b16 %v164
    %v656 = vunpack.c.l.b16 %v165
    %v657 = vunpack.c.h.b16 %v165
    %v658 = vunpack.c.l.b16 %v166
    %v659 = vunpack.c.h.b16 %v166
    %v660 = vunpack.c.l.b16 %v167
    %v661 = vunpack.c.h.b16 %v167
    %v662 = vunpack.c.l.b16 %v168
    %v663 = vunpack.c.h.b16 %v168
    %v664 = vunpack.c.l.b16 %v169
    %v665 = vunpack.c.h.b16 %v169
    %v666 = vunpack.c.l.b16 %v170
    %v667 = vunpack.c.h.b16 %v170
    %v668 = vunpack.c.l.b16 %v171
    %v669 = vunpack.c.h.b16 %v171
    %v670 = vunpack.c.l.b16 %v172
    %v671 = vunpack.c.h.b16 %v172
    %v672 = vunpack.c.l.b16 %v173
    %v673 = vunpack.c.h.b16 %v173
    %v674 = vunpack.c.l.b16 %v174
    %v675 = vunpack.c.h.b16 %v174
    %v676 = vunpack.c.l.b16 %v175
    %v677 = vunpack.c.h.b16 %v175
    %v678 = vunpack.c.l.b16 %v176
    %v679 = vunpack.c.h.b16 %v176
    %v680 = vunpack.c.l.b16 %v177
    %v681 = vunpack.c.h.b16 %v177
    %v682 = vunpack.c.l.b16 %v178
    %v683 = vunpack.c.h.b16 %v178
    %v684 = vunpack.c.l.b16 %v179
    %v685 = vunpack.c.h.b16 %v179
    %v686 = vunpack.c.l.b16 %v180
    %v687 = vunpack.c.h.b16 %v180
    %v688 = vunpack.c.l.b16 %v181
    %v689 = vunpack.c.h.b16 %v181
    %v690 = vunpack.c.l.b16 %v182
    %v691 = vunpack.c.h.b16 %v182
    %v692 = vunpack.c.l.b16 %v183
    %v693 = vunpack.c.h.b16 %v183
    %v694 = vunpack.c.l.b16 %v184
    %v695 = vunpack.c.h.b16 %v184
    %v696 = vunpack.c.l.b16 %v185
    %v697 = vunpack.c.h.b16 %v185
    %v698 = vunpack.c.l.b16 %v186
    %v699 = vunpack.c.h.b16 %v186
    %v700 = vunpack.c.l.b16 %v187
    %v701 = vunpack.c.h.b16 %v187
    %v702 = vunpack.c.l.b16 %v188
    %v703 = vunpack.c.h.b16 %v188
    %v704 = vunpack.c.l.b16 %v189
    %v705 = vunpack.c.h.b16 %v189
    %v706 = vunpack.c.l.b16 %v190
    %v707 = vunpack.c.h.b16 %v190
    %v708 = vunpack.c.l.b16 %v191
    %v709 = vunpack.c.h.b16 %v191
    %v710 = vunpack.c.l.b16 %v192
    %v711 = vunpack.c.h.b16 %v192
    %v712 = vunpack.c.l.b16 %v193
    %v713 = vunpack.c.h.b16 %v193
    %v714 = vunpack.c.l.b16 %v194
    %v715 = vunpack.c.h.b16 %v194
    %v716 = vunpack.c.l.b16 %v195
    %v717 = vunpack.c.h.b16 %v195
    %v718 = vunpack.c.l.b16 %v196
    %v719 = vunpack.c.h.b16 %v196
    %v720 = vunpack.c.l.b16 %v197
    %v721 = vunpack.c.h.b16 %v197
    %v722 = vunpack.c.l.b16 %v198
    %v723 = vunpack.c.h.b16 %v198
    %v724 = vunpack.c.l.b16 %v199
    %v725 = vunpack.c.h.b16 %v199
    %v726 = vunpack.c.l.b16 %v200
    %v727 = vunpack.c.h.b16 %v200
    %v728 = vunpack.c.l.b16 %v201
    %v729 = vunpack.c.h.b16 %v201
    %v730 = vunpack.c.l.b16 %v202
    %v731 = vunpack.c.h.b16 %v202
    %v732 = vunpack.c.l.b16 %v203
    %v733 = vunpack.c.h.b16 %v203
    %v734 = vunpack.c.l.b16 %v204
    %v735 = vunpack.c.h.b16 %v204
    %v736 = vunpack.c.l.b16 %v205
    %v737 = vunpack.c.h.b16 %v205
    %v738 = vunpack.c.l.b16 %v206
    %v739 = vunpack.c.h.b16 %v206
    %v740 = vunpack.c.l.b16 %v207
    %v741 = vunpack.c.h.b16 %v207
    %v742 = vunpack.c.l.b16 %v208
    %v743 = vunpack.c.h.b16 %v208
    %v744 = vunpack.c.l.b16 %v209
    %v745 = vunpack.c.h.b16 %v209
    %v746 = vunpack.c.l.b16 %v210
    %v747 = vunpack.c.h.b16 %v210
    %v748 = vunpack.c.l.b16 %v211
    %v749 = vunpack.c.h.b16 %v211
    %v750 = vunpack.c.l.b16 %v212
    %v751 = vunpack.c.h.b16 %v212
    %v752 = vunpack.c.l.b16 %v213
    %v753 = vunpack.c.h.b16 %v213
    %v754 = vunpack.c.l.b16 %v214
    %v755 = vunpack.c.h.b16 %v214
    %v756 = vunpack.c.l.b16 %v215
    %v757 = vunpack.c.h.b16 %v215
    %v758 = vunpack.c.l.b16 %v216
    %v759 = vunpack.c.h.b16 %v216
    %v760 = vunpack.c.l.b16 %v217
    %v761 = vunpack.c.h.b16 %v217
    %v762 = vunpack.c.l.b16 %v218
    %v763 = vunpack.c.h.b16 %v218
    %v764 = vunpack.c.l.b16 %v219
    %v765 = vunpack.c.h.b16 %v219
    %v766 = vunpack.c.l.b16 %v220
    %v767 = vunpack.c.h.b16 %v220
    %v768 = vunpack.c.l.b16 %v221
    %v769 = vunpack.c.h.b16 %v221
    %v770 = vunpack.c.l.b16 %v222
    %v771 = vunpack.c.h.b16 %v222
    %v772 = vunpack.c.l.b16 %v223
    %v773 = vunpack.c.h.b16 %v223
    %v774 = vunpack.c.l.b16 %v224
    %v775 = vunpack.c.h.b16 %v224
    %v776 = vunpack.c.l.b16 %v225
    %v777 = vunpack.c.h.b16 %v225
    %v778 = vunpack.c.l.b16 %v226
    %v779 = vunpack.c.h.b16 %v226
    %v780 = vunpack.c.l.b16 %v227
    %v781 = vunpack.c.h.b16 %v227
    %v782 = vunpack.c.l.b16 %v228
    %v783 = vunpack.c.h.b16 %v228
    %v784 = vunpack.c.l.b16 %v229
    %v785 = vunpack.c.h.b16 %v229
    %v786 = vunpack.c.l.b16 %v230
    %v787 = vunpack.c.h.b16 %v230
    %v788 = vunpack.c.l.b16 %v231
    %v789 = vunpack.c.h.b16 %v231
    %v790 = vunpack.c.l.b16 %v232
    %v791 = vunpack.c.h.b16 %v232
    %v792 = vunpack.c.l.b16 %v233
    %v793 = vunpack.c.h.b16 %v233
    %v794 = vunpack.c.l.b16 %v234
    %v795 = vunpack.c.h.b16 %v234
    %v796 = vunpack.c.l.b16 %v235
    %v797 = vunpack.c.h.b16 %v235
    %v798 = vunpack.c.l.b16 %v236
    %v799 = vunpack.c.h.b16 %v236
    %v800 = vunpack.c.l.b16 %v237
    %v801 = vunpack.c.h.b16 %v237
    %v802 = vunpack.c.l.b16 %v238
    %v803 = vunpack.c.h.b16 %v238
    %v804 = vunpack.c.l.b16 %v239
    %v805 = vunpack.c.h.b16 %v239
    %v806 = vunpack.c.l.b16 %v240
    %v807 = vunpack.c.h.b16 %v240
    %v808 = vunpack.c.l.b16 %v241
    %v809 = vunpack.c.h.b16 %v241
    %v810 = vunpack.c.l.b16 %v242
    %v811 = vunpack.c.h.b16 %v242
    %v812 = vunpack.c.l.b16 %v243
    %v813 = vunpack.c.h.b16 %v243
    %v814 = vpack.c.b16 %v550, %v542
    %v815 = vpack.c.b16 %v551, %v543
    %v816 = vpack.c.b16 %v552, %v544
    %v817 = vpack.c.b16 %v553, %v545
    %v818 = vpack.c.b16 %v554, %v546
    %v819 = vpack.c.b16 %v555, %v547
    %v820 = vpack.c.b16 %v556, %v548
    %v821 = vpack.c.b16 %v557, %v549
    %v822 = vpack.c.b16 %v566, %v558
    %v823 = vpack.c.b16 %v567, %v559
    %v824 = vpack.c.b16 %v568, %v560
    %v825 = vpack.c.b16 %v569, %v561
    %v826 = vpack.c.b16 %v570, %v562
    %v827 = vpack.c.b16 %v571, %v563
    %v828 = vpack.c.b16 %v572, %v564
    %v829 = vpack.c.b16 %v573, %v565
    %v830 = vpack.c.b16 %v582, %v574
    %v831 = vpack.c.b16 %v583, %v575
    %v832 = vpack.c.b16 %v584, %v576
    %v833 = vpack.c.b16 %v585, %v577
    %v834 = vpack.c.b16 %v586, %v578
    %v835 = vpack.c.b16 %v587, %v579
    %v836 = vpack.c.b16 %v588, %v580
    %v837 = vpack.c.b16 %v589, %v581
    %v838 = vpack.c.b16 %v598, %v590
    %v839 = vpack.c.b16 %v599, %v591
    %v840 = vpack.c.b16 %v600, %v592
    %v841 = vpack.c.b16 %v601, %v593
    %v842 = vpack.c.b16 %v602, %v594
    %v843 = vpack.c.b16 %v603, %v595
    %v844 = vpack.c.b16 %v604, %v596
    %v845 = vpack.c.b16 %v605, %v597
    %v846 = vpack.c.b16 %v614, %v606
    %v847 = vpack.c.b16 %v615, %v607
    %v848 = vpack.c.b16 %v616, %v608
    %v849 = vpack.c.b16 %v617, %v609
    %v850 = vpack.c.b16 %v618, %v610
    %v851 = vpack.c.b16 %v619, %v611
    %v852 = vpack.c.b16 %v620, %v612
    %v853 = vpack.c.b16 %v621, %v613
    %v854 = vpack.c.b16 %v630, %v622
    %v855 = vpack.c.b16 %v631, %v623
    %v856 = vpack.c.b16 %v632, %v624
    %v857 = vpack.c.b16 %v633, %v625
    %v858 = vpack.c.b16 %v634, %v626
    %v859 = vpack.c.b16 %v635, %v627
    %v860 = vpack.c.b16 %v636, %v628
    %v861 = vpack.c.b16 %v637, %v629
    %v862 = vpack.c.b16 %v646, %v638
    %v863 = vpack.c.b16 %v647, %v639
    %v864 = vpack.c.b16 %v648, %v640
    %v865 = vpack.c.b16 %v649, %v641
    %v866 = vpack.c.b16 %v650, %v642
    %v867 = vpack.c.b16 %v651, %v643
    %v868 = vpack.c.b16 %v652, %v644
    %v869 = vpack.c.b16 %v653, %v645
    %v870 = vpack.c.b16 %v662, %v654
    %v871 = vpack.c.b16 %v663, %v655
    %v872 = vpack.c.b16 %v664, %v656
    %v873 = vpack.c.b16 %v665, %v657
    %v874 = vpack.c.b16 %v666, %v658
    %v875 = vpack.c.b16 %v667, %v659
    %v876 = vpack.c.b16 %v668, %v660
    %v877 = vpack.c.b16 %v669, %v661
    %v878 = vpack.c.b16 %v678, %v670
    %v879 = vpack.c.b16 %v679, %v671
    %v880 = vpack.c.b16 %v680, %v672
    %v881 = vpack.c.b16 %v681, %v673
    %v882 = vpack.c.b16 %v682, %v674
    %v883 = vpack.c.b16 %v683, %v675
    %v884 = vpack.c.b16 %v684, %v676
    %v885 = vpack.c.b16 %v685, %v677
    %v886 = vpack.c.b16 %v694, %v686
    %v887 = vpack.c.b16 %v695, %v687
    %v888 = vpack.c.b16 %v696, %v688
    %v889 = vpack.c.b16 %v697, %v689
    %v890 = vpack.c.b16 %v698, %v690
    %v891 = vpack.c.b16 %v699, %v691
    %v892 = vpack.c.b16 %v700, %v692
    %v893 = vpack.c.b16 %v701, %v693
    %v894 = vpack.c.b16 %v710, %v702
    %v895 = vpack.c.b16 %v711, %v703
    %v896 = vpack.c.b16 %v712, %v704
    %v897 = vpack.c.b16 %v713, %v705
    %v898 = vpack.c.b16 %v714, %v706
    %v899 = vpack.c.b16 %v715, %v707
    %v900 = vpack.c.b16 %v716, %v708
    %v901 = vpack.c.b16 %v717, %v709
    %v902 = vpack.c.b16 %v726, %v718
    %v903 = vpack.c.b16 %v727, %v719
    %v904 = vpack.c.b16 %v728, %v720
    %v905 = vpack.c.b16 %v729, %v721
    %v906 = vpack.c.b16 %v730, %v722
    %v907 = vpack.c.b16 %v731, %v723
    %v908 = vpack.c.b16 %v732, %v724
    %v909 = vpack.c.b16 %v733, %v725
    %v910 = vpack.c.b16 %v742, %v734
    %v911 = vpack.c.b16 %v743, %v735
    %v912 = vpack.c.b16 %v744, %v736
    %v913 = vpack.c.b16 %v745, %v737
    %v914 = vpack.c.b16 %v746, %v738
    %v915 = vpack.c.b16 %v747, %v739
    %v916 = vpack.c.b16 %v748, %v740
    %v917 = vpack.c.b16 %v749, %v741
    %v918 = vpack.c.b16 %v758, %v750
    %v919 = vpack.c.b16 %v759, %v751
    %v920 = vpack.c.b16 %v760, %v752
    %v921 = vpack.c.b16 %v761, %v753
    %v922 = vpack.c.b16 %v762, %v754
    %v923 = vpack.c.b16 %v763, %v755
    %v924 = vpack.c.b16 %v764, %v756
    %v925 = vpack.c.b16 %v765, %v757
    %v926 = vpack.c.b16 %v774, %v766
    %v927 = vpack.c.b16 %v775, %v767
    %v928 = vpack.c.b16 %v776, %v768
    %v929 = vpack.c.b16 %v777, %v769
    %v930 = vpack.c.b16 %v778, %v770
    %v931 = vpack.c.b16 %v779, %v771
    %v932 = vpack.c.b16 %v780, %v772
    %v933 = vpack.c.b16 %v781, %v773
    %v934 = vpack.c.b16 %v790, %v782
    %v935 = vpack.c.b16 %v791, %v783
    %v936 = vpack.c.b16 %v792, %v784
    %v937 = vpack.c.b16 %v793, %v785
    %v938 = vpack.c.b16 %v794, %v786
    %v939 = vpack.c.b16 %v795, %v787
    %v940 = vpack.c.b16 %v796, %v788
    %v941 = vpack.c.b16 %v797, %v789
    %v942 = vpack.c.b16 %v806, %v798
    %v943 = vpack.c.b16 %v807, %v799
    %v944 = vpack.c.b16 %v808, %v800
    %v945 = vpack.c.b16 %v809, %v801
    %v946 = vpack.c.b16 %v810, %v802
    %v947 = vpack.c.b16 %v811, %v803
    %v948 = vpack.c.b16 %v812, %v804
    %v949 = vpack.c.b16 %v813, %v805
    %vm1078 = vcmask 80896
    %v1080 = vsel %vm1078, %v368, 0
    %v1083 = vsel %vm1078, %v371, 0
    %v1086 = vsel %vm1078, %v374, 0
    %v1089 = vsel %vm1078, %v377, 0
    %v1092 = vsel %vm1078, %v380, 0
    %v1095 = vsel %vm1078, %v383, 0
    %v1098 = vsel %vm1078, %v386, 0
    %v1101 = vsel %vm1078, %v389, 0
    %vm1103 = vcmask 1044480
    %v1105 = vsel %vm1103, %v942, 0
    %v1108 = vsel %vm1103, %v943, 0
    %v1111 = vsel %vm1103, %v944, 0
    %v1114 = vsel %vm1103, %v945, 0
    %v1117 = vsel %vm1103, %v946, 0
    %v1120 = vsel %vm1103, %v947, 0
    %v1123 = vsel %vm1103, %v948, 0
    %v1126 = vsel %vm1103, %v949, 0
    %1128 = vmatprep.subr.bf16.mxu0 %v815
    %1129 = vmatpush1.bf16.msra.mxu0 %v814
    %1130 = vmatprep.subr.bf16.mxu0 %v823
    %1131 = vmatpush1.bf16.msra.mxu0 %v822
    %1132 = vmatprep.subr.bf16.mxu0 %v831
    %1133 = vmatpush1.bf16.msra.mxu0 %v830
    %1134 = vmatprep.subr.bf16.mxu0 %v839
    %1135 = vmatpush1.bf16.msra.mxu0 %v838
    %1136 = vmatprep.subr.bf16.mxu0 %v847
    %1137 = vmatpush1.bf16.msra.mxu0 %v846
    %1138 = vmatprep.subr.bf16.mxu0 %v855
    %1139 = vmatpush1.bf16.msra.mxu0 %v854
    %1140 = vmatprep.subr.bf16.mxu0 %v863
    %1141 = vmatpush1.bf16.msra.mxu0 %v862
    %1142 = vmatprep.subr.bf16.mxu0 %v871
    %1143 = vmatpush1.bf16.msra.mxu0 %v870
    %1144 = vmatprep.subr.bf16.mxu0 %v879
    %1145 = vmatpush1.bf16.msra.mxu0 %v878
    %1146 = vmatprep.subr.bf16.mxu0 %v887
    %1147 = vmatpush1.bf16.msra.mxu0 %v886
    %1148 = vmatprep.subr.bf16.mxu0 %v895
    %1149 = vmatpush1.bf16.msra.mxu0 %v894
    %1150 = vmatprep.subr.bf16.mxu0 %v903
    %1151 = vmatpush1.bf16.msra.mxu0 %v902
    %1152 = vmatprep.subr.bf16.mxu0 %v911
    %1153 = vmatpush1.bf16.msra.mxu0 %v910
    %1154 = vmatprep.subr.bf16.mxu0 %v919
    %1155 = vmatpush1.bf16.msra.mxu0 %v918
    %1156 = vmatprep.subr.bf16.mxu0 %v927
    %1157 = vmatpush1.bf16.msra.mxu0 %v926
    %1158 = vmatprep.subr.bf16.mxu0 %v935
    %1159 = vmatpush1.bf16.msra.mxu0 %v934
    %1160 = vmatprep.mubr.bf16.mxu0 %v367
    %1161 = vmatmul.mubr.bf16.gmra.mrb[0].mxu0 %v366
    %v1162 = vpop.f32.mrb[0].mxu0
    %v1163 = vadd.f32 %v249, %v1162
    %v1164 = vpop.f32.mrb[0].mxu0
    %v1165 = vadd.f32 %v253, %v1164
    %v1166 = vpop.f32.mrb[0].mxu0
    %v1167 = vadd.f32 %v249, %v1166
    %v1168 = vpop.f32.mrb[0].mxu0
    %v1169 = vadd.f32 %v253, %v1168
    %1170 = vmatprep.mubr.bf16.mxu0 %v370
    %1171 = vmatmul.mubr.bf16.gmra.mrb[0].mxu0 %v369
    %v1172 = vpop.f32.mrb[0].mxu0
    %v1173 = vadd.f32 %v249, %v1172
    %v1174 = vpop.f32.mrb[0].mxu0
    %v1175 = vadd.f32 %v253, %v1174
    %v1176 = vpop.f32.mrb[0].mxu0
    %v1177 = vadd.f32 %v249, %v1176
    %v1178 = vpop.f32.mrb[0].mxu0
    %v1179 = vadd.f32 %v253, %v1178
    %1180 = vmatprep.mubr.bf16.mxu0 %v373
    %1181 = vmatmul.mubr.bf16.gmra.mrb[0].mxu0 %v372
    %v1182 = vpop.f32.mrb[0].mxu0
    %v1183 = vadd.f32 %v249, %v1182
    %v1184 = vpop.f32.mrb[0].mxu0
    %v1185 = vadd.f32 %v253, %v1184
    %v1186 = vpop.f32.mrb[0].mxu0
    %v1187 = vadd.f32 %v249, %v1186
    %v1188 = vpop.f32.mrb[0].mxu0
    %v1189 = vadd.f32 %v253, %v1188
    %1190 = vmatprep.mubr.bf16.mxu0 %v376
    %1191 = vmatmul.mubr.bf16.gmra.mrb[0].mxu0 %v375
    %v1192 = vpop.f32.mrb[0].mxu0
    %v1193 = vadd.f32 %v249, %v1192
    %v1194 = vpop.f32.mrb[0].mxu0
    %v1195 = vadd.f32 %v253, %v1194
    %v1196 = vpop.f32.mrb[0].mxu0
    %v1197 = vadd.f32 %v249, %v1196
    %v1198 = vpop.f32.mrb[0].mxu0
    %v1199 = vadd.f32 %v253, %v1198
    %1200 = vmatprep.mubr.bf16.mxu0 %v379
    %1201 = vmatmul.mubr.bf16.gmra.mrb[0].mxu0 %v378
    %v1202 = vpop.f32.mrb[0].mxu0
    %v1203 = vadd.f32 %v249, %v1202
    %v1204 = vpop.f32.mrb[0].mxu0
    %v1205 = vadd.f32 %v253, %v1204
    %v1206 = vpop.f32.mrb[0].mxu0
    %v1207 = vadd.f32 %v249, %v1206
    %v1208 = vpop.f32.mrb[0].mxu0
    %v1209 = vadd.f32 %v253, %v1208
    %1210 = vmatprep.mubr.bf16.mxu0 %v382
    %1211 = vmatmul.mubr.bf16.gmra.mrb[0].mxu0 %v381
    %v1212 = vpop.f32.mrb[0].mxu0
    %v1213 = vadd.f32 %v249, %v1212
    %v1214 = vpop.f32.mrb[0].mxu0
    %v1215 = vadd.f32 %v253, %v1214
    %v1216 = vpop.f32.mrb[0].mxu0
    %v1217 = vadd.f32 %v249, %v1216
    %v1218 = vpop.f32.mrb[0].mxu0
    %v1219 = vadd.f32 %v253, %v1218
    %1220 = vmatprep.mubr.bf16.mxu0 %v385
    %1221 = vmatmul.mubr.bf16.gmra.mrb[0].mxu0 %v384
    %v1222 = vpop.f32.mrb[0].mxu0
    %v1223 = vadd.f32 %v249, %v1222
    %v1224 = vpop.f32.mrb[0].mxu0
    %v1225 = vadd.f32 %v253, %v1224
    %v1226 = vpop.f32.mrb[0].mxu0
    %v1227 = vadd.f32 %v249, %v1226
    %v1228 = vpop.f32.mrb[0].mxu0
    %v1229 = vadd.f32 %v253, %v1228
    %1230 = vmatprep.mubr.bf16.mxu0 %v388
    %1231 = vmatmul.mubr.bf16.gmra.mrb[0].mxu0 %v387
    %v1232 = vpop.f32.mrb[0].mxu0
    %v1233 = vadd.f32 %v249, %v1232
    %v1234 = vpop.f32.mrb[0].mxu0
    %v1235 = vadd.f32 %v253, %v1234
    %v1236 = vpop.f32.mrb[0].mxu0
    %v1237 = vadd.f32 %v249, %v1236
    %v1238 = vpop.f32.mrb[0].mxu0
    %v1239 = vadd.f32 %v253, %v1238
    %1240 = vdwg.mxu0
    %1241 = vmatprep.subr.bf16.mxu0 %v1108
    %1242 = vmatpush1.bf16.msra.mxu0 %v1105
    %1243 = vmatprep.subr.bf16.mxu0 0
    %1244 = vmatpush1.bf16.msra.mxu0 0
    %1245 = vmatprep.subr.bf16.mxu0 0
    %1246 = vmatpush1.bf16.msra.mxu0 0
    %1247 = vmatprep.subr.bf16.mxu0 0
    %1248 = vmatpush1.bf16.msra.mxu0 0
    %1249 = vmatprep.subr.bf16.mxu0 0
    %1250 = vmatpush1.bf16.msra.mxu0 0
    %1251 = vmatprep.subr.bf16.mxu0 0
    %1252 = vmatpush1.bf16.msra.mxu0 0
    %1253 = vmatprep.subr.bf16.mxu0 0
    %1254 = vmatpush1.bf16.msra.mxu0 0
    %1255 = vmatprep.subr.bf16.mxu0 0
    %1256 = vmatpush1.bf16.msra.mxu0 0
    %1257 = vmatprep.subr.bf16.mxu0 0
    %1258 = vmatpush1.bf16.msra.mxu0 0
    %1259 = vmatprep.subr.bf16.mxu0 0
    %1260 = vmatpush1.bf16.msra.mxu0 0
    %1261 = vmatprep.subr.bf16.mxu0 0
    %1262 = vmatpush1.bf16.msra.mxu0 0
    %1263 = vmatprep.subr.bf16.mxu0 0
    %1264 = vmatpush1.bf16.msra.mxu0 0
    %1265 = vmatprep.subr.bf16.mxu0 0
    %1266 = vmatpush1.bf16.msra.mxu0 0
    %1267 = vmatprep.subr.bf16.mxu0 0
    %1268 = vmatpush1.bf16.msra.mxu0 0
    %1269 = vmatprep.subr.bf16.mxu0 0
    %1270 = vmatpush1.bf16.msra.mxu0 0
    %1271 = vmatprep.subr.bf16.mxu0 0
    %1272 = vmatpush1.bf16.msra.mxu0 0
    %1273 = vmatprep.mubr.bf16.mxu0 0
    %1274 = vmatmul.mubr.bf16.gmra.mrb[0].mxu0 %v1080
    %v1275 = vpop.f32.mrb[0].mxu0
    %v1276 = vadd.f32 %v1163, %v1275
    %v1277 = vpop.f32.mrb[0].mxu0
    %v1278 = vadd.f32 %v1165, %v1277
    %v1279 = vpop.f32.mrb[0].mxu0
    %v1280 = vadd.f32 %v1167, %v1279
    %v1281 = vpop.f32.mrb[0].mxu0
    %v1282 = vadd.f32 %v1169, %v1281
    %1283 = vmatprep.mubr.bf16.mxu0 0
    %1284 = vmatmul.mubr.bf16.gmra.mrb[0].mxu0 %v1083
    %v1285 = vpop.f32.mrb[0].mxu0
    %v1286 = vadd.f32 %v1173, %v1285
    %v1287 = vpop.f32.mrb[0].mxu0
    %v1288 = vadd.f32 %v1175, %v1287
    %v1289 = vpop.f32.mrb[0].mxu0
    %v1290 = vadd.f32 %v1177, %v1289
    %v1291 = vpop.f32.mrb[0].mxu0
    %v1292 = vadd.f32 %v1179, %v1291
    %1293 = vmatprep.mubr.bf16.mxu0 0
    %1294 = vmatmul.mubr.bf16.gmra.mrb[0].mxu0 %v1086
    %v1295 = vpop.f32.mrb[0].mxu0
    %v1296 = vadd.f32 %v1183, %v1295
    %v1297 = vpop.f32.mrb[0].mxu0
    %v1298 = vadd.f32 %v1185, %v1297
    %v1299 = vpop.f32.mrb[0].mxu0
    %v1300 = vadd.f32 %v1187, %v1299
    %v1301 = vpop.f32.mrb[0].mxu0
    %v1302 = vadd.f32 %v1189, %v1301
    %1303 = vmatprep.mubr.bf16.mxu0 0
    %1304 = vmatmul.mubr.bf16.gmra.mrb[0].mxu0 %v1089
    %v1305 = vpop.f32.mrb[0].mxu0
    %v1306 = vadd.f32 %v1193, %v1305
    %v1307 = vpop.f32.mrb[0].mxu0
    %v1308 = vadd.f32 %v1195, %v1307
    %v1309 = vpop.f32.mrb[0].mxu0
    %v1310 = vadd.f32 %v1197, %v1309
    %v1311 = vpop.f32.mrb[0].mxu0
    %v1312 = vadd.f32 %v1199, %v1311
    %1313 = vmatprep.mubr.bf16.mxu0 0
    %1314 = vmatmul.mubr.bf16.gmra.mrb[0].mxu0 %v1092
    %v1315 = vpop.f32.mrb[0].mxu0
    %v1316 = vadd.f32 %v1203, %v1315
    %v1317 = vpop.f32.mrb[0].mxu0
    %v1318 = vadd.f32 %v1205, %v1317
    %v1319 = vpop.f32.mrb[0].mxu0
    %v1320 = vadd.f32 %v1207, %v1319
    %v1321 = vpop.f32.mrb[0].mxu0
    %v1322 = vadd.f32 %v1209, %v1321
    %1323 = vmatprep.mubr.bf16.mxu0 0
    %1324 = vmatmul.mubr.bf16.gmra.mrb[0].mxu0 %v1095
    %v1325 = vpop.f32.mrb[0].mxu0
    %v1326 = vadd.f32 %v1213, %v1325
    %v1327 = vpop.f32.mrb[0].mxu0
    %v1328 = vadd.f32 %v1215, %v1327
    %v1329 = vpop.f32.mrb[0].mxu0
    %v1330 = vadd.f32 %v1217, %v1329
    %v1331 = vpop.f32.mrb[0].mxu0
    %v1332 = vadd.f32 %v1219, %v1331
    %1333 = vmatprep.mubr.bf16.mxu0 0
    %1334 = vmatmul.mubr.bf16.gmra.mrb[0].mxu0 %v1098
    %v1335 = vpop.f32.mrb[0].mxu0
    %v1336 = vadd.f32 %v1223, %v1335
    %v1337 = vpop.f32.mrb[0].mxu0
    %v1338 = vadd.f32 %v1225, %v1337
    %v1339 = vpop.f32.mrb[0].mxu0
    %v1340 = vadd.f32 %v1227, %v1339
    %v1341 = vpop.f32.mrb[0].mxu0
    %v1342 = vadd.f32 %v1229, %v1341
    %1343 = vmatprep.mubr.bf16.mxu0 0
    %1344 = vmatmul.mubr.bf16.gmra.mrb[0].mxu0 %v1101
    %v1345 = vpop.f32.mrb[0].mxu0
    %v1346 = vadd.f32 %v1233, %v1345
    %v1347 = vpop.f32.mrb[0].mxu0
    %v1348 = vadd.f32 %v1235, %v1347
    %v1349 = vpop.f32.mrb[0].mxu0
    %v1350 = vadd.f32 %v1237, %v1349
    %v1351 = vpop.f32.mrb[0].mxu0
    %v1352 = vadd.f32 %v1239, %v1351
    %1353 = vdwg.mxu0
    %1354 = vmatprep.subr.bf16.mxu0 %v817
    %1355 = vmatpush1.bf16.msra.mxu0 %v816
    %1356 = vmatprep.subr.bf16.mxu0 %v825
    %1357 = vmatpush1.bf16.msra.mxu0 %v824
    %1358 = vmatprep.subr.bf16.mxu0 %v833
    %1359 = vmatpush1.bf16.msra.mxu0 %v832
    %1360 = vmatprep.subr.bf16.mxu0 %v841
    %1361 = vmatpush1.bf16.msra.mxu0 %v840
    %1362 = vmatprep.subr.bf16.mxu0 %v849
    %1363 = vmatpush1.bf16.msra.mxu0 %v848
    %1364 = vmatprep.subr.bf16.mxu0 %v857
    %1365 = vmatpush1.bf16.msra.mxu0 %v856
    %1366 = vmatprep.subr.bf16.mxu0 %v865
    %1367 = vmatpush1.bf16.msra.mxu0 %v864
    %1368 = vmatprep.subr.bf16.mxu0 %v873
    %1369 = vmatpush1.bf16.msra.mxu0 %v872
    %1370 = vmatprep.subr.bf16.mxu0 %v881
    %1371 = vmatpush1.bf16.msra.mxu0 %v880
    %1372 = vmatprep.subr.bf16.mxu0 %v889
    %1373 = vmatpush1.bf16.msra.mxu0 %v888
    %1374 = vmatprep.subr.bf16.mxu0 %v897
    %1375 = vmatpush1.bf16.msra.mxu0 %v896
    %1376 = vmatprep.subr.bf16.mxu0 %v905
    %1377 = vmatpush1.bf16.msra.mxu0 %v904
    %1378 = vmatprep.subr.bf16.mxu0 %v913
    %1379 = vmatpush1.bf16.msra.mxu0 %v912
    %1380 = vmatprep.subr.bf16.mxu0 %v921
    %1381 = vmatpush1.bf16.msra.mxu0 %v920
    %1382 = vmatprep.subr.bf16.mxu0 %v929
    %1383 = vmatpush1.bf16.msra.mxu0 %v928
    %1384 = vmatprep.subr.bf16.mxu0 %v937
    %1385 = vmatpush1.bf16.msra.mxu0 %v936
    %1386 = vmatprep.mubr.bf16.mxu0 %v367
    %1387 = vmatmul.mubr.bf16.gmra.mrb[0].mxu0 %v366
    %v1388 = vpop.f32.mrb[0].mxu0
    %v1389 = vadd.f32 %v257, %v1388
    %v1390 = vpop.f32.mrb[0].mxu0
    %v1391 = vadd.f32 %v261, %v1390
    %v1392 = vpop.f32.mrb[0].mxu0
    %v1393 = vadd.f32 %v257, %v1392
    %v1394 = vpop.f32.mrb[0].mxu0
    %v1395 = vadd.f32 %v261, %v1394
    %1396 = vmatprep.mubr.bf16.mxu0 %v370
    %1397 = vmatmul.mubr.bf16.gmra.mrb[0].mxu0 %v369
    %v1398 = vpop.f32.mrb[0].mxu0
    %v1399 = vadd.f32 %v257, %v1398
    %v1400 = vpop.f32.mrb[0].mxu0
    %v1401 = vadd.f32 %v261, %v1400
    %v1402 = vpop.f32.mrb[0].mxu0
    %v1403 = vadd.f32 %v257, %v1402
    %v1404 = vpop.f32.mrb[0].mxu0
    %v1405 = vadd.f32 %v261, %v1404
    %1406 = vmatprep.mubr.bf16.mxu0 %v373
    %1407 = vmatmul.mubr.bf16.gmra.mrb[0].mxu0 %v372
    %v1408 = vpop.f32.mrb[0].mxu0
    %v1409 = vadd.f32 %v257, %v1408
    %v1410 = vpop.f32.mrb[0].mxu0
    %v1411 = vadd.f32 %v261, %v1410
    %v1412 = vpop.f32.mrb[0].mxu0
    %v1413 = vadd.f32 %v257, %v1412
    %v1414 = vpop.f32.mrb[0].mxu0
    %v1415 = vadd.f32 %v261, %v1414
    %1416 = vmatprep.mubr.bf16.mxu0 %v376
    %1417 = vmatmul.mubr.bf16.gmra.mrb[0].mxu0 %v375
    %v1418 = vpop.f32.mrb[0].mxu0
    %v1419 = vadd.f32 %v257, %v1418
    %v1420 = vpop.f32.mrb[0].mxu0
    %v1421 = vadd.f32 %v261, %v1420
    %v1422 = vpop.f32.mrb[0].mxu0
    %v1423 = vadd.f32 %v257, %v1422
    %v1424 = vpop.f32.mrb[0].mxu0
    %v1425 = vadd.f32 %v261, %v1424
    %1426 = vmatprep.mubr.bf16.mxu0 %v379
    %1427 = vmatmul.mubr.bf16.gmra.mrb[0].mxu0 %v378
    %v1428 = vpop.f32.mrb[0].mxu0
    %v1429 = vadd.f32 %v257, %v1428
    %v1430 = vpop.f32.mrb[0].mxu0
    %v1431 = vadd.f32 %v261, %v1430
    %v1432 = vpop.f32.mrb[0].mxu0
    %v1433 = vadd.f32 %v257, %v1432
    %v1434 = vpop.f32.mrb[0].mxu0
    %v1435 = vadd.f32 %v261, %v1434
    %1436 = vmatprep.mubr.bf16.mxu0 %v382
    %1437 = vmatmul.mubr.bf16.gmra.mrb[0].mxu0 %v381
    %v1438 = vpop.f32.mrb[0].mxu0
    %v1439 = vadd.f32 %v257, %v1438
    %v1440 = vpop.f32.mrb[0].mxu0
    %v1441 = vadd.f32 %v261, %v1440
    %v1442 = vpop.f32.mrb[0].mxu0
    %v1443 = vadd.f32 %v257, %v1442
    %v1444 = vpop.f32.mrb[0].mxu0
    %v1445 = vadd.f32 %v261, %v1444
    %1446 = vmatprep.mubr.bf16.mxu0 %v385
    %1447 = vmatmul.mubr.bf16.gmra.mrb[0].mxu0 %v384
    %v1448 = vpop.f32.mrb[0].mxu0
    %v1449 = vadd.f32 %v257, %v1448
    %v1450 = vpop.f32.mrb[0].mxu0
    %v1451 = vadd.f32 %v261, %v1450
    %v1452 = vpop.f32.mrb[0].mxu0
    %v1453 = vadd.f32 %v257, %v1452
    %v1454 = vpop.f32.mrb[0].mxu0
    %v1455 = vadd.f32 %v261, %v1454
    %1456 = vmatprep.mubr.bf16.mxu0 %v388
    %1457 = vmatmul.mubr.bf16.gmra.mrb[0].mxu0 %v387
    %v1458 = vpop.f32.mrb[0].mxu0
    %v1459 = vadd.f32 %v257, %v1458
    %v1460 = vpop.f32.mrb[0].mxu0
    %v1461 = vadd.f32 %v261, %v1460
    %v1462 = vpop.f32.mrb[0].mxu0
    %v1463 = vadd.f32 %v257, %v1462
    %v1464 = vpop.f32.mrb[0].mxu0
    %v1465 = vadd.f32 %v261, %v1464
    %1466 = vdwg.mxu0
    %1467 = vmatprep.subr.bf16.mxu0 %v1114
    %1468 = vmatpush1.bf16.msra.mxu0 %v1111
    %1469 = vmatprep.subr.bf16.mxu0 0
    %1470 = vmatpush1.bf16.msra.mxu0 0
    %1471 = vmatprep.subr.bf16.mxu0 0
    %1472 = vmatpush1.bf16.msra.mxu0 0
    %1473 = vmatprep.subr.bf16.mxu0 0
    %1474 = vmatpush1.bf16.msra.mxu0 0
    %1475 = vmatprep.subr.bf16.mxu0 0
    %1476 = vmatpush1.bf16.msra.mxu0 0
    %1477 = vmatprep.subr.bf16.mxu0 0
    %1478 = vmatpush1.bf16.msra.mxu0 0
    %1479 = vmatprep.subr.bf16.mxu0 0
    %1480 = vmatpush1.bf16.msra.mxu0 0
    %1481 = vmatprep.subr.bf16.mxu0 0
    %1482 = vmatpush1.bf16.msra.mxu0 0
    %1483 = vmatprep.subr.bf16.mxu0 0
    %1484 = vmatpush1.bf16.msra.mxu0 0
    %1485 = vmatprep.subr.bf16.mxu0 0
    %1486 = vmatpush1.bf16.msra.mxu0 0
    %1487 = vmatprep.subr.bf16.mxu0 0
    %1488 = vmatpush1.bf16.msra.mxu0 0
    %1489 = vmatprep.subr.bf16.mxu0 0
    %1490 = vmatpush1.bf16.msra.mxu0 0
    %1491 = vmatprep.subr.bf16.mxu0 0
    %1492 = vmatpush1.bf16.msra.mxu0 0
    %1493 = vmatprep.subr.bf16.mxu0 0
    %1494 = vmatpush1.bf16.msra.mxu0 0
    %1495 = vmatprep.subr.bf16.mxu0 0
    %1496 = vmatpush1.bf16.msra.mxu0 0
    %1497 = vmatprep.subr.bf16.mxu0 0
    %1498 = vmatpush1.bf16.msra.mxu0 0
    %1499 = vmatprep.mubr.bf16.mxu0 0
    %1500 = vmatmul.mubr.bf16.gmra.mrb[0].mxu0 %v1080
    %v1501 = vpop.f32.mrb[0].mxu0
    %v1502 = vadd.f32 %v1389, %v1501
    %v1503 = vpop.f32.mrb[0].mxu0
    %v1504 = vadd.f32 %v1391, %v1503
    %v1505 = vpop.f32.mrb[0].mxu0
    %v1506 = vadd.f32 %v1393, %v1505
    %v1507 = vpop.f32.mrb[0].mxu0
    %v1508 = vadd.f32 %v1395, %v1507
    %1509 = vmatprep.mubr.bf16.mxu0 0
    %1510 = vmatmul.mubr.bf16.gmra.mrb[0].mxu0 %v1083
    %v1511 = vpop.f32.mrb[0].mxu0
    %v1512 = vadd.f32 %v1399, %v1511
    %v1513 = vpop.f32.mrb[0].mxu0
    %v1514 = vadd.f32 %v1401, %v1513
    %v1515 = vpop.f32.mrb[0].mxu0
    %v1516 = vadd.f32 %v1403, %v1515
    %v1517 = vpop.f32.mrb[0].mxu0
    %v1518 = vadd.f32 %v1405, %v1517
    %1519 = vmatprep.mubr.bf16.mxu0 0
    %1520 = vmatmul.mubr.bf16.gmra.mrb[0].mxu0 %v1086
    %v1521 = vpop.f32.mrb[0].mxu0
    %v1522 = vadd.f32 %v1409, %v1521
    %v1523 = vpop.f32.mrb[0].mxu0
    %v1524 = vadd.f32 %v1411, %v1523
    %v1525 = vpop.f32.mrb[0].mxu0
    %v1526 = vadd.f32 %v1413, %v1525
    %v1527 = vpop.f32.mrb[0].mxu0
    %v1528 = vadd.f32 %v1415, %v1527
    %1529 = vmatprep.mubr.bf16.mxu0 0
    %1530 = vmatmul.mubr.bf16.gmra.mrb[0].mxu0 %v1089
    %v1531 = vpop.f32.mrb[0].mxu0
    %v1532 = vadd.f32 %v1419, %v1531
    %v1533 = vpop.f32.mrb[0].mxu0
    %v1534 = vadd.f32 %v1421, %v1533
    %v1535 = vpop.f32.mrb[0].mxu0
    %v1536 = vadd.f32 %v1423, %v1535
    %v1537 = vpop.f32.mrb[0].mxu0
    %v1538 = vadd.f32 %v1425, %v1537
    %1539 = vmatprep.mubr.bf16.mxu0 0
    %1540 = vmatmul.mubr.bf16.gmra.mrb[0].mxu0 %v1092
    %v1541 = vpop.f32.mrb[0].mxu0
    %v1542 = vadd.f32 %v1429, %v1541
    %v1543 = vpop.f32.mrb[0].mxu0
    %v1544 = vadd.f32 %v1431, %v1543
    %v1545 = vpop.f32.mrb[0].mxu0
    %v1546 = vadd.f32 %v1433, %v1545
    %v1547 = vpop.f32.mrb[0].mxu0
    %v1548 = vadd.f32 %v1435, %v1547
    %1549 = vmatprep.mubr.bf16.mxu0 0
    %1550 = vmatmul.mubr.bf16.gmra.mrb[0].mxu0 %v1095
    %v1551 = vpop.f32.mrb[0].mxu0
    %v1552 = vadd.f32 %v1439, %v1551
    %v1553 = vpop.f32.mrb[0].mxu0
    %v1554 = vadd.f32 %v1441, %v1553
    %v1555 = vpop.f32.mrb[0].mxu0
    %v1556 = vadd.f32 %v1443, %v1555
    %v1557 = vpop.f32.mrb[0].mxu0
    %v1558 = vadd.f32 %v1445, %v1557
    %1559 = vmatprep.mubr.bf16.mxu0 0
    %1560 = vmatmul.mubr.bf16.gmra.mrb[0].mxu0 %v1098
    %v1561 = vpop.f32.mrb[0].mxu0
    %v1562 = vadd.f32 %v1449, %v1561
    %v1563 = vpop.f32.mrb[0].mxu0
    %v1564 = vadd.f32 %v1451, %v1563
    %v1565 = vpop.f32.mrb[0].mxu0
    %v1566 = vadd.f32 %v1453, %v1565
    %v1567 = vpop.f32.mrb[0].mxu0
    %v1568 = vadd.f32 %v1455, %v1567
    %1569 = vmatprep.mubr.bf16.mxu0 0
    %1570 = vmatmul.mubr.bf16.gmra.mrb[0].mxu0 %v1101
    %v1571 = vpop.f32.mrb[0].mxu0
    %v1572 = vadd.f32 %v1459, %v1571
    %v1573 = vpop.f32.mrb[0].mxu0
    %v1574 = vadd.f32 %v1461, %v1573
    %v1575 = vpop.f32.mrb[0].mxu0
    %v1576 = vadd.f32 %v1463, %v1575
    %v1577 = vpop.f32.mrb[0].mxu0
    %v1578 = vadd.f32 %v1465, %v1577
    %1579 = vdwg.mxu0
    %1580 = vmatprep.subr.bf16.mxu0 %v819
    %1581 = vmatpush1.bf16.msra.mxu0 %v818
    %1582 = vmatprep.subr.bf16.mxu0 %v827
    %1583 = vmatpush1.bf16.msra.mxu0 %v826
    %1584 = vmatprep.subr.bf16.mxu0 %v835
    %1585 = vmatpush1.bf16.msra.mxu0 %v834
    %1586 = vmatprep.subr.bf16.mxu0 %v843
    %1587 = vmatpush1.bf16.msra.mxu0 %v842
    %1588 = vmatprep.subr.bf16.mxu0 %v851
    %1589 = vmatpush1.bf16.msra.mxu0 %v850
    %1590 = vmatprep.subr.bf16.mxu0 %v859
    %1591 = vmatpush1.bf16.msra.mxu0 %v858
    %1592 = vmatprep.subr.bf16.mxu0 %v867
    %1593 = vmatpush1.bf16.msra.mxu0 %v866
    %1594 = vmatprep.subr.bf16.mxu0 %v875
    %1595 = vmatpush1.bf16.msra.mxu0 %v874
    %1596 = vmatprep.subr.bf16.mxu0 %v883
    %1597 = vmatpush1.bf16.msra.mxu0 %v882
    %1598 = vmatprep.subr.bf16.mxu0 %v891
    %1599 = vmatpush1.bf16.msra.mxu0 %v890
    %1600 = vmatprep.subr.bf16.mxu0 %v899
    %1601 = vmatpush1.bf16.msra.mxu0 %v898
    %1602 = vmatprep.subr.bf16.mxu0 %v907
    %1603 = vmatpush1.bf16.msra.mxu0 %v906
    %1604 = vmatprep.subr.bf16.mxu0 %v915
    %1605 = vmatpush1.bf16.msra.mxu0 %v914
    %1606 = vmatprep.subr.bf16.mxu0 %v923
    %1607 = vmatpush1.bf16.msra.mxu0 %v922
    %1608 = vmatprep.subr.bf16.mxu0 %v931
    %1609 = vmatpush1.bf16.msra.mxu0 %v930
    %1610 = vmatprep.subr.bf16.mxu0 %v939
    %1611 = vmatpush1.bf16.msra.mxu0 %v938
    %1612 = vmatprep.mubr.bf16.mxu0 %v367
    %1613 = vmatmul.mubr.bf16.gmra.mrb[0].mxu0 %v366
    %v1614 = vpop.f32.mrb[0].mxu0
    %v1615 = vadd.f32 %v265, %v1614
    %v1616 = vpop.f32.mrb[0].mxu0
    %v1617 = vadd.f32 %v269, %v1616
    %v1618 = vpop.f32.mrb[0].mxu0
    %v1619 = vadd.f32 %v265, %v1618
    %v1620 = vpop.f32.mrb[0].mxu0
    %v1621 = vadd.f32 %v269, %v1620
    %1622 = vmatprep.mubr.bf16.mxu0 %v370
    %1623 = vmatmul.mubr.bf16.gmra.mrb[0].mxu0 %v369
    %v1624 = vpop.f32.mrb[0].mxu0
    %v1625 = vadd.f32 %v265, %v1624
    %v1626 = vpop.f32.mrb[0].mxu0
    %v1627 = vadd.f32 %v269, %v1626
    %v1628 = vpop.f32.mrb[0].mxu0
    %v1629 = vadd.f32 %v265, %v1628
    %v1630 = vpop.f32.mrb[0].mxu0
    %v1631 = vadd.f32 %v269, %v1630
    %1632 = vmatprep.mubr.bf16.mxu0 %v373
    %1633 = vmatmul.mubr.bf16.gmra.mrb[0].mxu0 %v372
    %v1634 = vpop.f32.mrb[0].mxu0
    %v1635 = vadd.f32 %v265, %v1634
    %v1636 = vpop.f32.mrb[0].mxu0
    %v1637 = vadd.f32 %v269, %v1636
    %v1638 = vpop.f32.mrb[0].mxu0
    %v1639 = vadd.f32 %v265, %v1638
    %v1640 = vpop.f32.mrb[0].mxu0
    %v1641 = vadd.f32 %v269, %v1640
    %1642 = vmatprep.mubr.bf16.mxu0 %v376
    %1643 = vmatmul.mubr.bf16.gmra.mrb[0].mxu0 %v375
    %v1644 = vpop.f32.mrb[0].mxu0
    %v1645 = vadd.f32 %v265, %v1644
    %v1646 = vpop.f32.mrb[0].mxu0
    %v1647 = vadd.f32 %v269, %v1646
    %v1648 = vpop.f32.mrb[0].mxu0
    %v1649 = vadd.f32 %v265, %v1648
    %v1650 = vpop.f32.mrb[0].mxu0
    %v1651 = vadd.f32 %v269, %v1650
    %1652 = vmatprep.mubr.bf16.mxu0 %v379
    %1653 = vmatmul.mubr.bf16.gmra.mrb[0].mxu0 %v378
    %v1654 = vpop.f32.mrb[0].mxu0
    %v1655 = vadd.f32 %v265, %v1654
    %v1656 = vpop.f32.mrb[0].mxu0
    %v1657 = vadd.f32 %v269, %v1656
    %v1658 = vpop.f32.mrb[0].mxu0
    %v1659 = vadd.f32 %v265, %v1658
    %v1660 = vpop.f32.mrb[0].mxu0
    %v1661 = vadd.f32 %v269, %v1660
    %1662 = vmatprep.mubr.bf16.mxu0 %v382
    %1663 = vmatmul.mubr.bf16.gmra.mrb[0].mxu0 %v381
    %v1664 = vpop.f32.mrb[0].mxu0
    %v1665 = vadd.f32 %v265, %v1664
    %v1666 = vpop.f32.mrb[0].mxu0
    %v1667 = vadd.f32 %v269, %v1666
    %v1668 = vpop.f32.mrb[0].mxu0
    %v1669 = vadd.f32 %v265, %v1668
    %v1670 = vpop.f32.mrb[0].mxu0
    %v1671 = vadd.f32 %v269, %v1670
    %1672 = vmatprep.mubr.bf16.mxu0 %v385
    %1673 = vmatmul.mubr.bf16.gmra.mrb[0].mxu0 %v384
    %v1674 = vpop.f32.mrb[0].mxu0
    %v1675 = vadd.f32 %v265, %v1674
    %v1676 = vpop.f32.mrb[0].mxu0
    %v1677 = vadd.f32 %v269, %v1676
    %v1678 = vpop.f32.mrb[0].mxu0
    %v1679 = vadd.f32 %v265, %v1678
    %v1680 = vpop.f32.mrb[0].mxu0
    %v1681 = vadd.f32 %v269, %v1680
    %1682 = vmatprep.mubr.bf16.mxu0 %v388
    %1683 = vmatmul.mubr.bf16.gmra.mrb[0].mxu0 %v387
    %v1684 = vpop.f32.mrb[0].mxu0
    %v1685 = vadd.f32 %v265, %v1684
    %v1686 = vpop.f32.mrb[0].mxu0
    %v1687 = vadd.f32 %v269, %v1686
    %v1688 = vpop.f32.mrb[0].mxu0
    %v1689 = vadd.f32 %v265, %v1688
    %v1690 = vpop.f32.mrb[0].mxu0
    %v1691 = vadd.f32 %v269, %v1690
    %1692 = vdwg.mxu0
    %1693 = vmatprep.subr.bf16.mxu0 %v1120
    %1694 = vmatpush1.bf16.msra.mxu0 %v1117
    %1695 = vmatprep.subr.bf16.mxu0 0
    %1696 = vmatpush1.bf16.msra.mxu0 0
    %1697 = vmatprep.subr.bf16.mxu0 0
    %1698 = vmatpush1.bf16.msra.mxu0 0
    %1699 = vmatprep.subr.bf16.mxu0 0
    %1700 = vmatpush1.bf16.msra.mxu0 0
    %1701 = vmatprep.subr.bf16.mxu0 0
    %1702 = vmatpush1.bf16.msra.mxu0 0
    %1703 = vmatprep.subr.bf16.mxu0 0
    %1704 = vmatpush1.bf16.msra.mxu0 0
    %1705 = vmatprep.subr.bf16.mxu0 0
    %1706 = vmatpush1.bf16.msra.mxu0 0
    %1707 = vmatprep.subr.bf16.mxu0 0
    %1708 = vmatpush1.bf16.msra.mxu0 0
    %1709 = vmatprep.subr.bf16.mxu0 0
    %1710 = vmatpush1.bf16.msra.mxu0 0
    %1711 = vmatprep.subr.bf16.mxu0 0
    %1712 = vmatpush1.bf16.msra.mxu0 0
    %1713 = vmatprep.subr.bf16.mxu0 0
    %1714 = vmatpush1.bf16.msra.mxu0 0
    %1715 = vmatprep.subr.bf16.mxu0 0
    %1716 = vmatpush1.bf16.msra.mxu0 0
    %1717 = vmatprep.subr.bf16.mxu0 0
    %1718 = vmatpush1.bf16.msra.mxu0 0
    %1719 = vmatprep.subr.bf16.mxu0 0
    %1720 = vmatpush1.bf16.msra.mxu0 0
    %1721 = vmatprep.subr.bf16.mxu0 0
    %1722 = vmatpush1.bf16.msra.mxu0 0
    %1723 = vmatprep.subr.bf16.mxu0 0
    %1724 = vmatpush1.bf16.msra.mxu0 0
    %1725 = vmatprep.mubr.bf16.mxu0 0
    %1726 = vmatmul.mubr.bf16.gmra.mrb[0].mxu0 %v1080
    %v1727 = vpop.f32.mrb[0].mxu0
    %v1728 = vadd.f32 %v1615, %v1727
    %v1729 = vpop.f32.mrb[0].mxu0
    %v1730 = vadd.f32 %v1617, %v1729
    %v1731 = vpop.f32.mrb[0].mxu0
    %v1732 = vadd.f32 %v1619, %v1731
    %v1733 = vpop.f32.mrb[0].mxu0
    %v1734 = vadd.f32 %v1621, %v1733
    %1735 = vmatprep.mubr.bf16.mxu0 0
    %1736 = vmatmul.mubr.bf16.gmra.mrb[0].mxu0 %v1083
    %v1737 = vpop.f32.mrb[0].mxu0
    %v1738 = vadd.f32 %v1625, %v1737
    %v1739 = vpop.f32.mrb[0].mxu0
    %v1740 = vadd.f32 %v1627, %v1739
    %v1741 = vpop.f32.mrb[0].mxu0
    %v1742 = vadd.f32 %v1629, %v1741
    %v1743 = vpop.f32.mrb[0].mxu0
    %v1744 = vadd.f32 %v1631, %v1743
    %1745 = vmatprep.mubr.bf16.mxu0 0
    %1746 = vmatmul.mubr.bf16.gmra.mrb[0].mxu0 %v1086
    %v1747 = vpop.f32.mrb[0].mxu0
    %v1748 = vadd.f32 %v1635, %v1747
    %v1749 = vpop.f32.mrb[0].mxu0
    %v1750 = vadd.f32 %v1637, %v1749
    %v1751 = vpop.f32.mrb[0].mxu0
    %v1752 = vadd.f32 %v1639, %v1751
    %v1753 = vpop.f32.mrb[0].mxu0
    %v1754 = vadd.f32 %v1641, %v1753
    %1755 = vmatprep.mubr.bf16.mxu0 0
    %1756 = vmatmul.mubr.bf16.gmra.mrb[0].mxu0 %v1089
    %v1757 = vpop.f32.mrb[0].mxu0
    %v1758 = vadd.f32 %v1645, %v1757
    %v1759 = vpop.f32.mrb[0].mxu0
    %v1760 = vadd.f32 %v1647, %v1759
    %v1761 = vpop.f32.mrb[0].mxu0
    %v1762 = vadd.f32 %v1649, %v1761
    %v1763 = vpop.f32.mrb[0].mxu0
    %v1764 = vadd.f32 %v1651, %v1763
    %1765 = vmatprep.mubr.bf16.mxu0 0
    %1766 = vmatmul.mubr.bf16.gmra.mrb[0].mxu0 %v1092
    %v1767 = vpop.f32.mrb[0].mxu0
    %v1768 = vadd.f32 %v1655, %v1767
    %v1769 = vpop.f32.mrb[0].mxu0
    %v1770 = vadd.f32 %v1657, %v1769
    %v1771 = vpop.f32.mrb[0].mxu0
    %v1772 = vadd.f32 %v1659, %v1771
    %v1773 = vpop.f32.mrb[0].mxu0
    %v1774 = vadd.f32 %v1661, %v1773
    %1775 = vmatprep.mubr.bf16.mxu0 0
    %1776 = vmatmul.mubr.bf16.gmra.mrb[0].mxu0 %v1095
    %v1777 = vpop.f32.mrb[0].mxu0
    %v1778 = vadd.f32 %v1665, %v1777
    %v1779 = vpop.f32.mrb[0].mxu0
    %v1780 = vadd.f32 %v1667, %v1779
    %v1781 = vpop.f32.mrb[0].mxu0
    %v1782 = vadd.f32 %v1669, %v1781
    %v1783 = vpop.f32.mrb[0].mxu0
    %v1784 = vadd.f32 %v1671, %v1783
    %1785 = vmatprep.mubr.bf16.mxu0 0
    %1786 = vmatmul.mubr.bf16.gmra.mrb[0].mxu0 %v1098
    %v1787 = vpop.f32.mrb[0].mxu0
    %v1788 = vadd.f32 %v1675, %v1787
    %v1789 = vpop.f32.mrb[0].mxu0
    %v1790 = vadd.f32 %v1677, %v1789
    %v1791 = vpop.f32.mrb[0].mxu0
    %v1792 = vadd.f32 %v1679, %v1791
    %v1793 = vpop.f32.mrb[0].mxu0
    %v1794 = vadd.f32 %v1681, %v1793
    %1795 = vmatprep.mubr.bf16.mxu0 0
    %1796 = vmatmul.mubr.bf16.gmra.mrb[0].mxu0 %v1101
    %v1797 = vpop.f32.mrb[0].mxu0
    %v1798 = vadd.f32 %v1685, %v1797
    %v1799 = vpop.f32.mrb[0].mxu0
    %v1800 = vadd.f32 %v1687, %v1799
    %v1801 = vpop.f32.mrb[0].mxu0
    %v1802 = vadd.f32 %v1689, %v1801
    %v1803 = vpop.f32.mrb[0].mxu0
    %v1804 = vadd.f32 %v1691, %v1803
    %1805 = vdwg.mxu0
    %1806 = vmatprep.subr.bf16.mxu0 %v821
    %1807 = vmatpush1.bf16.msra.mxu0 %v820
    %1808 = vmatprep.subr.bf16.mxu0 %v829
    %1809 = vmatpush1.bf16.msra.mxu0 %v828
    %1810 = vmatprep.subr.bf16.mxu0 %v837
    %1811 = vmatpush1.bf16.msra.mxu0 %v836
    %1812 = vmatprep.subr.bf16.mxu0 %v845
    %1813 = vmatpush1.bf16.msra.mxu0 %v844
    %1814 = vmatprep.subr.bf16.mxu0 %v853
    %1815 = vmatpush1.bf16.msra.mxu0 %v852
    %1816 = vmatprep.subr.bf16.mxu0 %v861
    %1817 = vmatpush1.bf16.msra.mxu0 %v860
    %1818 = vmatprep.subr.bf16.mxu0 %v869
    %1819 = vmatpush1.bf16.msra.mxu0 %v868
    %1820 = vmatprep.subr.bf16.mxu0 %v877
    %1821 = vmatpush1.bf16.msra.mxu0 %v876
    %1822 = vmatprep.subr.bf16.mxu0 %v885
    %1823 = vmatpush1.bf16.msra.mxu0 %v884
    %1824 = vmatprep.subr.bf16.mxu0 %v893
    %1825 = vmatpush1.bf16.msra.mxu0 %v892
    %1826 = vmatprep.subr.bf16.mxu0 %v901
    %1827 = vmatpush1.bf16.msra.mxu0 %v900
    %1828 = vmatprep.subr.bf16.mxu0 %v909
    %1829 = vmatpush1.bf16.msra.mxu0 %v908
    %1830 = vmatprep.subr.bf16.mxu0 %v917
    %1831 = vmatpush1.bf16.msra.mxu0 %v916
    %1832 = vmatprep.subr.bf16.mxu0 %v925
    %1833 = vmatpush1.bf16.msra.mxu0 %v924
    %1834 = vmatprep.subr.bf16.mxu0 %v933
    %1835 = vmatpush1.bf16.msra.mxu0 %v932
    %1836 = vmatprep.subr.bf16.mxu0 %v941
    %1837 = vmatpush1.bf16.msra.mxu0 %v940
    %1838 = vmatprep.mubr.bf16.mxu0 %v367
    %1839 = vmatmul.mubr.bf16.gmra.mrb[0].mxu0 %v366
    %v1840 = vpop.f32.mrb[0].mxu0
    %v1841 = vadd.f32 %v273, %v1840
    %v1842 = vpop.f32.mrb[0].mxu0
    %v1843 = vadd.f32 %v277, %v1842
    %v1844 = vpop.f32.mrb[0].mxu0
    %v1845 = vadd.f32 %v273, %v1844
    %v1846 = vpop.f32.mrb[0].mxu0
    %v1847 = vadd.f32 %v277, %v1846
    %1848 = vmatprep.mubr.bf16.mxu0 %v370
    %1849 = vmatmul.mubr.bf16.gmra.mrb[0].mxu0 %v369
    %v1850 = vpop.f32.mrb[0].mxu0
    %v1851 = vadd.f32 %v273, %v1850
    %v1852 = vpop.f32.mrb[0].mxu0
    %v1853 = vadd.f32 %v277, %v1852
    %v1854 = vpop.f32.mrb[0].mxu0
    %v1855 = vadd.f32 %v273, %v1854
    %v1856 = vpop.f32.mrb[0].mxu0
    %v1857 = vadd.f32 %v277, %v1856
    %1858 = vmatprep.mubr.bf16.mxu0 %v373
    %1859 = vmatmul.mubr.bf16.gmra.mrb[0].mxu0 %v372
    %v1860 = vpop.f32.mrb[0].mxu0
    %v1861 = vadd.f32 %v273, %v1860
    %v1862 = vpop.f32.mrb[0].mxu0
    %v1863 = vadd.f32 %v277, %v1862
    %v1864 = vpop.f32.mrb[0].mxu0
    %v1865 = vadd.f32 %v273, %v1864
    %v1866 = vpop.f32.mrb[0].mxu0
    %v1867 = vadd.f32 %v277, %v1866
    %1868 = vmatprep.mubr.bf16.mxu0 %v376
    %1869 = vmatmul.mubr.bf16.gmra.mrb[0].mxu0 %v375
    %v1870 = vpop.f32.mrb[0].mxu0
    %v1871 = vadd.f32 %v273, %v1870
    %v1872 = vpop.f32.mrb[0].mxu0
    %v1873 = vadd.f32 %v277, %v1872
    %v1874 = vpop.f32.mrb[0].mxu0
    %v1875 = vadd.f32 %v273, %v1874
    %v1876 = vpop.f32.mrb[0].mxu0
    %v1877 = vadd.f32 %v277, %v1876
    %1878 = vmatprep.mubr.bf16.mxu0 %v379
    %1879 = vmatmul.mubr.bf16.gmra.mrb[0].mxu0 %v378
    %v1880 = vpop.f32.mrb[0].mxu0
    %v1881 = vadd.f32 %v273, %v1880
    %v1882 = vpop.f32.mrb[0].mxu0
    %v1883 = vadd.f32 %v277, %v1882
    %v1884 = vpop.f32.mrb[0].mxu0
    %v1885 = vadd.f32 %v273, %v1884
    %v1886 = vpop.f32.mrb[0].mxu0
    %v1887 = vadd.f32 %v277, %v1886
    %1888 = vmatprep.mubr.bf16.mxu0 %v382
    %1889 = vmatmul.mubr.bf16.gmra.mrb[0].mxu0 %v381
    %v1890 = vpop.f32.mrb[0].mxu0
    %v1891 = vadd.f32 %v273, %v1890
    %v1892 = vpop.f32.mrb[0].mxu0
    %v1893 = vadd.f32 %v277, %v1892
    %v1894 = vpop.f32.mrb[0].mxu0
    %v1895 = vadd.f32 %v273, %v1894
    %v1896 = vpop.f32.mrb[0].mxu0
    %v1897 = vadd.f32 %v277, %v1896
    %1898 = vmatprep.mubr.bf16.mxu0 %v385
    %1899 = vmatmul.mubr.bf16.gmra.mrb[0].mxu0 %v384
    %v1900 = vpop.f32.mrb[0].mxu0
    %v1901 = vadd.f32 %v273, %v1900
    %v1902 = vpop.f32.mrb[0].mxu0
    %v1903 = vadd.f32 %v277, %v1902
    %v1904 = vpop.f32.mrb[0].mxu0
    %v1905 = vadd.f32 %v273, %v1904
    %v1906 = vpop.f32.mrb[0].mxu0
    %v1907 = vadd.f32 %v277, %v1906
    %1908 = vmatprep.mubr.bf16.mxu0 %v388
    %1909 = vmatmul.mubr.bf16.gmra.mrb[0].mxu0 %v387
    %v1910 = vpop.f32.mrb[0].mxu0
    %v1911 = vadd.f32 %v273, %v1910
    %v1912 = vpop.f32.mrb[0].mxu0
    %v1913 = vadd.f32 %v277, %v1912
    %v1914 = vpop.f32.mrb[0].mxu0
    %v1915 = vadd.f32 %v273, %v1914
    %v1916 = vpop.f32.mrb[0].mxu0
    %v1917 = vadd.f32 %v277, %v1916
    %1918 = vdwg.mxu0
    %1919 = vmatprep.subr.bf16.mxu0 %v1126
    %1920 = vmatpush1.bf16.msra.mxu0 %v1123
    %1921 = vmatprep.subr.bf16.mxu0 0
    %1922 = vmatpush1.bf16.msra.mxu0 0
    %1923 = vmatprep.subr.bf16.mxu0 0
    %1924 = vmatpush1.bf16.msra.mxu0 0
    %1925 = vmatprep.subr.bf16.mxu0 0
    %1926 = vmatpush1.bf16.msra.mxu0 0
    %1927 = vmatprep.subr.bf16.mxu0 0
    %1928 = vmatpush1.bf16.msra.mxu0 0
    %1929 = vmatprep.subr.bf16.mxu0 0
    %1930 = vmatpush1.bf16.msra.mxu0 0
    %1931 = vmatprep.subr.bf16.mxu0 0
    %1932 = vmatpush1.bf16.msra.mxu0 0
    %1933 = vmatprep.subr.bf16.mxu0 0
    %1934 = vmatpush1.bf16.msra.mxu0 0
    %1935 = vmatprep.subr.bf16.mxu0 0
    %1936 = vmatpush1.bf16.msra.mxu0 0
    %1937 = vmatprep.subr.bf16.mxu0 0
    %1938 = vmatpush1.bf16.msra.mxu0 0
    %1939 = vmatprep.subr.bf16.mxu0 0
    %1940 = vmatpush1.bf16.msra.mxu0 0
    %1941 = vmatprep.subr.bf16.mxu0 0
    %1942 = vmatpush1.bf16.msra.mxu0 0
    %1943 = vmatprep.subr.bf16.mxu0 0
    %1944 = vmatpush1.bf16.msra.mxu0 0
    %1945 = vmatprep.subr.bf16.mxu0 0
    %1946 = vmatpush1.bf16.msra.mxu0 0
    %1947 = vmatprep.subr.bf16.mxu0 0
    %1948 = vmatpush1.bf16.msra.mxu0 0
    %1949 = vmatprep.subr.bf16.mxu0 0
    %1950 = vmatpush1.bf16.msra.mxu0 0
    %1951 = vmatprep.mubr.bf16.mxu0 0
    %1952 = vmatmul.mubr.bf16.gmra.mrb[0].mxu0 %v1080
    %v1953 = vpop.f32.mrb[0].mxu0
    %v1954 = vadd.f32 %v1841, %v1953
    %v1955 = vpop.f32.mrb[0].mxu0
    %v1956 = vadd.f32 %v1843, %v1955
    %v1957 = vpop.f32.mrb[0].mxu0
    %v1958 = vadd.f32 %v1845, %v1957
    %v1959 = vpop.f32.mrb[0].mxu0
    %v1960 = vadd.f32 %v1847, %v1959
    %1961 = vmatprep.mubr.bf16.mxu0 0
    %1962 = vmatmul.mubr.bf16.gmra.mrb[0].mxu0 %v1083
    %v1963 = vpop.f32.mrb[0].mxu0
    %v1964 = vadd.f32 %v1851, %v1963
    %v1965 = vpop.f32.mrb[0].mxu0
    %v1966 = vadd.f32 %v1853, %v1965
    %v1967 = vpop.f32.mrb[0].mxu0
    %v1968 = vadd.f32 %v1855, %v1967
    %v1969 = vpop.f32.mrb[0].mxu0
    %v1970 = vadd.f32 %v1857, %v1969
    %1971 = vmatprep.mubr.bf16.mxu0 0
    %1972 = vmatmul.mubr.bf16.gmra.mrb[0].mxu0 %v1086
    %v1973 = vpop.f32.mrb[0].mxu0
    %v1974 = vadd.f32 %v1861, %v1973
    %v1975 = vpop.f32.mrb[0].mxu0
    %v1976 = vadd.f32 %v1863, %v1975
    %v1977 = vpop.f32.mrb[0].mxu0
    %v1978 = vadd.f32 %v1865, %v1977
    %v1979 = vpop.f32.mrb[0].mxu0
    %v1980 = vadd.f32 %v1867, %v1979
    %1981 = vmatprep.mubr.bf16.mxu0 0
    %1982 = vmatmul.mubr.bf16.gmra.mrb[0].mxu0 %v1089
    %v1983 = vpop.f32.mrb[0].mxu0
    %v1984 = vadd.f32 %v1871, %v1983
    %v1985 = vpop.f32.mrb[0].mxu0
    %v1986 = vadd.f32 %v1873, %v1985
    %v1987 = vpop.f32.mrb[0].mxu0
    %v1988 = vadd.f32 %v1875, %v1987
    %v1989 = vpop.f32.mrb[0].mxu0
    %v1990 = vadd.f32 %v1877, %v1989
    %1991 = vmatprep.mubr.bf16.mxu0 0
    %1992 = vmatmul.mubr.bf16.gmra.mrb[0].mxu0 %v1092
    %v1993 = vpop.f32.mrb[0].mxu0
    %v1994 = vadd.f32 %v1881, %v1993
    %v1995 = vpop.f32.mrb[0].mxu0
    %v1996 = vadd.f32 %v1883, %v1995
    %v1997 = vpop.f32.mrb[0].mxu0
    %v1998 = vadd.f32 %v1885, %v1997
    %v1999 = vpop.f32.mrb[0].mxu0
    %v2000 = vadd.f32 %v1887, %v1999
    %2001 = vmatprep.mubr.bf16.mxu0 0
    %2002 = vmatmul.mubr.bf16.gmra.mrb[0].mxu0 %v1095
    %v2003 = vpop.f32.mrb[0].mxu0
    %v2004 = vadd.f32 %v1891, %v2003
    %v2005 = vpop.f32.mrb[0].mxu0
    %v2006 = vadd.f32 %v1893, %v2005
    %v2007 = vpop.f32.mrb[0].mxu0
    %v2008 = vadd.f32 %v1895, %v2007
    %v2009 = vpop.f32.mrb[0].mxu0
    %v2010 = vadd.f32 %v1897, %v2009
    %2011 = vmatprep.mubr.bf16.mxu0 0
    %2012 = vmatmul.mubr.bf16.gmra.mrb[0].mxu0 %v1098
    %v2013 = vpop.f32.mrb[0].mxu0
    %v2014 = vadd.f32 %v1901, %v2013
    %v2015 = vpop.f32.mrb[0].mxu0
    %v2016 = vadd.f32 %v1903, %v2015
    %v2017 = vpop.f32.mrb[0].mxu0
    %v2018 = vadd.f32 %v1905, %v2017
    %v2019 = vpop.f32.mrb[0].mxu0
    %v2020 = vadd.f32 %v1907, %v2019
    %2021 = vmatprep.mubr.bf16.mxu0 0
    %2022 = vmatmul.mubr.bf16.gmra.mrb[0].mxu0 %v1101
    %v2023 = vpop.f32.mrb[0].mxu0
    %v2024 = vadd.f32 %v1911, %v2023
    %v2025 = vpop.f32.mrb[0].mxu0
    %v2026 = vadd.f32 %v1913, %v2025
    %v2027 = vpop.f32.mrb[0].mxu0
    %v2028 = vadd.f32 %v1915, %v2027
    %v2029 = vpop.f32.mrb[0].mxu0
    %v2030 = vadd.f32 %v1917, %v2029
    %2031 = vdwg.mxu0
    %v2032 = vmul.f32 %v1276, 0.2
    %v2033 = vmul.f32 %v1278, 0.2
    %v2034 = vmul.f32 %v1502, 0.2
    %v2035 = vmul.f32 %v1504, 0.2
    %v2036 = vmul.f32 %v1728, 0.2
    %v2037 = vmul.f32 %v1730, 0.2
    %v2038 = vmul.f32 %v1954, 0.2
    %v2039 = vmul.f32 %v1956, 0.2
    %v2040 = vmul.f32 %v1280, 0.2
    %v2041 = vmul.f32 %v1282, 0.2
    %v2042 = vmul.f32 %v1506, 0.2
    %v2043 = vmul.f32 %v1508, 0.2
    %v2044 = vmul.f32 %v1732, 0.2
    %v2045 = vmul.f32 %v1734, 0.2
    %v2046 = vmul.f32 %v1958, 0.2
    %v2047 = vmul.f32 %v1960, 0.2
    %v2048 = vmul.f32 %v1286, 0.2
    %v2049 = vmul.f32 %v1288, 0.2
    %v2050 = vmul.f32 %v1512, 0.2
    %v2051 = vmul.f32 %v1514, 0.2
    %v2052 = vmul.f32 %v1738, 0.2
    %v2053 = vmul.f32 %v1740, 0.2
    %v2054 = vmul.f32 %v1964, 0.2
    %v2055 = vmul.f32 %v1966, 0.2
    %v2056 = vmul.f32 %v1290, 0.2
    %v2057 = vmul.f32 %v1292, 0.2
    %v2058 = vmul.f32 %v1516, 0.2
    %v2059 = vmul.f32 %v1518, 0.2
    %v2060 = vmul.f32 %v1742, 0.2
    %v2061 = vmul.f32 %v1744, 0.2
    %v2062 = vmul.f32 %v1968, 0.2
    %v2063 = vmul.f32 %v1970, 0.2
    %v2064 = vmul.f32 %v1296, 0.2
    %v2065 = vmul.f32 %v1298, 0.2
    %v2066 = vmul.f32 %v1522, 0.2
    %v2067 = vmul.f32 %v1524, 0.2
    %v2068 = vmul.f32 %v1748, 0.2
    %v2069 = vmul.f32 %v1750, 0.2
    %v2070 = vmul.f32 %v1974, 0.2
    %v2071 = vmul.f32 %v1976, 0.2
    %v2072 = vmul.f32 %v1300, 0.2
    %v2073 = vmul.f32 %v1302, 0.2
    %v2074 = vmul.f32 %v1526, 0.2
    %v2075 = vmul.f32 %v1528, 0.2
    %v2076 = vmul.f32 %v1752, 0.2
    %v2077 = vmul.f32 %v1754, 0.2
    %v2078 = vmul.f32 %v1978, 0.2
    %v2079 = vmul.f32 %v1980, 0.2
    %v2080 = vmul.f32 %v1306, 0.2
    %v2081 = vmul.f32 %v1308, 0.2
    %v2082 = vmul.f32 %v1532, 0.2
    %v2083 = vmul.f32 %v1534, 0.2
    %v2084 = vmul.f32 %v1758, 0.2
    %v2085 = vmul.f32 %v1760, 0.2
    %v2086 = vmul.f32 %v1984, 0.2
    %v2087 = vmul.f32 %v1986, 0.2
    %v2088 = vmul.f32 %v1310, 0.2
    %v2089 = vmul.f32 %v1312, 0.2
    %v2090 = vmul.f32 %v1536, 0.2
    %v2091 = vmul.f32 %v1538, 0.2
    %v2092 = vmul.f32 %v1762, 0.2
    %v2093 = vmul.f32 %v1764, 0.2
    %v2094 = vmul.f32 %v1988, 0.2
    %v2095 = vmul.f32 %v1990, 0.2
    %v2096 = vmul.f32 %v1316, 0.2
    %v2097 = vmul.f32 %v1318, 0.2
    %v2098 = vmul.f32 %v1542, 0.2
    %v2099 = vmul.f32 %v1544, 0.2
    %v2100 = vmul.f32 %v1768, 0.2
    %v2101 = vmul.f32 %v1770, 0.2
    %v2102 = vmul.f32 %v1994, 0.2
    %v2103 = vmul.f32 %v1996, 0.2
    %v2104 = vmul.f32 %v1320, 0.2
    %v2105 = vmul.f32 %v1322, 0.2
    %v2106 = vmul.f32 %v1546, 0.2
    %v2107 = vmul.f32 %v1548, 0.2
    %v2108 = vmul.f32 %v1772, 0.2
    %v2109 = vmul.f32 %v1774, 0.2
    %v2110 = vmul.f32 %v1998, 0.2
    %v2111 = vmul.f32 %v2000, 0.2
    %v2112 = vmul.f32 %v1326, 0.2
    %v2113 = vmul.f32 %v1328, 0.2
    %v2114 = vmul.f32 %v1552, 0.2
    %v2115 = vmul.f32 %v1554, 0.2
    %v2116 = vmul.f32 %v1778, 0.2
    %v2117 = vmul.f32 %v1780, 0.2
    %v2118 = vmul.f32 %v2004, 0.2
    %v2119 = vmul.f32 %v2006, 0.2
    %v2120 = vmul.f32 %v1330, 0.2
    %v2121 = vmul.f32 %v1332, 0.2
    %v2122 = vmul.f32 %v1556, 0.2
    %v2123 = vmul.f32 %v1558, 0.2
    %v2124 = vmul.f32 %v1782, 0.2
    %v2125 = vmul.f32 %v1784, 0.2
    %v2126 = vmul.f32 %v2008, 0.2
    %v2127 = vmul.f32 %v2010, 0.2
    %v2128 = vmul.f32 %v1336, 0.2
    %v2129 = vmul.f32 %v1338, 0.2
    %v2130 = vmul.f32 %v1562, 0.2
    %v2131 = vmul.f32 %v1564, 0.2
    %v2132 = vmul.f32 %v1788, 0.2
    %v2133 = vmul.f32 %v1790, 0.2
    %v2134 = vmul.f32 %v2014, 0.2
    %v2135 = vmul.f32 %v2016, 0.2
    %v2136 = vmul.f32 %v1340, 0.2
    %v2137 = vmul.f32 %v1342, 0.2
    %v2138 = vmul.f32 %v1566, 0.2
    %v2139 = vmul.f32 %v1568, 0.2
    %v2140 = vmul.f32 %v1792, 0.2
    %v2141 = vmul.f32 %v1794, 0.2
    %v2142 = vmul.f32 %v2018, 0.2
    %v2143 = vmul.f32 %v2020, 0.2
    %v2144 = vmul.f32 %v1346, 0.2
    %v2145 = vmul.f32 %v1348, 0.2
    %v2146 = vmul.f32 %v1572, 0.2
    %v2147 = vmul.f32 %v1574, 0.2
    %v2148 = vmul.f32 %v1798, 0.2
    %v2149 = vmul.f32 %v1800, 0.2
    %v2150 = vmul.f32 %v2024, 0.2
    %v2151 = vmul.f32 %v2026, 0.2
    %v2152 = vmul.f32 %v1350, 0.2
    %v2153 = vmul.f32 %v1352, 0.2
    %v2154 = vmul.f32 %v1576, 0.2
    %v2155 = vmul.f32 %v1578, 0.2
    %v2156 = vmul.f32 %v1802, 0.2
    %v2157 = vmul.f32 %v1804, 0.2
    %v2158 = vmul.f32 %v2028, 0.2
    %v2159 = vmul.f32 %v2030, 0.2
    %v2160 = vmax.f32 %v1276, %v2032
    %v2161 = vmax.f32 %v1278, %v2033
    %v2162 = vmax.f32 %v1502, %v2034
    %v2163 = vmax.f32 %v1504, %v2035
    %v2164 = vmax.f32 %v1728, %v2036
    %v2165 = vmax.f32 %v1730, %v2037
    %v2166 = vmax.f32 %v1954, %v2038
    %v2167 = vmax.f32 %v1956, %v2039
    %v2168 = vmax.f32 %v1280, %v2040
    %v2169 = vmax.f32 %v1282, %v2041
    %v2170 = vmax.f32 %v1506, %v2042
    %v2171 = vmax.f32 %v1508, %v2043
    %v2172 = vmax.f32 %v1732, %v2044
    %v2173 = vmax.f32 %v1734, %v2045
    %v2174 = vmax.f32 %v1958, %v2046
    %v2175 = vmax.f32 %v1960, %v2047
    %v2176 = vmax.f32 %v1286, %v2048
    %v2177 = vmax.f32 %v1288, %v2049
    %v2178 = vmax.f32 %v1512, %v2050
    %v2179 = vmax.f32 %v1514, %v2051
    %v2180 = vmax.f32 %v1738, %v2052
    %v2181 = vmax.f32 %v1740, %v2053
    %v2182 = vmax.f32 %v1964, %v2054
    %v2183 = vmax.f32 %v1966, %v2055
    %v2184 = vmax.f32 %v1290, %v2056
    %v2185 = vmax.f32 %v1292, %v2057
    %v2186 = vmax.f32 %v1516, %v2058
    %v2187 = vmax.f32 %v1518, %v2059
    %v2188 = vmax.f32 %v1742, %v2060
    %v2189 = vmax.f32 %v1744, %v2061
    %v2190 = vmax.f32 %v1968, %v2062
    %v2191 = vmax.f32 %v1970, %v2063
    %v2192 = vmax.f32 %v1296, %v2064
    %v2193 = vmax.f32 %v1298, %v2065
    %v2194 = vmax.f32 %v1522, %v2066
    %v2195 = vmax.f32 %v1524, %v2067
    %v2196 = vmax.f32 %v1748, %v2068
    %v2197 = vmax.f32 %v1750, %v2069
    %v2198 = vmax.f32 %v1974, %v2070
    %v2199 = vmax.f32 %v1976, %v2071
    %v2200 = vmax.f32 %v1300, %v2072
    %v2201 = vmax.f32 %v1302, %v2073
    %v2202 = vmax.f32 %v1526, %v2074
    %v2203 = vmax.f32 %v1528, %v2075
    %v2204 = vmax.f32 %v1752, %v2076
    %v2205 = vmax.f32 %v1754, %v2077
    %v2206 = vmax.f32 %v1978, %v2078
    %v2207 = vmax.f32 %v1980, %v2079
    %v2208 = vmax.f32 %v1306, %v2080
    %v2209 = vmax.f32 %v1308, %v2081
    %v2210 = vmax.f32 %v1532, %v2082
    %v2211 = vmax.f32 %v1534, %v2083
    %v2212 = vmax.f32 %v1758, %v2084
    %v2213 = vmax.f32 %v1760, %v2085
    %v2214 = vmax.f32 %v1984, %v2086
    %v2215 = vmax.f32 %v1986, %v2087
    %v2216 = vmax.f32 %v1310, %v2088
    %v2217 = vmax.f32 %v1312, %v2089
    %v2218 = vmax.f32 %v1536, %v2090
    %v2219 = vmax.f32 %v1538, %v2091
    %v2220 = vmax.f32 %v1762, %v2092
    %v2221 = vmax.f32 %v1764, %v2093
    %v2222 = vmax.f32 %v1988, %v2094
    %v2223 = vmax.f32 %v1990, %v2095
    %v2224 = vmax.f32 %v1316, %v2096
    %v2225 = vmax.f32 %v1318, %v2097
    %v2226 = vmax.f32 %v1542, %v2098
    %v2227 = vmax.f32 %v1544, %v2099
    %v2228 = vmax.f32 %v1768, %v2100
    %v2229 = vmax.f32 %v1770, %v2101
    %v2230 = vmax.f32 %v1994, %v2102
    %v2231 = vmax.f32 %v1996, %v2103
    %v2232 = vmax.f32 %v1320, %v2104
    %v2233 = vmax.f32 %v1322, %v2105
    %v2234 = vmax.f32 %v1546, %v2106
    %v2235 = vmax.f32 %v1548, %v2107
    %v2236 = vmax.f32 %v1772, %v2108
    %v2237 = vmax.f32 %v1774, %v2109
    %v2238 = vmax.f32 %v1998, %v2110
    %v2239 = vmax.f32 %v2000, %v2111
    %v2240 = vmax.f32 %v1326, %v2112
    %v2241 = vmax.f32 %v1328, %v2113
    %v2242 = vmax.f32 %v1552, %v2114
    %v2243 = vmax.f32 %v1554, %v2115
    %v2244 = vmax.f32 %v1778, %v2116
    %v2245 = vmax.f32 %v1780, %v2117
    %v2246 = vmax.f32 %v2004, %v2118
    %v2247 = vmax.f32 %v2006, %v2119
    %v2248 = vmax.f32 %v1330, %v2120
    %v2249 = vmax.f32 %v1332, %v2121
    %v2250 = vmax.f32 %v1556, %v2122
    %v2251 = vmax.f32 %v1558, %v2123
    %v2252 = vmax.f32 %v1782, %v2124
    %v2253 = vmax.f32 %v1784, %v2125
    %v2254 = vmax.f32 %v2008, %v2126
    %v2255 = vmax.f32 %v2010, %v2127
    %v2256 = vmax.f32 %v1336, %v2128
    %v2257 = vmax.f32 %v1338, %v2129
    %v2258 = vmax.f32 %v1562, %v2130
    %v2259 = vmax.f32 %v1564, %v2131
    %v2260 = vmax.f32 %v1788, %v2132
    %v2261 = vmax.f32 %v1790, %v2133
    %v2262 = vmax.f32 %v2014, %v2134
    %v2263 = vmax.f32 %v2016, %v2135
    %v2264 = vmax.f32 %v1340, %v2136
    %v2265 = vmax.f32 %v1342, %v2137
    %v2266 = vmax.f32 %v1566, %v2138
    %v2267 = vmax.f32 %v1568, %v2139
    %v2268 = vmax.f32 %v1792, %v2140
    %v2269 = vmax.f32 %v1794, %v2141
    %v2270 = vmax.f32 %v2018, %v2142
    %v2271 = vmax.f32 %v2020, %v2143
    %v2272 = vmax.f32 %v1346, %v2144
    %v2273 = vmax.f32 %v1348, %v2145
    %v2274 = vmax.f32 %v1572, %v2146
    %v2275 = vmax.f32 %v1574, %v2147
    %v2276 = vmax.f32 %v1798, %v2148
    %v2277 = vmax.f32 %v1800, %v2149
    %v2278 = vmax.f32 %v2024, %v2150
    %v2279 = vmax.f32 %v2026, %v2151
    %v2280 = vmax.f32 %v1350, %v2152
    %v2281 = vmax.f32 %v1352, %v2153
    %v2282 = vmax.f32 %v1576, %v2154
    %v2283 = vmax.f32 %v1578, %v2155
    %v2284 = vmax.f32 %v1802, %v2156
    %v2285 = vmax.f32 %v1804, %v2157
    %v2286 = vmax.f32 %v2028, %v2158
    %v2287 = vmax.f32 %v2030, %v2159
    %v2288 = vpack.c.bf16 %v2168, %v2160
    %v2289 = vpack.c.bf16 %v2169, %v2161
    %v2290 = vpack.c.bf16 %v2170, %v2162
    %v2291 = vpack.c.bf16 %v2171, %v2163
    %v2292 = vpack.c.bf16 %v2172, %v2164
    %v2293 = vpack.c.bf16 %v2173, %v2165
    %v2294 = vpack.c.bf16 %v2174, %v2166
    %v2295 = vpack.c.bf16 %v2175, %v2167
    %v2296 = vpack.c.bf16 %v2184, %v2176
    %v2297 = vpack.c.bf16 %v2185, %v2177
    %v2298 = vpack.c.bf16 %v2186, %v2178
    %v2299 = vpack.c.bf16 %v2187, %v2179
    %v2300 = vpack.c.bf16 %v2188, %v2180
    %v2301 = vpack.c.bf16 %v2189, %v2181
    %v2302 = vpack.c.bf16 %v2190, %v2182
    %v2303 = vpack.c.bf16 %v2191, %v2183
    %v2304 = vpack.c.bf16 %v2200, %v2192
    %v2305 = vpack.c.bf16 %v2201, %v2193
    %v2306 = vpack.c.bf16 %v2202, %v2194
    %v2307 = vpack.c.bf16 %v2203, %v2195
    %v2308 = vpack.c.bf16 %v2204, %v2196
    %v2309 = vpack.c.bf16 %v2205, %v2197
    %v2310 = vpack.c.bf16 %v2206, %v2198
    %v2311 = vpack.c.bf16 %v2207, %v2199
    %v2312 = vpack.c.bf16 %v2216, %v2208
    %v2313 = vpack.c.bf16 %v2217, %v2209
    %v2314 = vpack.c.bf16 %v2218, %v2210
    %v2315 = vpack.c.bf16 %v2219, %v2211
    %v2316 = vpack.c.bf16 %v2220, %v2212
    %v2317 = vpack.c.bf16 %v2221, %v2213
    %v2318 = vpack.c.bf16 %v2222, %v2214
    %v2319 = vpack.c.bf16 %v2223, %v2215
    %v2320 = vpack.c.bf16 %v2232, %v2224
    %v2321 = vpack.c.bf16 %v2233, %v2225
    %v2322 = vpack.c.bf16 %v2234, %v2226
    %v2323 = vpack.c.bf16 %v2235, %v2227
    %v2324 = vpack.c.bf16 %v2236, %v2228
    %v2325 = vpack.c.bf16 %v2237, %v2229
    %v2326 = vpack.c.bf16 %v2238, %v2230
    %v2327 = vpack.c.bf16 %v2239, %v2231
    %v2328 = vpack.c.bf16 %v2248, %v2240
    %v2329 = vpack.c.bf16 %v2249, %v2241
    %v2330 = vpack.c.bf16 %v2250, %v2242
    %v2331 = vpack.c.bf16 %v2251, %v2243
    %v2332 = vpack.c.bf16 %v2252, %v2244
    %v2333 = vpack.c.bf16 %v2253, %v2245
    %v2334 = vpack.c.bf16 %v2254, %v2246
    %v2335 = vpack.c.bf16 %v2255, %v2247
    %v2336 = vpack.c.bf16 %v2264, %v2256
    %v2337 = vpack.c.bf16 %v2265, %v2257
    %v2338 = vpack.c.bf16 %v2266, %v2258
    %v2339 = vpack.c.bf16 %v2267, %v2259
    %v2340 = vpack.c.bf16 %v2268, %v2260
    %v2341 = vpack.c.bf16 %v2269, %v2261
    %v2342 = vpack.c.bf16 %v2270, %v2262
    %v2343 = vpack.c.bf16 %v2271, %v2263
    %v2344 = vpack.c.bf16 %v2280, %v2272
    %v2345 = vpack.c.bf16 %v2281, %v2273
    %v2346 = vpack.c.bf16 %v2282, %v2274
    %v2347 = vpack.c.bf16 %v2283, %v2275
    %v2348 = vpack.c.bf16 %v2284, %v2276
    %v2349 = vpack.c.bf16 %v2285, %v2277
    %v2350 = vpack.c.bf16 %v2286, %v2278
    %v2351 = vpack.c.bf16 %v2287, %v2279
    %v2352 = vld [vmem:[#allocation5] sm:$0xff]
    %v2353 = vld [vmem:[#allocation5 + $0x8] sm:$0xff]
    %v2354 = vld [vmem:[#allocation5 + $0x10] sm:$0xff]
    %v2355 = vld [vmem:[#allocation5 + $0x18] sm:$0xff]
    %v2356 = vld [vmem:[#allocation5 + $0x20] sm:$0xff]
    %v2357 = vld [vmem:[#allocation5 + $0x28] sm:$0xff]
    %v2358 = vld [vmem:[#allocation5 + $0x30] sm:$0xff]
    %v2359 = vld [vmem:[#allocation5 + $0x38] sm:$0xff]
    %v2360 = vld [vmem:[#allocation5 + $0x40] sm:$0xff]
    %v2361 = vld [vmem:[#allocation5 + $0x48] sm:$0xff]
    %v2362 = vld [vmem:[#allocation5 + $0x50] sm:$0xff]
    %v2363 = vld [vmem:[#allocation5 + $0x58] sm:$0xff]
    %v2364 = vld [vmem:[#allocation5 + $0x60] sm:$0xff]
    %v2365 = vld [vmem:[#allocation5 + $0x68] sm:$0xff]
    %v2366 = vld [vmem:[#allocation5 + $0x70] sm:$0xff]
    %v2367 = vld [vmem:[#allocation5 + $0x78] sm:$0xff]
    %v2368 = vld [vmem:[#allocation5 + $0x80] sm:$0xff]
    %v2369 = vld [vmem:[#allocation5 + $0x88] sm:$0xff]
    %v2370 = vld [vmem:[#allocation5 + $0x90] sm:$0xff]
    %v2371 = vld [vmem:[#allocation5 + $0x98] sm:$0xff]
    %v2372 = vld [vmem:[#allocation5 + $0xa0] sm:$0xff]
    %v2373 = vld [vmem:[#allocation5 + $0xa8] sm:$0xff]
    %v2374 = vld [vmem:[#allocation5 + $0xb0] sm:$0xff]
    %v2375 = vld [vmem:[#allocation5 + $0xb8] sm:$0xff]
    %v2376 = vld [vmem:[#allocation5 + $0xc0] sm:$0xff]
    %v2377 = vld [vmem:[#allocation5 + $0xc8] sm:$0xff]
    %v2378 = vld [vmem:[#allocation5 + $0xd0] sm:$0xff]
    %v2379 = vld [vmem:[#allocation5 + $0xd8] sm:$0xff]
    %v2380 = vld [vmem:[#allocation5 + $0xe0] sm:$0xff]
    %v2381 = vld [vmem:[#allocation5 + $0xe8] sm:$0xff]
    %v2382 = vld [vmem:[#allocation5 + $0xf0] sm:$0xff]
    %v2383 = vld [vmem:[#allocation5 + $0xf8] sm:$0xff]
    %v2384 = vld [vmem:[#allocation5 + $0x100] sm:$0xff]
    %v2385 = vld [vmem:[#allocation5 + $0x108] sm:$0xff]
    %v2386 = vld [vmem:[#allocation5 + $0x110] sm:$0xff]
    %v2387 = vld [vmem:[#allocation5 + $0x118] sm:$0xff]
    %v2388 = vld [vmem:[#allocation5 + $0x120] sm:$0xff]
    %v2389 = vld [vmem:[#allocation5 + $0x128] sm:$0xff]
    %v2390 = vld [vmem:[#allocation5 + $0x130] sm:$0xff]
    %v2391 = vld [vmem:[#allocation5 + $0x138] sm:$0xff]
    %v2392 = vld [vmem:[#allocation5 + $0x140] sm:$0xff]
    %v2393 = vld [vmem:[#allocation5 + $0x148] sm:$0xff]
    %v2394 = vld [vmem:[#allocation5 + $0x150] sm:$0xff]
    %v2395 = vld [vmem:[#allocation5 + $0x158] sm:$0xff]
    %v2396 = vld [vmem:[#allocation5 + $0x160] sm:$0xff]
    %v2397 = vld [vmem:[#allocation5 + $0x168] sm:$0xff]
    %v2398 = vld [vmem:[#allocation5 + $0x170] sm:$0xff]
    %v2399 = vld [vmem:[#allocation5 + $0x178] sm:$0xff]
    %v2400 = vld [vmem:[#allocation5 + $0x180] sm:$0xff]
    %v2401 = vld [vmem:[#allocation5 + $0x188] sm:$0xff]
    %v2402 = vld [vmem:[#allocation5 + $0x190] sm:$0xff]
    %v2403 = vld [vmem:[#allocation5 + $0x198] sm:$0xff]
    %v2404 = vld [vmem:[#allocation5 + $0x1a0] sm:$0xff]
    %v2405 = vld [vmem:[#allocation5 + $0x1a8] sm:$0xff]
    %v2406 = vld [vmem:[#allocation5 + $0x1b0] sm:$0xff]
    %v2407 = vld [vmem:[#allocation5 + $0x1b8] sm:$0xff]
    %v2408 = vld [vmem:[#allocation5 + $0x1c0] sm:$0xff]
    %v2409 = vld [vmem:[#allocation5 + $0x1c8] sm:$0xff]
    %v2410 = vld [vmem:[#allocation5 + $0x1d0] sm:$0xff]
    %v2411 = vld [vmem:[#allocation5 + $0x1d8] sm:$0xff]
    %v2412 = vld [vmem:[#allocation5 + $0x1e0] sm:$0xff]
    %v2413 = vld [vmem:[#allocation5 + $0x1e8] sm:$0xff]
    %v2414 = vld [vmem:[#allocation5 + $0x1f0] sm:$0xff]
    %v2415 = vld [vmem:[#allocation5 + $0x1f8] sm:$0xff]
    %v2416 = vld [vmem:[#allocation5 + $0x200] sm:$0xff]
    %v2417 = vld [vmem:[#allocation5 + $0x208] sm:$0xff]
    %v2418 = vld [vmem:[#allocation5 + $0x210] sm:$0xff]
    %v2419 = vld [vmem:[#allocation5 + $0x218] sm:$0xff]
    %v2420 = vld [vmem:[#allocation5 + $0x220] sm:$0xff]
    %v2421 = vld [vmem:[#allocation5 + $0x228] sm:$0xff]
    %v2422 = vld [vmem:[#allocation5 + $0x230] sm:$0xff]
    %v2423 = vld [vmem:[#allocation5 + $0x238] sm:$0xff]
    %v2424 = vld [vmem:[#allocation5 + $0x240] sm:$0xff]
    %v2425 = vld [vmem:[#allocation5 + $0x248] sm:$0xff]
    %v2426 = vld [vmem:[#allocation5 + $0x250] sm:$0xff]
    %v2427 = vld [vmem:[#allocation5 + $0x258] sm:$0xff]
    %v2428 = vld [vmem:[#allocation5 + $0x260] sm:$0xff]
    %v2429 = vld [vmem:[#allocation5 + $0x268] sm:$0xff]
    %v2430 = vld [vmem:[#allocation5 + $0x270] sm:$0xff]
    %v2431 = vld [vmem:[#allocation5 + $0x278] sm:$0xff]
    %v2432 = vld [vmem:[#allocation5 + $0x280] sm:$0xff]
    %v2433 = vld [vmem:[#allocation5 + $0x288] sm:$0xff]
    %v2434 = vld [vmem:[#allocation5 + $0x290] sm:$0xff]
    %v2435 = vld [vmem:[#allocation5 + $0x298] sm:$0xff]
    %v2436 = vld [vmem:[#allocation5 + $0x2a0] sm:$0xff]
    %v2437 = vld [vmem:[#allocation5 + $0x2a8] sm:$0xff]
    %v2438 = vld [vmem:[#allocation5 + $0x2b0] sm:$0xff]
    %v2439 = vld [vmem:[#allocation5 + $0x2b8] sm:$0xff]
    %v2440 = vld [vmem:[#allocation5 + $0x2c0] sm:$0xff]
    %v2441 = vld [vmem:[#allocation5 + $0x2c8] sm:$0xff]
    %v2442 = vld [vmem:[#allocation5 + $0x2d0] sm:$0xff]
    %v2443 = vld [vmem:[#allocation5 + $0x2d8] sm:$0xff]
    %v2444 = vld [vmem:[#allocation5 + $0x2e0] sm:$0xff]
    %v2445 = vld [vmem:[#allocation5 + $0x2e8] sm:$0xff]
    %v2446 = vld [vmem:[#allocation5 + $0x2f0] sm:$0xff]
    %v2447 = vld [vmem:[#allocation5 + $0x2f8] sm:$0xff]
    %v2448 = vld [vmem:[#allocation5 + $0x300] sm:$0xff]
    %v2449 = vld [vmem:[#allocation5 + $0x308] sm:$0xff]
    %v2450 = vld [vmem:[#allocation5 + $0x310] sm:$0xff]
    %v2451 = vld [vmem:[#allocation5 + $0x318] sm:$0xff]
    %v2452 = vld [vmem:[#allocation5 + $0x320] sm:$0xff]
    %v2453 = vld [vmem:[#allocation5 + $0x328] sm:$0xff]
    %v2454 = vld [vmem:[#allocation5 + $0x330] sm:$0xff]
    %v2455 = vld [vmem:[#allocation5 + $0x338] sm:$0xff]
    %v2456 = vld [vmem:[#allocation5 + $0x340] sm:$0xff]
    %v2457 = vld [vmem:[#allocation5 + $0x348] sm:$0xff]
    %v2458 = vld [vmem:[#allocation5 + $0x350] sm:$0xff]
    %v2459 = vld [vmem:[#allocation5 + $0x358] sm:$0xff]
    %v2460 = vld [vmem:[#allocation5 + $0x360] sm:$0xff]
    %v2461 = vld [vmem:[#allocation5 + $0x368] sm:$0xff]
    %v2462 = vld [vmem:[#allocation5 + $0x370] sm:$0xff]
    %v2463 = vld [vmem:[#allocation5 + $0x378] sm:$0xff]
    %v2464 = vld [vmem:[#allocation5 + $0x380] sm:$0xff]
    %v2465 = vld [vmem:[#allocation5 + $0x388] sm:$0xff]
    %v2466 = vld [vmem:[#allocation5 + $0x390] sm:$0xff]
    %v2467 = vld [vmem:[#allocation5 + $0x398] sm:$0xff]
    %v2468 = vld [vmem:[#allocation5 + $0x3a0] sm:$0xff]
    %v2469 = vld [vmem:[#allocation5 + $0x3a8] sm:$0xff]
    %v2470 = vld [vmem:[#allocation5 + $0x3b0] sm:$0xff]
    %v2471 = vld [vmem:[#allocation5 + $0x3b8] sm:$0xff]
    %v2472 = vld [vmem:[#allocation5 + $0x3c0] sm:$0xff]
    %v2473 = vld [vmem:[#allocation5 + $0x3c8] sm:$0xff]
    %v2474 = vld [vmem:[#allocation5 + $0x3d0] sm:$0xff]
    %v2475 = vld [vmem:[#allocation5 + $0x3d8] sm:$0xff]
    %v2476 = vld [vmem:[#allocation5 + $0x3e0] sm:$0xff]
    %v2477 = vld [vmem:[#allocation5 + $0x3e8] sm:$0xff]
    %v2478 = vld [vmem:[#allocation5 + $0x3f0] sm:$0xff]
    %v2479 = vld [vmem:[#allocation5 + $0x3f8] sm:$0xff]
    %v2480 = vld [vmem:[#allocation5 + $0x400] sm:$0xff]
    %v2481 = vld [vmem:[#allocation5 + $0x408] sm:$0xff]
    %v2482 = vld [vmem:[#allocation5 + $0x410] sm:$0xff]
    %v2483 = vld [vmem:[#allocation5 + $0x418] sm:$0xff]
    %v2484 = vld [vmem:[#allocation5 + $0x420] sm:$0xff]
    %v2485 = vld [vmem:[#allocation5 + $0x428] sm:$0xff]
    %v2486 = vld [vmem:[#allocation5 + $0x430] sm:$0xff]
    %v2487 = vld [vmem:[#allocation5 + $0x438] sm:$0xff]
    %v2488 = vld [vmem:[#allocation5 + $0x440] sm:$0xff]
    %v2489 = vld [vmem:[#allocation5 + $0x448] sm:$0xff]
    %v2490 = vld [vmem:[#allocation5 + $0x450] sm:$0xff]
    %v2491 = vld [vmem:[#allocation5 + $0x458] sm:$0xff]
    %v2492 = vld [vmem:[#allocation5 + $0x460] sm:$0xff]
    %v2493 = vld [vmem:[#allocation5 + $0x468] sm:$0xff]
    %v2494 = vld [vmem:[#allocation5 + $0x470] sm:$0xff]
    %v2495 = vld [vmem:[#allocation5 + $0x478] sm:$0xff]
    %v2496 = vld [vmem:[#allocation5 + $0x480] sm:$0xff]
    %v2497 = vld [vmem:[#allocation5 + $0x488] sm:$0xff]
    %v2498 = vld [vmem:[#allocation5 + $0x490] sm:$0xff]
    %v2499 = vld [vmem:[#allocation5 + $0x498] sm:$0xff]
    %v2500 = vld [vmem:[#allocation5 + $0x4a0] sm:$0xff]
    %v2501 = vld [vmem:[#allocation5 + $0x4a8] sm:$0xff]
    %v2502 = vld [vmem:[#allocation5 + $0x4b0] sm:$0xff]
    %v2503 = vld [vmem:[#allocation5 + $0x4b8] sm:$0xff]
    %v2504 = vld [vmem:[#allocation5 + $0x4c0] sm:$0xff]
    %v2505 = vld [vmem:[#allocation5 + $0x4c8] sm:$0xff]
    %v2506 = vld [vmem:[#allocation5 + $0x4d0] sm:$0xff]
    %v2507 = vld [vmem:[#allocation5 + $0x4d8] sm:$0xff]
    %v2508 = vld [vmem:[#allocation5 + $0x4e0] sm:$0xff]
    %v2509 = vld [vmem:[#allocation5 + $0x4e8] sm:$0xff]
    %v2510 = vld [vmem:[#allocation5 + $0x4f0] sm:$0xff]
    %v2511 = vld [vmem:[#allocation5 + $0x4f8] sm:$0xff]
    %v2512 = vld [vmem:[#allocation5 + $0x500] sm:$0xff]
    %v2513 = vld [vmem:[#allocation5 + $0x508] sm:$0xff]
    %v2514 = vld [vmem:[#allocation5 + $0x510] sm:$0xff]
    %v2515 = vld [vmem:[#allocation5 + $0x518] sm:$0xff]
    %v2516 = vld [vmem:[#allocation5 + $0x520] sm:$0xff]
    %v2517 = vld [vmem:[#allocation5 + $0x528] sm:$0xff]
    %v2518 = vld [vmem:[#allocation5 + $0x530] sm:$0xff]
    %v2519 = vld [vmem:[#allocation5 + $0x538] sm:$0xff]
    %v2520 = vld [vmem:[#allocation5 + $0x540] sm:$0xff]
    %v2521 = vld [vmem:[#allocation5 + $0x548] sm:$0xff]
    %v2522 = vld [vmem:[#allocation5 + $0x550] sm:$0xff]
    %v2523 = vld [vmem:[#allocation5 + $0x558] sm:$0xff]
    %v2524 = vld [vmem:[#allocation5 + $0x560] sm:$0xff]
    %v2525 = vld [vmem:[#allocation5 + $0x568] sm:$0xff]
    %v2526 = vld [vmem:[#allocation5 + $0x570] sm:$0xff]
    %v2527 = vld [vmem:[#allocation5 + $0x578] sm:$0xff]
    %v2528 = vld [vmem:[#allocation5 + $0x580] sm:$0xff]
    %v2529 = vld [vmem:[#allocation5 + $0x588] sm:$0xff]
    %v2530 = vld [vmem:[#allocation5 + $0x590] sm:$0xff]
    %v2531 = vld [vmem:[#allocation5 + $0x598] sm:$0xff]
    %v2532 = vld [vmem:[#allocation5 + $0x5a0] sm:$0xff]
    %v2533 = vld [vmem:[#allocation5 + $0x5a8] sm:$0xff]
    %v2534 = vld [vmem:[#allocation5 + $0x5b0] sm:$0xff]
    %v2535 = vld [vmem:[#allocation5 + $0x5b8] sm:$0xff]
    %v2536 = vld [vmem:[#allocation5 + $0x5c0] sm:$0xff]
    %v2537 = vld [vmem:[#allocation5 + $0x5c8] sm:$0xff]
    %v2538 = vld [vmem:[#allocation5 + $0x5d0] sm:$0xff]
    %v2539 = vld [vmem:[#allocation5 + $0x5d8] sm:$0xff]
    %v2540 = vld [vmem:[#allocation5 + $0x5e0] sm:$0xff]
    %v2541 = vld [vmem:[#allocation5 + $0x5e8] sm:$0xff]
    %v2542 = vld [vmem:[#allocation5 + $0x5f0] sm:$0xff]
    %v2543 = vld [vmem:[#allocation5 + $0x5f8] sm:$0xff]
    %v2544 = vld [vmem:[#allocation5 + $0x600] sm:$0xff]
    %v2545 = vld [vmem:[#allocation5 + $0x608] sm:$0xff]
    %v2546 = vld [vmem:[#allocation5 + $0x610] sm:$0xff]
    %v2547 = vld [vmem:[#allocation5 + $0x618] sm:$0xff]
    %v2548 = vld [vmem:[#allocation5 + $0x620] sm:$0xff]
    %v2549 = vld [vmem:[#allocation5 + $0x628] sm:$0xff]
    %v2550 = vld [vmem:[#allocation5 + $0x630] sm:$0xff]
    %v2551 = vld [vmem:[#allocation5 + $0x638] sm:$0xff]
    %v2552 = vld [vmem:[#allocation5 + $0x640] sm:$0xff]
    %v2553 = vld [vmem:[#allocation5 + $0x648] sm:$0xff]
    %v2554 = vld [vmem:[#allocation5 + $0x650] sm:$0xff]
    %v2555 = vld [vmem:[#allocation5 + $0x658] sm:$0xff]
    %v2556 = vld [vmem:[#allocation5 + $0x660] sm:$0xff]
    %v2557 = vld [vmem:[#allocation5 + $0x668] sm:$0xff]
    %v2558 = vld [vmem:[#allocation5 + $0x670] sm:$0xff]
    %v2559 = vld [vmem:[#allocation5 + $0x678] sm:$0xff]
    %v2560 = vld [vmem:[#allocation5 + $0x680] sm:$0xff]
    %v2561 = vld [vmem:[#allocation5 + $0x688] sm:$0xff]
    %v2562 = vld [vmem:[#allocation5 + $0x690] sm:$0xff]
    %v2563 = vld [vmem:[#allocation5 + $0x698] sm:$0xff]
    %v2564 = vld [vmem:[#allocation5 + $0x6a0] sm:$0xff]
    %v2565 = vld [vmem:[#allocation5 + $0x6a8] sm:$0xff]
    %v2566 = vld [vmem:[#allocation5 + $0x6b0] sm:$0xff]
    %v2567 = vld [vmem:[#allocation5 + $0x6b8] sm:$0xff]
    %v2568 = vld [vmem:[#allocation5 + $0x6c0] sm:$0xff]
    %v2569 = vld [vmem:[#allocation5 + $0x6c8] sm:$0xff]
    %v2570 = vld [vmem:[#allocation5 + $0x6d0] sm:$0xff]
    %v2571 = vld [vmem:[#allocation5 + $0x6d8] sm:$0xff]
    %v2572 = vld [vmem:[#allocation5 + $0x6e0] sm:$0xff]
    %v2573 = vld [vmem:[#allocation5 + $0x6e8] sm:$0xff]
    %v2574 = vld [vmem:[#allocation5 + $0x6f0] sm:$0xff]
    %v2575 = vld [vmem:[#allocation5 + $0x6f8] sm:$0xff]
    %v2576 = vld [vmem:[#allocation5 + $0x700] sm:$0xff]
    %v2577 = vld [vmem:[#allocation5 + $0x708] sm:$0xff]
    %v2578 = vld [vmem:[#allocation5 + $0x710] sm:$0xff]
    %v2579 = vld [vmem:[#allocation5 + $0x718] sm:$0xff]
    %v2580 = vld [vmem:[#allocation5 + $0x720] sm:$0xff]
    %v2581 = vld [vmem:[#allocation5 + $0x728] sm:$0xff]
    %v2582 = vld [vmem:[#allocation5 + $0x730] sm:$0xff]
    %v2583 = vld [vmem:[#allocation5 + $0x738] sm:$0xff]
    %v2584 = vld [vmem:[#allocation5 + $0x740] sm:$0xff]
    %v2585 = vld [vmem:[#allocation5 + $0x748] sm:$0xff]
    %v2586 = vld [vmem:[#allocation5 + $0x750] sm:$0xff]
    %v2587 = vld [vmem:[#allocation5 + $0x758] sm:$0xff]
    %v2588 = vld [vmem:[#allocation5 + $0x760] sm:$0xff]
    %v2589 = vld [vmem:[#allocation5 + $0x768] sm:$0xff]
    %v2590 = vld [vmem:[#allocation5 + $0x770] sm:$0xff]
    %v2591 = vld [vmem:[#allocation5 + $0x778] sm:$0xff]
    %v2592 = vld [vmem:[#allocation5 + $0x780] sm:$0xff]
    %v2593 = vld [vmem:[#allocation5 + $0x788] sm:$0xff]
    %v2594 = vld [vmem:[#allocation5 + $0x790] sm:$0xff]
    %v2595 = vld [vmem:[#allocation5 + $0x798] sm:$0xff]
    %v2596 = vld [vmem:[#allocation5 + $0x7a0] sm:$0xff]
    %v2597 = vld [vmem:[#allocation5 + $0x7a8] sm:$0xff]
    %v2598 = vld [vmem:[#allocation5 + $0x7b0] sm:$0xff]
    %v2599 = vld [vmem:[#allocation5 + $0x7b8] sm:$0xff]
    %v2600 = vld [vmem:[#allocation5 + $0x7c0] sm:$0xff]
    %v2601 = vld [vmem:[#allocation5 + $0x7c8] sm:$0xff]
    %v2602 = vld [vmem:[#allocation5 + $0x7d0] sm:$0xff]
    %v2603 = vld [vmem:[#allocation5 + $0x7d8] sm:$0xff]
    %v2604 = vld [vmem:[#allocation5 + $0x7e0] sm:$0xff]
    %v2605 = vld [vmem:[#allocation5 + $0x7e8] sm:$0xff]
    %v2606 = vld [vmem:[#allocation5 + $0x7f0] sm:$0xff]
    %v2607 = vld [vmem:[#allocation5 + $0x7f8] sm:$0xff]
    %v2608 = vld [vmem:[%s4] sm:$0xf]
    %v2610 = vlaneseq
    %v2611 = vshrl.u32 %v2610, 7
    %v2612 = vsub.s32 0, %v2611
    %v2613 = vrot.slane %v2608, %v2612
    %v2614 = vlaneseq
    %v2615 = vshrl.u32 %v2614, 7
    %v2616 = vsub.s32 1, %v2615
    %v2617 = vrot.slane %v2608, %v2616
    %v2618 = vlaneseq
    %v2619 = vshrl.u32 %v2618, 7
    %v2620 = vsub.s32 2, %v2619
    %v2621 = vrot.slane %v2608, %v2620
    %v2622 = vlaneseq
    %v2623 = vshrl.u32 %v2622, 7
    %v2624 = vsub.s32 3, %v2623
    %v2625 = vrot.slane %v2608, %v2624
    %v2886 = vunpack.c.l.b16 %v2352
    %v2887 = vunpack.c.h.b16 %v2352
    %v2888 = vunpack.c.l.b16 %v2353
    %v2889 = vunpack.c.h.b16 %v2353
    %v2890 = vunpack.c.l.b16 %v2354
    %v2891 = vunpack.c.h.b16 %v2354
    %v2892 = vunpack.c.l.b16 %v2355
    %v2893 = vunpack.c.h.b16 %v2355
    %v2894 = vunpack.c.l.b16 %v2356
    %v2895 = vunpack.c.h.b16 %v2356
    %v2896 = vunpack.c.l.b16 %v2357
    %v2897 = vunpack.c.h.b16 %v2357
    %v2898 = vunpack.c.l.b16 %v2358
    %v2899 = vunpack.c.h.b16 %v2358
    %v2900 = vunpack.c.l.b16 %v2359
    %v2901 = vunpack.c.h.b16 %v2359
    %v2902 = vunpack.c.l.b16 %v2360
    %v2903 = vunpack.c.h.b16 %v2360
    %v2904 = vunpack.c.l.b16 %v2361
    %v2905 = vunpack.c.h.b16 %v2361
    %v2906 = vunpack.c.l.b16 %v2362
    %v2907 = vunpack.c.h.b16 %v2362
    %v2908 = vunpack.c.l.b16 %v2363
    %v2909 = vunpack.c.h.b16 %v2363
    %v2910 = vunpack.c.l.b16 %v2364
    %v2911 = vunpack.c.h.b16 %v2364
    %v2912 = vunpack.c.l.b16 %v2365
    %v2913 = vunpack.c.h.b16 %v2365
    %v2914 = vunpack.c.l.b16 %v2366
    %v2915 = vunpack.c.h.b16 %v2366
    %v2916 = vunpack.c.l.b16 %v2367
    %v2917 = vunpack.c.h.b16 %v2367
    %v2918 = vunpack.c.l.b16 %v2368
    %v2919 = vunpack.c.h.b16 %v2368
    %v2920 = vunpack.c.l.b16 %v2369
    %v2921 = vunpack.c.h.b16 %v2369
    %v2922 = vunpack.c.l.b16 %v2370
    %v2923 = vunpack.c.h.b16 %v2370
    %v2924 = vunpack.c.l.b16 %v2371
    %v2925 = vunpack.c.h.b16 %v2371
    %v2926 = vunpack.c.l.b16 %v2372
    %v2927 = vunpack.c.h.b16 %v2372
    %v2928 = vunpack.c.l.b16 %v2373
    %v2929 = vunpack.c.h.b16 %v2373
    %v2930 = vunpack.c.l.b16 %v2374
    %v2931 = vunpack.c.h.b16 %v2374
    %v2932 = vunpack.c.l.b16 %v2375
    %v2933 = vunpack.c.h.b16 %v2375
    %v2934 = vunpack.c.l.b16 %v2376
    %v2935 = vunpack.c.h.b16 %v2376
    %v2936 = vunpack.c.l.b16 %v2377
    %v2937 = vunpack.c.h.b16 %v2377
    %v2938 = vunpack.c.l.b16 %v2378
    %v2939 = vunpack.c.h.b16 %v2378
    %v2940 = vunpack.c.l.b16 %v2379
    %v2941 = vunpack.c.h.b16 %v2379
    %v2942 = vunpack.c.l.b16 %v2380
    %v2943 = vunpack.c.h.b16 %v2380
    %v2944 = vunpack.c.l.b16 %v2381
    %v2945 = vunpack.c.h.b16 %v2381
    %v2946 = vunpack.c.l.b16 %v2382
    %v2947 = vunpack.c.h.b16 %v2382
    %v2948 = vunpack.c.l.b16 %v2383
    %v2949 = vunpack.c.h.b16 %v2383
    %v2950 = vunpack.c.l.b16 %v2384
    %v2951 = vunpack.c.h.b16 %v2384
    %v2952 = vunpack.c.l.b16 %v2385
    %v2953 = vunpack.c.h.b16 %v2385
    %v2954 = vunpack.c.l.b16 %v2386
    %v2955 = vunpack.c.h.b16 %v2386
    %v2956 = vunpack.c.l.b16 %v2387
    %v2957 = vunpack.c.h.b16 %v2387
    %v2958 = vunpack.c.l.b16 %v2388
    %v2959 = vunpack.c.h.b16 %v2388
    %v2960 = vunpack.c.l.b16 %v2389
    %v2961 = vunpack.c.h.b16 %v2389
    %v2962 = vunpack.c.l.b16 %v2390
    %v2963 = vunpack.c.h.b16 %v2390
    %v2964 = vunpack.c.l.b16 %v2391
    %v2965 = vunpack.c.h.b16 %v2391
    %v2966 = vunpack.c.l.b16 %v2392
    %v2967 = vunpack.c.h.b16 %v2392
    %v2968 = vunpack.c.l.b16 %v2393
    %v2969 = vunpack.c.h.b16 %v2393
    %v2970 = vunpack.c.l.b16 %v2394
    %v2971 = vunpack.c.h.b16 %v2394
    %v2972 = vunpack.c.l.b16 %v2395
    %v2973 = vunpack.c.h.b16 %v2395
    %v2974 = vunpack.c.l.b16 %v2396
    %v2975 = vunpack.c.h.b16 %v2396
    %v2976 = vunpack.c.l.b16 %v2397
    %v2977 = vunpack.c.h.b16 %v2397
    %v2978 = vunpack.c.l.b16 %v2398
    %v2979 = vunpack.c.h.b16 %v2398
    %v2980 = vunpack.c.l.b16 %v2399
    %v2981 = vunpack.c.h.b16 %v2399
    %v2982 = vunpack.c.l.b16 %v2400
    %v2983 = vunpack.c.h.b16 %v2400
    %v2984 = vunpack.c.l.b16 %v2401
    %v2985 = vunpack.c.h.b16 %v2401
    %v2986 = vunpack.c.l.b16 %v2402
    %v2987 = vunpack.c.h.b16 %v2402
    %v2988 = vunpack.c.l.b16 %v2403
    %v2989 = vunpack.c.h.b16 %v2403
    %v2990 = vunpack.c.l.b16 %v2404
    %v2991 = vunpack.c.h.b16 %v2404
    %v2992 = vunpack.c.l.b16 %v2405
    %v2993 = vunpack.c.h.b16 %v2405
    %v2994 = vunpack.c.l.b16 %v2406
    %v2995 = vunpack.c.h.b16 %v2406
    %v2996 = vunpack.c.l.b16 %v2407
    %v2997 = vunpack.c.h.b16 %v2407
    %v2998 = vunpack.c.l.b16 %v2408
    %v2999 = vunpack.c.h.b16 %v2408
    %v3000 = vunpack.c.l.b16 %v2409
    %v3001 = vunpack.c.h.b16 %v2409
    %v3002 = vunpack.c.l.b16 %v2410
    %v3003 = vunpack.c.h.b16 %v2410
    %v3004 = vunpack.c.l.b16 %v2411
    %v3005 = vunpack.c.h.b16 %v2411
    %v3006 = vunpack.c.l.b16 %v2412
    %v3007 = vunpack.c.h.b16 %v2412
    %v3008 = vunpack.c.l.b16 %v2413
    %v3009 = vunpack.c.h.b16 %v2413
    %v3010 = vunpack.c.l.b16 %v2414
    %v3011 = vunpack.c.h.b16 %v2414
    %v3012 = vunpack.c.l.b16 %v2415
    %v3013 = vunpack.c.h.b16 %v2415
    %v3014 = vunpack.c.l.b16 %v2416
    %v3015 = vunpack.c.h.b16 %v2416
    %v3016 = vunpack.c.l.b16 %v2417
    %v3017 = vunpack.c.h.b16 %v2417
    %v3018 = vunpack.c.l.b16 %v2418
    %v3019 = vunpack.c.h.b16 %v2418
    %v3020 = vunpack.c.l.b16 %v2419
    %v3021 = vunpack.c.h.b16 %v2419
    %v3022 = vunpack.c.l.b16 %v2420
    %v3023 = vunpack.c.h.b16 %v2420
    %v3024 = vunpack.c.l.b16 %v2421
    %v3025 = vunpack.c.h.b16 %v2421
    %v3026 = vunpack.c.l.b16 %v2422
    %v3027 = vunpack.c.h.b16 %v2422
    %v3028 = vunpack.c.l.b16 %v2423
    %v3029 = vunpack.c.h.b16 %v2423
    %v3030 = vunpack.c.l.b16 %v2424
    %v3031 = vunpack.c.h.b16 %v2424
    %v3032 = vunpack.c.l.b16 %v2425
    %v3033 = vunpack.c.h.b16 %v2425
    %v3034 = vunpack.c.l.b16 %v2426
    %v3035 = vunpack.c.h.b16 %v2426
    %v3036 = vunpack.c.l.b16 %v2427
    %v3037 = vunpack.c.h.b16 %v2427
    %v3038 = vunpack.c.l.b16 %v2428
    %v3039 = vunpack.c.h.b16 %v2428
    %v3040 = vunpack.c.l.b16 %v2429
    %v3041 = vunpack.c.h.b16 %v2429
    %v3042 = vunpack.c.l.b16 %v2430
    %v3043 = vunpack.c.h.b16 %v2430
    %v3044 = vunpack.c.l.b16 %v2431
    %v3045 = vunpack.c.h.b16 %v2431
    %v3046 = vunpack.c.l.b16 %v2432
    %v3047 = vunpack.c.h.b16 %v2432
    %v3048 = vunpack.c.l.b16 %v2433
    %v3049 = vunpack.c.h.b16 %v2433
    %v3050 = vunpack.c.l.b16 %v2434
    %v3051 = vunpack.c.h.b16 %v2434
    %v3052 = vunpack.c.l.b16 %v2435
    %v3053 = vunpack.c.h.b16 %v2435
    %v3054 = vunpack.c.l.b16 %v2436
    %v3055 = vunpack.c.h.b16 %v2436
    %v3056 = vunpack.c.l.b16 %v2437
    %v3057 = vunpack.c.h.b16 %v2437
    %v3058 = vunpack.c.l.b16 %v2438
    %v3059 = vunpack.c.h.b16 %v2438
    %v3060 = vunpack.c.l.b16 %v2439
    %v3061 = vunpack.c.h.b16 %v2439
    %v3062 = vunpack.c.l.b16 %v2440
    %v3063 = vunpack.c.h.b16 %v2440
    %v3064 = vunpack.c.l.b16 %v2441
    %v3065 = vunpack.c.h.b16 %v2441
    %v3066 = vunpack.c.l.b16 %v2442
    %v3067 = vunpack.c.h.b16 %v2442
    %v3068 = vunpack.c.l.b16 %v2443
    %v3069 = vunpack.c.h.b16 %v2443
    %v3070 = vunpack.c.l.b16 %v2444
    %v3071 = vunpack.c.h.b16 %v2444
    %v3072 = vunpack.c.l.b16 %v2445
    %v3073 = vunpack.c.h.b16 %v2445
    %v3074 = vunpack.c.l.b16 %v2446
    %v3075 = vunpack.c.h.b16 %v2446
    %v3076 = vunpack.c.l.b16 %v2447
    %v3077 = vunpack.c.h.b16 %v2447
    %v3078 = vunpack.c.l.b16 %v2448
    %v3079 = vunpack.c.h.b16 %v2448
    %v3080 = vunpack.c.l.b16 %v2449
    %v3081 = vunpack.c.h.b16 %v2449
    %v3082 = vunpack.c.l.b16 %v2450
    %v3083 = vunpack.c.h.b16 %v2450
    %v3084 = vunpack.c.l.b16 %v2451
    %v3085 = vunpack.c.h.b16 %v2451
    %v3086 = vunpack.c.l.b16 %v2452
    %v3087 = vunpack.c.h.b16 %v2452
    %v3088 = vunpack.c.l.b16 %v2453
    %v3089 = vunpack.c.h.b16 %v2453
    %v3090 = vunpack.c.l.b16 %v2454
    %v3091 = vunpack.c.h.b16 %v2454
    %v3092 = vunpack.c.l.b16 %v2455
    %v3093 = vunpack.c.h.b16 %v2455
    %v3094 = vunpack.c.l.b16 %v2456
    %v3095 = vunpack.c.h.b16 %v2456
    %v3096 = vunpack.c.l.b16 %v2457
    %v3097 = vunpack.c.h.b16 %v2457
    %v3098 = vunpack.c.l.b16 %v2458
    %v3099 = vunpack.c.h.b16 %v2458
    %v3100 = vunpack.c.l.b16 %v2459
    %v3101 = vunpack.c.h.b16 %v2459
    %v3102 = vunpack.c.l.b16 %v2460
    %v3103 = vunpack.c.h.b16 %v2460
    %v3104 = vunpack.c.l.b16 %v2461
    %v3105 = vunpack.c.h.b16 %v2461
    %v3106 = vunpack.c.l.b16 %v2462
    %v3107 = vunpack.c.h.b16 %v2462
    %v3108 = vunpack.c.l.b16 %v2463
    %v3109 = vunpack.c.h.b16 %v2463
    %v3110 = vunpack.c.l.b16 %v2464
    %v3111 = vunpack.c.h.b16 %v2464
    %v3112 = vunpack.c.l.b16 %v2465
    %v3113 = vunpack.c.h.b16 %v2465
    %v3114 = vunpack.c.l.b16 %v2466
    %v3115 = vunpack.c.h.b16 %v2466
    %v3116 = vunpack.c.l.b16 %v2467
    %v3117 = vunpack.c.h.b16 %v2467
    %v3118 = vunpack.c.l.b16 %v2468
    %v3119 = vunpack.c.h.b16 %v2468
    %v3120 = vunpack.c.l.b16 %v2469
    %v3121 = vunpack.c.h.b16 %v2469
    %v3122 = vunpack.c.l.b16 %v2470
    %v3123 = vunpack.c.h.b16 %v2470
    %v3124 = vunpack.c.l.b16 %v2471
    %v3125 = vunpack.c.h.b16 %v2471
    %v3126 = vunpack.c.l.b16 %v2472
    %v3127 = vunpack.c.h.b16 %v2472
    %v3128 = vunpack.c.l.b16 %v2473
    %v3129 = vunpack.c.h.b16 %v2473
    %v3130 = vunpack.c.l.b16 %v2474
    %v3131 = vunpack.c.h.b16 %v2474
    %v3132 = vunpack.c.l.b16 %v2475
    %v3133 = vunpack.c.h.b16 %v2475
    %v3134 = vunpack.c.l.b16 %v2476
    %v3135 = vunpack.c.h.b16 %v2476
    %v3136 = vunpack.c.l.b16 %v2477
    %v3137 = vunpack.c.h.b16 %v2477
    %v3138 = vunpack.c.l.b16 %v2478
    %v3139 = vunpack.c.h.b16 %v2478
    %v3140 = vunpack.c.l.b16 %v2479
    %v3141 = vunpack.c.h.b16 %v2479
    %v3142 = vunpack.c.l.b16 %v2480
    %v3143 = vunpack.c.h.b16 %v2480
    %v3144 = vunpack.c.l.b16 %v2481
    %v3145 = vunpack.c.h.b16 %v2481
    %v3146 = vunpack.c.l.b16 %v2482
    %v3147 = vunpack.c.h.b16 %v2482
    %v3148 = vunpack.c.l.b16 %v2483
    %v3149 = vunpack.c.h.b16 %v2483
    %v3150 = vunpack.c.l.b16 %v2484
    %v3151 = vunpack.c.h.b16 %v2484
    %v3152 = vunpack.c.l.b16 %v2485
    %v3153 = vunpack.c.h.b16 %v2485
    %v3154 = vunpack.c.l.b16 %v2486
    %v3155 = vunpack.c.h.b16 %v2486
    %v3156 = vunpack.c.l.b16 %v2487
    %v3157 = vunpack.c.h.b16 %v2487
    %v3158 = vunpack.c.l.b16 %v2488
    %v3159 = vunpack.c.h.b16 %v2488
    %v3160 = vunpack.c.l.b16 %v2489
    %v3161 = vunpack.c.h.b16 %v2489
    %v3162 = vunpack.c.l.b16 %v2490
    %v3163 = vunpack.c.h.b16 %v2490
    %v3164 = vunpack.c.l.b16 %v2491
    %v3165 = vunpack.c.h.b16 %v2491
    %v3166 = vunpack.c.l.b16 %v2492
    %v3167 = vunpack.c.h.b16 %v2492
    %v3168 = vunpack.c.l.b16 %v2493
    %v3169 = vunpack.c.h.b16 %v2493
    %v3170 = vunpack.c.l.b16 %v2494
    %v3171 = vunpack.c.h.b16 %v2494
    %v3172 = vunpack.c.l.b16 %v2495
    %v3173 = vunpack.c.h.b16 %v2495
    %v3174 = vunpack.c.l.b16 %v2496
    %v3175 = vunpack.c.h.b16 %v2496
    %v3176 = vunpack.c.l.b16 %v2497
    %v3177 = vunpack.c.h.b16 %v2497
    %v3178 = vunpack.c.l.b16 %v2498
    %v3179 = vunpack.c.h.b16 %v2498
    %v3180 = vunpack.c.l.b16 %v2499
    %v3181 = vunpack.c.h.b16 %v2499
    %v3182 = vunpack.c.l.b16 %v2500
    %v3183 = vunpack.c.h.b16 %v2500
    %v3184 = vunpack.c.l.b16 %v2501
    %v3185 = vunpack.c.h.b16 %v2501
    %v3186 = vunpack.c.l.b16 %v2502
    %v3187 = vunpack.c.h.b16 %v2502
    %v3188 = vunpack.c.l.b16 %v2503
    %v3189 = vunpack.c.h.b16 %v2503
    %v3190 = vunpack.c.l.b16 %v2504
    %v3191 = vunpack.c.h.b16 %v2504
    %v3192 = vunpack.c.l.b16 %v2505
    %v3193 = vunpack.c.h.b16 %v2505
    %v3194 = vunpack.c.l.b16 %v2506
    %v3195 = vunpack.c.h.b16 %v2506
    %v3196 = vunpack.c.l.b16 %v2507
    %v3197 = vunpack.c.h.b16 %v2507
    %v3198 = vunpack.c.l.b16 %v2508
    %v3199 = vunpack.c.h.b16 %v2508
    %v3200 = vunpack.c.l.b16 %v2509
    %v3201 = vunpack.c.h.b16 %v2509
    %v3202 = vunpack.c.l.b16 %v2510
    %v3203 = vunpack.c.h.b16 %v2510
    %v3204 = vunpack.c.l.b16 %v2511
    %v3205 = vunpack.c.h.b16 %v2511
    %v3206 = vunpack.c.l.b16 %v2512
    %v3207 = vunpack.c.h.b16 %v2512
    %v3208 = vunpack.c.l.b16 %v2513
    %v3209 = vunpack.c.h.b16 %v2513
    %v3210 = vunpack.c.l.b16 %v2514
    %v3211 = vunpack.c.h.b16 %v2514
    %v3212 = vunpack.c.l.b16 %v2515
    %v3213 = vunpack.c.h.b16 %v2515
    %v3214 = vunpack.c.l.b16 %v2516
    %v3215 = vunpack.c.h.b16 %v2516
    %v3216 = vunpack.c.l.b16 %v2517
    %v3217 = vunpack.c.h.b16 %v2517
    %v3218 = vunpack.c.l.b16 %v2518
    %v3219 = vunpack.c.h.b16 %v2518
    %v3220 = vunpack.c.l.b16 %v2519
    %v3221 = vunpack.c.h.b16 %v2519
    %v3222 = vunpack.c.l.b16 %v2520
    %v3223 = vunpack.c.h.b16 %v2520
    %v3224 = vunpack.c.l.b16 %v2521
    %v3225 = vunpack.c.h.b16 %v2521
    %v3226 = vunpack.c.l.b16 %v2522
    %v3227 = vunpack.c.h.b16 %v2522
    %v3228 = vunpack.c.l.b16 %v2523
    %v3229 = vunpack.c.h.b16 %v2523
    %v3230 = vunpack.c.l.b16 %v2524
    %v3231 = vunpack.c.h.b16 %v2524
    %v3232 = vunpack.c.l.b16 %v2525
    %v3233 = vunpack.c.h.b16 %v2525
    %v3234 = vunpack.c.l.b16 %v2526
    %v3235 = vunpack.c.h.b16 %v2526
    %v3236 = vunpack.c.l.b16 %v2527
    %v3237 = vunpack.c.h.b16 %v2527
    %v3238 = vunpack.c.l.b16 %v2528
    %v3239 = vunpack.c.h.b16 %v2528
    %v3240 = vunpack.c.l.b16 %v2529
    %v3241 = vunpack.c.h.b16 %v2529
    %v3242 = vunpack.c.l.b16 %v2530
    %v3243 = vunpack.c.h.b16 %v2530
    %v3244 = vunpack.c.l.b16 %v2531
    %v3245 = vunpack.c.h.b16 %v2531
    %v3246 = vunpack.c.l.b16 %v2532
    %v3247 = vunpack.c.h.b16 %v2532
    %v3248 = vunpack.c.l.b16 %v2533
    %v3249 = vunpack.c.h.b16 %v2533
    %v3250 = vunpack.c.l.b16 %v2534
    %v3251 = vunpack.c.h.b16 %v2534
    %v3252 = vunpack.c.l.b16 %v2535
    %v3253 = vunpack.c.h.b16 %v2535
    %v3254 = vunpack.c.l.b16 %v2536
    %v3255 = vunpack.c.h.b16 %v2536
    %v3256 = vunpack.c.l.b16 %v2537
    %v3257 = vunpack.c.h.b16 %v2537
    %v3258 = vunpack.c.l.b16 %v2538
    %v3259 = vunpack.c.h.b16 %v2538
    %v3260 = vunpack.c.l.b16 %v2539
    %v3261 = vunpack.c.h.b16 %v2539
    %v3262 = vunpack.c.l.b16 %v2540
    %v3263 = vunpack.c.h.b16 %v2540
    %v3264 = vunpack.c.l.b16 %v2541
    %v3265 = vunpack.c.h.b16 %v2541
    %v3266 = vunpack.c.l.b16 %v2542
    %v3267 = vunpack.c.h.b16 %v2542
    %v3268 = vunpack.c.l.b16 %v2543
    %v3269 = vunpack.c.h.b16 %v2543
    %v3270 = vunpack.c.l.b16 %v2544
    %v3271 = vunpack.c.h.b16 %v2544
    %v3272 = vunpack.c.l.b16 %v2545
    %v3273 = vunpack.c.h.b16 %v2545
    %v3274 = vunpack.c.l.b16 %v2546
    %v3275 = vunpack.c.h.b16 %v2546
    %v3276 = vunpack.c.l.b16 %v2547
    %v3277 = vunpack.c.h.b16 %v2547
    %v3278 = vunpack.c.l.b16 %v2548
    %v3279 = vunpack.c.h.b16 %v2548
    %v3280 = vunpack.c.l.b16 %v2549
    %v3281 = vunpack.c.h.b16 %v2549
    %v3282 = vunpack.c.l.b16 %v2550
    %v3283 = vunpack.c.h.b16 %v2550
    %v3284 = vunpack.c.l.b16 %v2551
    %v3285 = vunpack.c.h.b16 %v2551
    %v3286 = vunpack.c.l.b16 %v2552
    %v3287 = vunpack.c.h.b16 %v2552
    %v3288 = vunpack.c.l.b16 %v2553
    %v3289 = vunpack.c.h.b16 %v2553
    %v3290 = vunpack.c.l.b16 %v2554
    %v3291 = vunpack.c.h.b16 %v2554
    %v3292 = vunpack.c.l.b16 %v2555
    %v3293 = vunpack.c.h.b16 %v2555
    %v3294 = vunpack.c.l.b16 %v2556
    %v3295 = vunpack.c.h.b16 %v2556
    %v3296 = vunpack.c.l.b16 %v2557
    %v3297 = vunpack.c.h.b16 %v2557
    %v3298 = vunpack.c.l.b16 %v2558
    %v3299 = vunpack.c.h.b16 %v2558
    %v3300 = vunpack.c.l.b16 %v2559
    %v3301 = vunpack.c.h.b16 %v2559
    %v3302 = vunpack.c.l.b16 %v2560
    %v3303 = vunpack.c.h.b16 %v2560
    %v3304 = vunpack.c.l.b16 %v2561
    %v3305 = vunpack.c.h.b16 %v2561
    %v3306 = vunpack.c.l.b16 %v2562
    %v3307 = vunpack.c.h.b16 %v2562
    %v3308 = vunpack.c.l.b16 %v2563
    %v3309 = vunpack.c.h.b16 %v2563
    %v3310 = vunpack.c.l.b16 %v2564
    %v3311 = vunpack.c.h.b16 %v2564
    %v3312 = vunpack.c.l.b16 %v2565
    %v3313 = vunpack.c.h.b16 %v2565
    %v3314 = vunpack.c.l.b16 %v2566
    %v3315 = vunpack.c.h.b16 %v2566
    %v3316 = vunpack.c.l.b16 %v2567
    %v3317 = vunpack.c.h.b16 %v2567
    %v3318 = vunpack.c.l.b16 %v2568
    %v3319 = vunpack.c.h.b16 %v2568
    %v3320 = vunpack.c.l.b16 %v2569
    %v3321 = vunpack.c.h.b16 %v2569
    %v3322 = vunpack.c.l.b16 %v2570
    %v3323 = vunpack.c.h.b16 %v2570
    %v3324 = vunpack.c.l.b16 %v2571
    %v3325 = vunpack.c.h.b16 %v2571
    %v3326 = vunpack.c.l.b16 %v2572
    %v3327 = vunpack.c.h.b16 %v2572
    %v3328 = vunpack.c.l.b16 %v2573
    %v3329 = vunpack.c.h.b16 %v2573
    %v3330 = vunpack.c.l.b16 %v2574
    %v3331 = vunpack.c.h.b16 %v2574
    %v3332 = vunpack.c.l.b16 %v2575
    %v3333 = vunpack.c.h.b16 %v2575
    %v3334 = vunpack.c.l.b16 %v2576
    %v3335 = vunpack.c.h.b16 %v2576
    %v3336 = vunpack.c.l.b16 %v2577
    %v3337 = vunpack.c.h.b16 %v2577
    %v3338 = vunpack.c.l.b16 %v2578
    %v3339 = vunpack.c.h.b16 %v2578
    %v3340 = vunpack.c.l.b16 %v2579
    %v3341 = vunpack.c.h.b16 %v2579
    %v3342 = vunpack.c.l.b16 %v2580
    %v3343 = vunpack.c.h.b16 %v2580
    %v3344 = vunpack.c.l.b16 %v2581
    %v3345 = vunpack.c.h.b16 %v2581
    %v3346 = vunpack.c.l.b16 %v2582
    %v3347 = vunpack.c.h.b16 %v2582
    %v3348 = vunpack.c.l.b16 %v2583
    %v3349 = vunpack.c.h.b16 %v2583
    %v3350 = vunpack.c.l.b16 %v2584
    %v3351 = vunpack.c.h.b16 %v2584
    %v3352 = vunpack.c.l.b16 %v2585
    %v3353 = vunpack.c.h.b16 %v2585
    %v3354 = vunpack.c.l.b16 %v2586
    %v3355 = vunpack.c.h.b16 %v2586
    %v3356 = vunpack.c.l.b16 %v2587
    %v3357 = vunpack.c.h.b16 %v2587
    %v3358 = vunpack.c.l.b16 %v2588
    %v3359 = vunpack.c.h.b16 %v2588
    %v3360 = vunpack.c.l.b16 %v2589
    %v3361 = vunpack.c.h.b16 %v2589
    %v3362 = vunpack.c.l.b16 %v2590
    %v3363 = vunpack.c.h.b16 %v2590
    %v3364 = vunpack.c.l.b16 %v2591
    %v3365 = vunpack.c.h.b16 %v2591
    %v3366 = vunpack.c.l.b16 %v2592
    %v3367 = vunpack.c.h.b16 %v2592
    %v3368 = vunpack.c.l.b16 %v2593
    %v3369 = vunpack.c.h.b16 %v2593
    %v3370 = vunpack.c.l.b16 %v2594
    %v3371 = vunpack.c.h.b16 %v2594
    %v3372 = vunpack.c.l.b16 %v2595
    %v3373 = vunpack.c.h.b16 %v2595
    %v3374 = vunpack.c.l.b16 %v2596
    %v3375 = vunpack.c.h.b16 %v2596
    %v3376 = vunpack.c.l.b16 %v2597
    %v3377 = vunpack.c.h.b16 %v2597
    %v3378 = vunpack.c.l.b16 %v2598
    %v3379 = vunpack.c.h.b16 %v2598
    %v3380 = vunpack.c.l.b16 %v2599
    %v3381 = vunpack.c.h.b16 %v2599
    %v3382 = vunpack.c.l.b16 %v2600
    %v3383 = vunpack.c.h.b16 %v2600
    %v3384 = vunpack.c.l.b16 %v2601
    %v3385 = vunpack.c.h.b16 %v2601
    %v3386 = vunpack.c.l.b16 %v2602
    %v3387 = vunpack.c.h.b16 %v2602
    %v3388 = vunpack.c.l.b16 %v2603
    %v3389 = vunpack.c.h.b16 %v2603
    %v3390 = vunpack.c.l.b16 %v2604
    %v3391 = vunpack.c.h.b16 %v2604
    %v3392 = vunpack.c.l.b16 %v2605
    %v3393 = vunpack.c.h.b16 %v2605
    %v3394 = vunpack.c.l.b16 %v2606
    %v3395 = vunpack.c.h.b16 %v2606
    %v3396 = vunpack.c.l.b16 %v2607
    %v3397 = vunpack.c.h.b16 %v2607
    %v3398 = vpack.c.b16 %v2890, %v2886
    %v3399 = vpack.c.b16 %v2891, %v2887
    %v3400 = vpack.c.b16 %v2892, %v2888
    %v3401 = vpack.c.b16 %v2893, %v2889
    %v3402 = vpack.c.b16 %v2898, %v2894
    %v3403 = vpack.c.b16 %v2899, %v2895
    %v3404 = vpack.c.b16 %v2900, %v2896
    %v3405 = vpack.c.b16 %v2901, %v2897
    %v3406 = vpack.c.b16 %v2906, %v2902
    %v3407 = vpack.c.b16 %v2907, %v2903
    %v3408 = vpack.c.b16 %v2908, %v2904
    %v3409 = vpack.c.b16 %v2909, %v2905
    %v3410 = vpack.c.b16 %v2914, %v2910
    %v3411 = vpack.c.b16 %v2915, %v2911
    %v3412 = vpack.c.b16 %v2916, %v2912
    %v3413 = vpack.c.b16 %v2917, %v2913
    %v3414 = vpack.c.b16 %v2922, %v2918
    %v3415 = vpack.c.b16 %v2923, %v2919
    %v3416 = vpack.c.b16 %v2924, %v2920
    %v3417 = vpack.c.b16 %v2925, %v2921
    %v3418 = vpack.c.b16 %v2930, %v2926
    %v3419 = vpack.c.b16 %v2931, %v2927
    %v3420 = vpack.c.b16 %v2932, %v2928
    %v3421 = vpack.c.b16 %v2933, %v2929
    %v3422 = vpack.c.b16 %v2938, %v2934
    %v3423 = vpack.c.b16 %v2939, %v2935
    %v3424 = vpack.c.b16 %v2940, %v2936
    %v3425 = vpack.c.b16 %v2941, %v2937
    %v3426 = vpack.c.b16 %v2946, %v2942
    %v3427 = vpack.c.b16 %v2947, %v2943
    %v3428 = vpack.c.b16 %v2948, %v2944
    %v3429 = vpack.c.b16 %v2949, %v2945
    %v3430 = vpack.c.b16 %v2954, %v2950
    %v3431 = vpack.c.b16 %v2955, %v2951
    %v3432 = vpack.c.b16 %v2956, %v2952
    %v3433 = vpack.c.b16 %v2957, %v2953
    %v3434 = vpack.c.b16 %v2962, %v2958
    %v3435 = vpack.c.b16 %v2963, %v2959
    %v3436 = vpack.c.b16 %v2964, %v2960
    %v3437 = vpack.c.b16 %v2965, %v2961
    %v3438 = vpack.c.b16 %v2970, %v2966
    %v3439 = vpack.c.b16 %v2971, %v2967
    %v3440 = vpack.c.b16 %v2972, %v2968
    %v3441 = vpack.c.b16 %v2973, %v2969
    %v3442 = vpack.c.b16 %v2978, %v2974
    %v3443 = vpack.c.b16 %v2979, %v2975
    %v3444 = vpack.c.b16 %v2980, %v2976
    %v3445 = vpack.c.b16 %v2981, %v2977
    %v3446 = vpack.c.b16 %v2986, %v2982
    %v3447 = vpack.c.b16 %v2987, %v2983
    %v3448 = vpack.c.b16 %v2988, %v2984
    %v3449 = vpack.c.b16 %v2989, %v2985
    %v3450 = vpack.c.b16 %v2994, %v2990
    %v3451 = vpack.c.b16 %v2995, %v2991
    %v3452 = vpack.c.b16 %v2996, %v2992
    %v3453 = vpack.c.b16 %v2997, %v2993
    %v3454 = vpack.c.b16 %v3002, %v2998
    %v3455 = vpack.c.b16 %v3003, %v2999
    %v3456 = vpack.c.b16 %v3004, %v3000
    %v3457 = vpack.c.b16 %v3005, %v3001
    %v3458 = vpack.c.b16 %v3010, %v3006
    %v3459 = vpack.c.b16 %v3011, %v3007
    %v3460 = vpack.c.b16 %v3012, %v3008
    %v3461 = vpack.c.b16 %v3013, %v3009
    %v3462 = vpack.c.b16 %v3018, %v3014
    %v3463 = vpack.c.b16 %v3019, %v3015
    %v3464 = vpack.c.b16 %v3020, %v3016
    %v3465 = vpack.c.b16 %v3021, %v3017
    %v3466 = vpack.c.b16 %v3026, %v3022
    %v3467 = vpack.c.b16 %v3027, %v3023
    %v3468 = vpack.c.b16 %v3028, %v3024
    %v3469 = vpack.c.b16 %v3029, %v3025
    %v3470 = vpack.c.b16 %v3034, %v3030
    %v3471 = vpack.c.b16 %v3035, %v3031
    %v3472 = vpack.c.b16 %v3036, %v3032
    %v3473 = vpack.c.b16 %v3037, %v3033
    %v3474 = vpack.c.b16 %v3042, %v3038
    %v3475 = vpack.c.b16 %v3043, %v3039
    %v3476 = vpack.c.b16 %v3044, %v3040
    %v3477 = vpack.c.b16 %v3045, %v3041
    %v3478 = vpack.c.b16 %v3050, %v3046
    %v3479 = vpack.c.b16 %v3051, %v3047
    %v3480 = vpack.c.b16 %v3052, %v3048
    %v3481 = vpack.c.b16 %v3053, %v3049
    %v3482 = vpack.c.b16 %v3058, %v3054
    %v3483 = vpack.c.b16 %v3059, %v3055
    %v3484 = vpack.c.b16 %v3060, %v3056
    %v3485 = vpack.c.b16 %v3061, %v3057
    %v3486 = vpack.c.b16 %v3066, %v3062
    %v3487 = vpack.c.b16 %v3067, %v3063
    %v3488 = vpack.c.b16 %v3068, %v3064
    %v3489 = vpack.c.b16 %v3069, %v3065
    %v3490 = vpack.c.b16 %v3074, %v3070
    %v3491 = vpack.c.b16 %v3075, %v3071
    %v3492 = vpack.c.b16 %v3076, %v3072
    %v3493 = vpack.c.b16 %v3077, %v3073
    %v3494 = vpack.c.b16 %v3082, %v3078
    %v3495 = vpack.c.b16 %v3083, %v3079
    %v3496 = vpack.c.b16 %v3084, %v3080
    %v3497 = vpack.c.b16 %v3085, %v3081
    %v3498 = vpack.c.b16 %v3090, %v3086
    %v3499 = vpack.c.b16 %v3091, %v3087
    %v3500 = vpack.c.b16 %v3092, %v3088
    %v3501 = vpack.c.b16 %v3093, %v3089
    %v3502 = vpack.c.b16 %v3098, %v3094
    %v3503 = vpack.c.b16 %v3099, %v3095
    %v3504 = vpack.c.b16 %v3100, %v3096
    %v3505 = vpack.c.b16 %v3101, %v3097
    %v3506 = vpack.c.b16 %v3106, %v3102
    %v3507 = vpack.c.b16 %v3107, %v3103
    %v3508 = vpack.c.b16 %v3108, %v3104
    %v3509 = vpack.c.b16 %v3109, %v3105
    %v3510 = vpack.c.b16 %v3114, %v3110
    %v3511 = vpack.c.b16 %v3115, %v3111
    %v3512 = vpack.c.b16 %v3116, %v3112
    %v3513 = vpack.c.b16 %v3117, %v3113
    %v3514 = vpack.c.b16 %v3122, %v3118
    %v3515 = vpack.c.b16 %v3123, %v3119
    %v3516 = vpack.c.b16 %v3124, %v3120
    %v3517 = vpack.c.b16 %v3125, %v3121
    %v3518 = vpack.c.b16 %v3130, %v3126
    %v3519 = vpack.c.b16 %v3131, %v3127
    %v3520 = vpack.c.b16 %v3132, %v3128
    %v3521 = vpack.c.b16 %v3133, %v3129
    %v3522 = vpack.c.b16 %v3138, %v3134
    %v3523 = vpack.c.b16 %v3139, %v3135
    %v3524 = vpack.c.b16 %v3140, %v3136
    %v3525 = vpack.c.b16 %v3141, %v3137
    %v3526 = vpack.c.b16 %v3146, %v3142
    %v3527 = vpack.c.b16 %v3147, %v3143
    %v3528 = vpack.c.b16 %v3148, %v3144
    %v3529 = vpack.c.b16 %v3149, %v3145
    %v3530 = vpack.c.b16 %v3154, %v3150
    %v3531 = vpack.c.b16 %v3155, %v3151
    %v3532 = vpack.c.b16 %v3156, %v3152
    %v3533 = vpack.c.b16 %v3157, %v3153
    %v3534 = vpack.c.b16 %v3162, %v3158
    %v3535 = vpack.c.b16 %v3163, %v3159
    %v3536 = vpack.c.b16 %v3164, %v3160
    %v3537 = vpack.c.b16 %v3165, %v3161
    %v3538 = vpack.c.b16 %v3170, %v3166
    %v3539 = vpack.c.b16 %v3171, %v3167
    %v3540 = vpack.c.b16 %v3172, %v3168
    %v3541 = vpack.c.b16 %v3173, %v3169
    %v3542 = vpack.c.b16 %v3178, %v3174
    %v3543 = vpack.c.b16 %v3179, %v3175
    %v3544 = vpack.c.b16 %v3180, %v3176
    %v3545 = vpack.c.b16 %v3181, %v3177
    %v3546 = vpack.c.b16 %v3186, %v3182
    %v3547 = vpack.c.b16 %v3187, %v3183
    %v3548 = vpack.c.b16 %v3188, %v3184
    %v3549 = vpack.c.b16 %v3189, %v3185
    %v3550 = vpack.c.b16 %v3194, %v3190
    %v3551 = vpack.c.b16 %v3195, %v3191
    %v3552 = vpack.c.b16 %v3196, %v3192
    %v3553 = vpack.c.b16 %v3197, %v3193
    %v3554 = vpack.c.b16 %v3202, %v3198
    %v3555 = vpack.c.b16 %v3203, %v3199
    %v3556 = vpack.c.b16 %v3204, %v3200
    %v3557 = vpack.c.b16 %v3205, %v3201
    %v3558 = vpack.c.b16 %v3210, %v3206
    %v3559 = vpack.c.b16 %v3211, %v3207
    %v3560 = vpack.c.b16 %v3212, %v3208
    %v3561 = vpack.c.b16 %v3213, %v3209
    %v3562 = vpack.c.b16 %v3218, %v3214
    %v3563 = vpack.c.b16 %v3219, %v3215
    %v3564 = vpack.c.b16 %v3220, %v3216
    %v3565 = vpack.c.b16 %v3221, %v3217
    %v3566 = vpack.c.b16 %v3226, %v3222
    %v3567 = vpack.c.b16 %v3227, %v3223
    %v3568 = vpack.c.b16 %v3228, %v3224
    %v3569 = vpack.c.b16 %v3229, %v3225
    %v3570 = vpack.c.b16 %v3234, %v3230
    %v3571 = vpack.c.b16 %v3235, %v3231
    %v3572 = vpack.c.b16 %v3236, %v3232
    %v3573 = vpack.c.b16 %v3237, %v3233
    %v3574 = vpack.c.b16 %v3242, %v3238
    %v3575 = vpack.c.b16 %v3243, %v3239
    %v3576 = vpack.c.b16 %v3244, %v3240
    %v3577 = vpack.c.b16 %v3245, %v3241
    %v3578 = vpack.c.b16 %v3250, %v3246
    %v3579 = vpack.c.b16 %v3251, %v3247
    %v3580 = vpack.c.b16 %v3252, %v3248
    %v3581 = vpack.c.b16 %v3253, %v3249
    %v3582 = vpack.c.b16 %v3258, %v3254
    %v3583 = vpack.c.b16 %v3259, %v3255
    %v3584 = vpack.c.b16 %v3260, %v3256
    %v3585 = vpack.c.b16 %v3261, %v3257
    %v3586 = vpack.c.b16 %v3266, %v3262
    %v3587 = vpack.c.b16 %v3267, %v3263
    %v3588 = vpack.c.b16 %v3268, %v3264
    %v3589 = vpack.c.b16 %v3269, %v3265
    %v3590 = vpack.c.b16 %v3274, %v3270
    %v3591 = vpack.c.b16 %v3275, %v3271
    %v3592 = vpack.c.b16 %v3276, %v3272
    %v3593 = vpack.c.b16 %v3277, %v3273
    %v3594 = vpack.c.b16 %v3282, %v3278
    %v3595 = vpack.c.b16 %v3283, %v3279
    %v3596 = vpack.c.b16 %v3284, %v3280
    %v3597 = vpack.c.b16 %v3285, %v3281
    %v3598 = vpack.c.b16 %v3290, %v3286
    %v3599 = vpack.c.b16 %v3291, %v3287
    %v3600 = vpack.c.b16 %v3292, %v3288
    %v3601 = vpack.c.b16 %v3293, %v3289
    %v3602 = vpack.c.b16 %v3298, %v3294
    %v3603 = vpack.c.b16 %v3299, %v3295
    %v3604 = vpack.c.b16 %v3300, %v3296
    %v3605 = vpack.c.b16 %v3301, %v3297
    %v3606 = vpack.c.b16 %v3306, %v3302
    %v3607 = vpack.c.b16 %v3307, %v3303
    %v3608 = vpack.c.b16 %v3308, %v3304
    %v3609 = vpack.c.b16 %v3309, %v3305
    %v3610 = vpack.c.b16 %v3314, %v3310
    %v3611 = vpack.c.b16 %v3315, %v3311
    %v3612 = vpack.c.b16 %v3316, %v3312
    %v3613 = vpack.c.b16 %v3317, %v3313
    %v3614 = vpack.c.b16 %v3322, %v3318
    %v3615 = vpack.c.b16 %v3323, %v3319
    %v3616 = vpack.c.b16 %v3324, %v3320
    %v3617 = vpack.c.b16 %v3325, %v3321
    %v3618 = vpack.c.b16 %v3330, %v3326
    %v3619 = vpack.c.b16 %v3331, %v3327
    %v3620 = vpack.c.b16 %v3332, %v3328
    %v3621 = vpack.c.b16 %v3333, %v3329
    %v3622 = vpack.c.b16 %v3338, %v3334
    %v3623 = vpack.c.b16 %v3339, %v3335
    %v3624 = vpack.c.b16 %v3340, %v3336
    %v3625 = vpack.c.b16 %v3341, %v3337
    %v3626 = vpack.c.b16 %v3346, %v3342
    %v3627 = vpack.c.b16 %v3347, %v3343
    %v3628 = vpack.c.b16 %v3348, %v3344
    %v3629 = vpack.c.b16 %v3349, %v3345
    %v3630 = vpack.c.b16 %v3354, %v3350
    %v3631 = vpack.c.b16 %v3355, %v3351
    %v3632 = vpack.c.b16 %v3356, %v3352
    %v3633 = vpack.c.b16 %v3357, %v3353
    %v3634 = vpack.c.b16 %v3362, %v3358
    %v3635 = vpack.c.b16 %v3363, %v3359
    %v3636 = vpack.c.b16 %v3364, %v3360
    %v3637 = vpack.c.b16 %v3365, %v3361
    %v3638 = vpack.c.b16 %v3370, %v3366
    %v3639 = vpack.c.b16 %v3371, %v3367
    %v3640 = vpack.c.b16 %v3372, %v3368
    %v3641 = vpack.c.b16 %v3373, %v3369
    %v3642 = vpack.c.b16 %v3378, %v3374
    %v3643 = vpack.c.b16 %v3379, %v3375
    %v3644 = vpack.c.b16 %v3380, %v3376
    %v3645 = vpack.c.b16 %v3381, %v3377
    %v3646 = vpack.c.b16 %v3386, %v3382
    %v3647 = vpack.c.b16 %v3387, %v3383
    %v3648 = vpack.c.b16 %v3388, %v3384
    %v3649 = vpack.c.b16 %v3389, %v3385
    %v3650 = vpack.c.b16 %v3394, %v3390
    %v3651 = vpack.c.b16 %v3395, %v3391
    %v3652 = vpack.c.b16 %v3396, %v3392
    %v3653 = vpack.c.b16 %v3397, %v3393
    %3910 = vmatprep.subr.bf16.mxu0 %v3399
    %3911 = vmatpush1.bf16.msra.mxu0 %v3398
    %3912 = vmatprep.subr.bf16.mxu0 %v3403
    %3913 = vmatpush1.bf16.msra.mxu0 %v3402
    %3914 = vmatprep.subr.bf16.mxu0 %v3407
    %3915 = vmatpush1.bf16.msra.mxu0 %v3406
    %3916 = vmatprep.subr.bf16.mxu0 %v3411
    %3917 = vmatpush1.bf16.msra.mxu0 %v3410
    %3918 = vmatprep.subr.bf16.mxu0 %v3415
    %3919 = vmatpush1.bf16.msra.mxu0 %v3414
    %3920 = vmatprep.subr.bf16.mxu0 %v3419
    %3921 = vmatpush1.bf16.msra.mxu0 %v3418
    %3922 = vmatprep.subr.bf16.mxu0 %v3423
    %3923 = vmatpush1.bf16.msra.mxu0 %v3422
    %3924 = vmatprep.subr.bf16.mxu0 %v3427
    %3925 = vmatpush1.bf16.msra.mxu0 %v3426
    %3926 = vmatprep.subr.bf16.mxu0 %v3431
    %3927 = vmatpush1.bf16.msra.mxu0 %v3430
    %3928 = vmatprep.subr.bf16.mxu0 %v3435
    %3929 = vmatpush1.bf16.msra.mxu0 %v3434
    %3930 = vmatprep.subr.bf16.mxu0 %v3439
    %3931 = vmatpush1.bf16.msra.mxu0 %v3438
    %3932 = vmatprep.subr.bf16.mxu0 %v3443
    %3933 = vmatpush1.bf16.msra.mxu0 %v3442
    %3934 = vmatprep.subr.bf16.mxu0 %v3447
    %3935 = vmatpush1.bf16.msra.mxu0 %v3446
    %3936 = vmatprep.subr.bf16.mxu0 %v3451
    %3937 = vmatpush1.bf16.msra.mxu0 %v3450
    %3938 = vmatprep.subr.bf16.mxu0 %v3455
    %3939 = vmatpush1.bf16.msra.mxu0 %v3454
    %3940 = vmatprep.subr.bf16.mxu0 %v3459
    %3941 = vmatpush1.bf16.msra.mxu0 %v3458
    %3942 = vmatprep.mubr.bf16.mxu0 %v2289
    %3943 = vmatmul.mubr.bf16.gmra.mrb[0].mxu0 %v2288
    %v3944 = vpop.f32.mrb[0].mxu0
    %v3945 = vadd.f32 %v2613, %v3944
    %v3946 = vpop.f32.mrb[0].mxu0
    %v3947 = vadd.f32 %v2617, %v3946
    %v3948 = vpop.f32.mrb[0].mxu0
    %v3949 = vadd.f32 %v2613, %v3948
    %v3950 = vpop.f32.mrb[0].mxu0
    %v3951 = vadd.f32 %v2617, %v3950
    %3952 = vmatprep.mubr.bf16.mxu0 %v2297
    %3953 = vmatmul.mubr.bf16.gmra.mrb[0].mxu0 %v2296
    %v3954 = vpop.f32.mrb[0].mxu0
    %v3955 = vadd.f32 %v2613, %v3954
    %v3956 = vpop.f32.mrb[0].mxu0
    %v3957 = vadd.f32 %v2617, %v3956
    %v3958 = vpop.f32.mrb[0].mxu0
    %v3959 = vadd.f32 %v2613, %v3958
    %v3960 = vpop.f32.mrb[0].mxu0
    %v3961 = vadd.f32 %v2617, %v3960
    %3962 = vmatprep.mubr.bf16.mxu0 %v2305
    %3963 = vmatmul.mubr.bf16.gmra.mrb[0].mxu0 %v2304
    %v3964 = vpop.f32.mrb[0].mxu0
    %v3965 = vadd.f32 %v2613, %v3964
    %v3966 = vpop.f32.mrb[0].mxu0
    %v3967 = vadd.f32 %v2617, %v3966
    %v3968 = vpop.f32.mrb[0].mxu0
    %v3969 = vadd.f32 %v2613, %v3968
    %v3970 = vpop.f32.mrb[0].mxu0
    %v3971 = vadd.f32 %v2617, %v3970
    %3972 = vmatprep.mubr.bf16.mxu0 %v2313
    %3973 = vmatmul.mubr.bf16.gmra.mrb[0].mxu0 %v2312
    %v3974 = vpop.f32.mrb[0].mxu0
    %v3975 = vadd.f32 %v2613, %v3974
    %v3976 = vpop.f32.mrb[0].mxu0
    %v3977 = vadd.f32 %v2617, %v3976
    %v3978 = vpop.f32.mrb[0].mxu0
    %v3979 = vadd.f32 %v2613, %v3978
    %v3980 = vpop.f32.mrb[0].mxu0
    %v3981 = vadd.f32 %v2617, %v3980
    %3982 = vmatprep.mubr.bf16.mxu0 %v2321
    %3983 = vmatmul.mubr.bf16.gmra.mrb[0].mxu0 %v2320
    %v3984 = vpop.f32.mrb[0].mxu0
    %v3985 = vadd.f32 %v2613, %v3984
    %v3986 = vpop.f32.mrb[0].mxu0
    %v3987 = vadd.f32 %v2617, %v3986
    %v3988 = vpop.f32.mrb[0].mxu0
    %v3989 = vadd.f32 %v2613, %v3988
    %v3990 = vpop.f32.mrb[0].mxu0
    %v3991 = vadd.f32 %v2617, %v3990
    %3992 = vmatprep.mubr.bf16.mxu0 %v2329
    %3993 = vmatmul.mubr.bf16.gmra.mrb[0].mxu0 %v2328
    %v3994 = vpop.f32.mrb[0].mxu0
    %v3995 = vadd.f32 %v2613, %v3994
    %v3996 = vpop.f32.mrb[0].mxu0
    %v3997 = vadd.f32 %v2617, %v3996
    %v3998 = vpop.f32.mrb[0].mxu0
    %v3999 = vadd.f32 %v2613, %v3998
    %v4000 = vpop.f32.mrb[0].mxu0
    %v4001 = vadd.f32 %v2617, %v4000
    %4002 = vmatprep.mubr.bf16.mxu0 %v2337
    %4003 = vmatmul.mubr.bf16.gmra.mrb[0].mxu0 %v2336
    %v4004 = vpop.f32.mrb[0].mxu0
    %v4005 = vadd.f32 %v2613, %v4004
    %v4006 = vpop.f32.mrb[0].mxu0
    %v4007 = vadd.f32 %v2617, %v4006
    %v4008 = vpop.f32.mrb[0].mxu0
    %v4009 = vadd.f32 %v2613, %v4008
    %v4010 = vpop.f32.mrb[0].mxu0
    %v4011 = vadd.f32 %v2617, %v4010
    %4012 = vmatprep.mubr.bf16.mxu0 %v2345
    %4013 = vmatmul.mubr.bf16.gmra.mrb[0].mxu0 %v2344
    %v4014 = vpop.f32.mrb[0].mxu0
    %v4015 = vadd.f32 %v2613, %v4014
    %v4016 = vpop.f32.mrb[0].mxu0
    %v4017 = vadd.f32 %v2617, %v4016
    %v4018 = vpop.f32.mrb[0].mxu0
    %v4019 = vadd.f32 %v2613, %v4018
    %v4020 = vpop.f32.mrb[0].mxu0
    %v4021 = vadd.f32 %v2617, %v4020
    %4022 = vdwg.mxu0
    %4023 = vmatprep.subr.bf16.mxu0 %v3463
    %4024 = vmatpush1.bf16.msra.mxu0 %v3462
    %4025 = vmatprep.subr.bf16.mxu0 %v3467
    %4026 = vmatpush1.bf16.msra.mxu0 %v3466
    %4027 = vmatprep.subr.bf16.mxu0 %v3471
    %4028 = vmatpush1.bf16.msra.mxu0 %v3470
    %4029 = vmatprep.subr.bf16.mxu0 %v3475
    %4030 = vmatpush1.bf16.msra.mxu0 %v3474
    %4031 = vmatprep.subr.bf16.mxu0 %v3479
    %4032 = vmatpush1.bf16.msra.mxu0 %v3478
    %4033 = vmatprep.subr.bf16.mxu0 %v3483
    %4034 = vmatpush1.bf16.msra.mxu0 %v3482
    %4035 = vmatprep.subr.bf16.mxu0 %v3487
    %4036 = vmatpush1.bf16.msra.mxu0 %v3486
    %4037 = vmatprep.subr.bf16.mxu0 %v3491
    %4038 = vmatpush1.bf16.msra.mxu0 %v3490
    %4039 = vmatprep.subr.bf16.mxu0 %v3495
    %4040 = vmatpush1.bf16.msra.mxu0 %v3494
    %4041 = vmatprep.subr.bf16.mxu0 %v3499
    %4042 = vmatpush1.bf16.msra.mxu0 %v3498
    %4043 = vmatprep.subr.bf16.mxu0 %v3503
    %4044 = vmatpush1.bf16.msra.mxu0 %v3502
    %4045 = vmatprep.subr.bf16.mxu0 %v3507
    %4046 = vmatpush1.bf16.msra.mxu0 %v3506
    %4047 = vmatprep.subr.bf16.mxu0 %v3511
    %4048 = vmatpush1.bf16.msra.mxu0 %v3510
    %4049 = vmatprep.subr.bf16.mxu0 %v3515
    %4050 = vmatpush1.bf16.msra.mxu0 %v3514
    %4051 = vmatprep.subr.bf16.mxu0 %v3519
    %4052 = vmatpush1.bf16.msra.mxu0 %v3518
    %4053 = vmatprep.subr.bf16.mxu0 %v3523
    %4054 = vmatpush1.bf16.msra.mxu0 %v3522
    %4055 = vmatprep.mubr.bf16.mxu0 %v2291
    %4056 = vmatmul.mubr.bf16.gmra.mrb[0].mxu0 %v2290
    %v4057 = vpop.f32.mrb[0].mxu0
    %v4058 = vadd.f32 %v3945, %v4057
    %v4059 = vpop.f32.mrb[0].mxu0
    %v4060 = vadd.f32 %v3947, %v4059
    %v4061 = vpop.f32.mrb[0].mxu0
    %v4062 = vadd.f32 %v3949, %v4061
    %v4063 = vpop.f32.mrb[0].mxu0
    %v4064 = vadd.f32 %v3951, %v4063
    %4065 = vmatprep.mubr.bf16.mxu0 %v2299
    %4066 = vmatmul.mubr.bf16.gmra.mrb[0].mxu0 %v2298
    %v4067 = vpop.f32.mrb[0].mxu0
    %v4068 = vadd.f32 %v3955, %v4067
    %v4069 = vpop.f32.mrb[0].mxu0
    %v4070 = vadd.f32 %v3957, %v4069
    %v4071 = vpop.f32.mrb[0].mxu0
    %v4072 = vadd.f32 %v3959, %v4071
    %v4073 = vpop.f32.mrb[0].mxu0
    %v4074 = vadd.f32 %v3961, %v4073
    %4075 = vmatprep.mubr.bf16.mxu0 %v2307
    %4076 = vmatmul.mubr.bf16.gmra.mrb[0].mxu0 %v2306
    %v4077 = vpop.f32.mrb[0].mxu0
    %v4078 = vadd.f32 %v3965, %v4077
    %v4079 = vpop.f32.mrb[0].mxu0
    %v4080 = vadd.f32 %v3967, %v4079
    %v4081 = vpop.f32.mrb[0].mxu0
    %v4082 = vadd.f32 %v3969, %v4081
    %v4083 = vpop.f32.mrb[0].mxu0
    %v4084 = vadd.f32 %v3971, %v4083
    %4085 = vmatprep.mubr.bf16.mxu0 %v2315
    %4086 = vmatmul.mubr.bf16.gmra.mrb[0].mxu0 %v2314
    %v4087 = vpop.f32.mrb[0].mxu0
    %v4088 = vadd.f32 %v3975, %v4087
    %v4089 = vpop.f32.mrb[0].mxu0
    %v4090 = vadd.f32 %v3977, %v4089
    %v4091 = vpop.f32.mrb[0].mxu0
    %v4092 = vadd.f32 %v3979, %v4091
    %v4093 = vpop.f32.mrb[0].mxu0
    %v4094 = vadd.f32 %v3981, %v4093
    %4095 = vmatprep.mubr.bf16.mxu0 %v2323
    %4096 = vmatmul.mubr.bf16.gmra.mrb[0].mxu0 %v2322
    %v4097 = vpop.f32.mrb[0].mxu0
    %v4098 = vadd.f32 %v3985, %v4097
    %v4099 = vpop.f32.mrb[0].mxu0
    %v4100 = vadd.f32 %v3987, %v4099
    %v4101 = vpop.f32.mrb[0].mxu0
    %v4102 = vadd.f32 %v3989, %v4101
    %v4103 = vpop.f32.mrb[0].mxu0
    %v4104 = vadd.f32 %v3991, %v4103
    %4105 = vmatprep.mubr.bf16.mxu0 %v2331
    %4106 = vmatmul.mubr.bf16.gmra.mrb[0].mxu0 %v2330
    %v4107 = vpop.f32.mrb[0].mxu0
    %v4108 = vadd.f32 %v3995, %v4107
    %v4109 = vpop.f32.mrb[0].mxu0
    %v4110 = vadd.f32 %v3997, %v4109
    %v4111 = vpop.f32.mrb[0].mxu0
    %v4112 = vadd.f32 %v3999, %v4111
    %v4113 = vpop.f32.mrb[0].mxu0
    %v4114 = vadd.f32 %v4001, %v4113
    %4115 = vmatprep.mubr.bf16.mxu0 %v2339
    %4116 = vmatmul.mubr.bf16.gmra.mrb[0].mxu0 %v2338
    %v4117 = vpop.f32.mrb[0].mxu0
    %v4118 = vadd.f32 %v4005, %v4117
    %v4119 = vpop.f32.mrb[0].mxu0
    %v4120 = vadd.f32 %v4007, %v4119
    %v4121 = vpop.f32.mrb[0].mxu0
    %v4122 = vadd.f32 %v4009, %v4121
    %v4123 = vpop.f32.mrb[0].mxu0
    %v4124 = vadd.f32 %v4011, %v4123
    %4125 = vmatprep.mubr.bf16.mxu0 %v2347
    %4126 = vmatmul.mubr.bf16.gmra.mrb[0].mxu0 %v2346
    %v4127 = vpop.f32.mrb[0].mxu0
    %v4128 = vadd.f32 %v4015, %v4127
    %v4129 = vpop.f32.mrb[0].mxu0
    %v4130 = vadd.f32 %v4017, %v4129
    %v4131 = vpop.f32.mrb[0].mxu0
    %v4132 = vadd.f32 %v4019, %v4131
    %v4133 = vpop.f32.mrb[0].mxu0
    %v4134 = vadd.f32 %v4021, %v4133
    %4135 = vdwg.mxu0
    %4136 = vmatprep.subr.bf16.mxu0 %v3527
    %4137 = vmatpush1.bf16.msra.mxu0 %v3526
    %4138 = vmatprep.subr.bf16.mxu0 %v3531
    %4139 = vmatpush1.bf16.msra.mxu0 %v3530
    %4140 = vmatprep.subr.bf16.mxu0 %v3535
    %4141 = vmatpush1.bf16.msra.mxu0 %v3534
    %4142 = vmatprep.subr.bf16.mxu0 %v3539
    %4143 = vmatpush1.bf16.msra.mxu0 %v3538
    %4144 = vmatprep.subr.bf16.mxu0 %v3543
    %4145 = vmatpush1.bf16.msra.mxu0 %v3542
    %4146 = vmatprep.subr.bf16.mxu0 %v3547
    %4147 = vmatpush1.bf16.msra.mxu0 %v3546
    %4148 = vmatprep.subr.bf16.mxu0 %v3551
    %4149 = vmatpush1.bf16.msra.mxu0 %v3550
    %4150 = vmatprep.subr.bf16.mxu0 %v3555
    %4151 = vmatpush1.bf16.msra.mxu0 %v3554
    %4152 = vmatprep.subr.bf16.mxu0 %v3559
    %4153 = vmatpush1.bf16.msra.mxu0 %v3558
    %4154 = vmatprep.subr.bf16.mxu0 %v3563
    %4155 = vmatpush1.bf16.msra.mxu0 %v3562
    %4156 = vmatprep.subr.bf16.mxu0 %v3567
    %4157 = vmatpush1.bf16.msra.mxu0 %v3566
    %4158 = vmatprep.subr.bf16.mxu0 %v3571
    %4159 = vmatpush1.bf16.msra.mxu0 %v3570
    %4160 = vmatprep.subr.bf16.mxu0 %v3575
    %4161 = vmatpush1.bf16.msra.mxu0 %v3574
    %4162 = vmatprep.subr.bf16.mxu0 %v3579
    %4163 = vmatpush1.bf16.msra.mxu0 %v3578
    %4164 = vmatprep.subr.bf16.mxu0 %v3583
    %4165 = vmatpush1.bf16.msra.mxu0 %v3582
    %4166 = vmatprep.subr.bf16.mxu0 %v3587
    %4167 = vmatpush1.bf16.msra.mxu0 %v3586
    %4168 = vmatprep.mubr.bf16.mxu0 %v2293
    %4169 = vmatmul.mubr.bf16.gmra.mrb[0].mxu0 %v2292
    %v4170 = vpop.f32.mrb[0].mxu0
    %v4171 = vadd.f32 %v4058, %v4170
    %v4172 = vpop.f32.mrb[0].mxu0
    %v4173 = vadd.f32 %v4060, %v4172
    %v4174 = vpop.f32.mrb[0].mxu0
    %v4175 = vadd.f32 %v4062, %v4174
    %v4176 = vpop.f32.mrb[0].mxu0
    %v4177 = vadd.f32 %v4064, %v4176
    %4178 = vmatprep.mubr.bf16.mxu0 %v2301
    %4179 = vmatmul.mubr.bf16.gmra.mrb[0].mxu0 %v2300
    %v4180 = vpop.f32.mrb[0].mxu0
    %v4181 = vadd.f32 %v4068, %v4180
    %v4182 = vpop.f32.mrb[0].mxu0
    %v4183 = vadd.f32 %v4070, %v4182
    %v4184 = vpop.f32.mrb[0].mxu0
    %v4185 = vadd.f32 %v4072, %v4184
    %v4186 = vpop.f32.mrb[0].mxu0
    %v4187 = vadd.f32 %v4074, %v4186
    %4188 = vmatprep.mubr.bf16.mxu0 %v2309
    %4189 = vmatmul.mubr.bf16.gmra.mrb[0].mxu0 %v2308
    %v4190 = vpop.f32.mrb[0].mxu0
    %v4191 = vadd.f32 %v4078, %v4190
    %v4192 = vpop.f32.mrb[0].mxu0
    %v4193 = vadd.f32 %v4080, %v4192
    %v4194 = vpop.f32.mrb[0].mxu0
    %v4195 = vadd.f32 %v4082, %v4194
    %v4196 = vpop.f32.mrb[0].mxu0
    %v4197 = vadd.f32 %v4084, %v4196
    %4198 = vmatprep.mubr.bf16.mxu0 %v2317
    %4199 = vmatmul.mubr.bf16.gmra.mrb[0].mxu0 %v2316
    %v4200 = vpop.f32.mrb[0].mxu0
    %v4201 = vadd.f32 %v4088, %v4200
    %v4202 = vpop.f32.mrb[0].mxu0
    %v4203 = vadd.f32 %v4090, %v4202
    %v4204 = vpop.f32.mrb[0].mxu0
    %v4205 = vadd.f32 %v4092, %v4204
    %v4206 = vpop.f32.mrb[0].mxu0
    %v4207 = vadd.f32 %v4094, %v4206
    %4208 = vmatprep.mubr.bf16.mxu0 %v2325
    %4209 = vmatmul.mubr.bf16.gmra.mrb[0].mxu0 %v2324
    %v4210 = vpop.f32.mrb[0].mxu0
    %v4211 = vadd.f32 %v4098, %v4210
    %v4212 = vpop.f32.mrb[0].mxu0
    %v4213 = vadd.f32 %v4100, %v4212
    %v4214 = vpop.f32.mrb[0].mxu0
    %v4215 = vadd.f32 %v4102, %v4214
    %v4216 = vpop.f32.mrb[0].mxu0
    %v4217 = vadd.f32 %v4104, %v4216
    %4218 = vmatprep.mubr.bf16.mxu0 %v2333
    %4219 = vmatmul.mubr.bf16.gmra.mrb[0].mxu0 %v2332
    %v4220 = vpop.f32.mrb[0].mxu0
    %v4221 = vadd.f32 %v4108, %v4220
    %v4222 = vpop.f32.mrb[0].mxu0
    %v4223 = vadd.f32 %v4110, %v4222
    %v4224 = vpop.f32.mrb[0].mxu0
    %v4225 = vadd.f32 %v4112, %v4224
    %v4226 = vpop.f32.mrb[0].mxu0
    %v4227 = vadd.f32 %v4114, %v4226
    %4228 = vmatprep.mubr.bf16.mxu0 %v2341
    %4229 = vmatmul.mubr.bf16.gmra.mrb[0].mxu0 %v2340
    %v4230 = vpop.f32.mrb[0].mxu0
    %v4231 = vadd.f32 %v4118, %v4230
    %v4232 = vpop.f32.mrb[0].mxu0
    %v4233 = vadd.f32 %v4120, %v4232
    %v4234 = vpop.f32.mrb[0].mxu0
    %v4235 = vadd.f32 %v4122, %v4234
    %v4236 = vpop.f32.mrb[0].mxu0
    %v4237 = vadd.f32 %v4124, %v4236
    %4238 = vmatprep.mubr.bf16.mxu0 %v2349
    %4239 = vmatmul.mubr.bf16.gmra.mrb[0].mxu0 %v2348
    %v4240 = vpop.f32.mrb[0].mxu0
    %v4241 = vadd.f32 %v4128, %v4240
    %v4242 = vpop.f32.mrb[0].mxu0
    %v4243 = vadd.f32 %v4130, %v4242
    %v4244 = vpop.f32.mrb[0].mxu0
    %v4245 = vadd.f32 %v4132, %v4244
    %v4246 = vpop.f32.mrb[0].mxu0
    %v4247 = vadd.f32 %v4134, %v4246
    %4248 = vdwg.mxu0
    %4249 = vmatprep.subr.bf16.mxu0 %v3591
    %4250 = vmatpush1.bf16.msra.mxu0 %v3590
    %4251 = vmatprep.subr.bf16.mxu0 %v3595
    %4252 = vmatpush1.bf16.msra.mxu0 %v3594
    %4253 = vmatprep.subr.bf16.mxu0 %v3599
    %4254 = vmatpush1.bf16.msra.mxu0 %v3598
    %4255 = vmatprep.subr.bf16.mxu0 %v3603
    %4256 = vmatpush1.bf16.msra.mxu0 %v3602
    %4257 = vmatprep.subr.bf16.mxu0 %v3607
    %4258 = vmatpush1.bf16.msra.mxu0 %v3606
    %4259 = vmatprep.subr.bf16.mxu0 %v3611
    %4260 = vmatpush1.bf16.msra.mxu0 %v3610
    %4261 = vmatprep.subr.bf16.mxu0 %v3615
    %4262 = vmatpush1.bf16.msra.mxu0 %v3614
    %4263 = vmatprep.subr.bf16.mxu0 %v3619
    %4264 = vmatpush1.bf16.msra.mxu0 %v3618
    %4265 = vmatprep.subr.bf16.mxu0 %v3623
    %4266 = vmatpush1.bf16.msra.mxu0 %v3622
    %4267 = vmatprep.subr.bf16.mxu0 %v3627
    %4268 = vmatpush1.bf16.msra.mxu0 %v3626
    %4269 = vmatprep.subr.bf16.mxu0 %v3631
    %4270 = vmatpush1.bf16.msra.mxu0 %v3630
    %4271 = vmatprep.subr.bf16.mxu0 %v3635
    %4272 = vmatpush1.bf16.msra.mxu0 %v3634
    %4273 = vmatprep.subr.bf16.mxu0 %v3639
    %4274 = vmatpush1.bf16.msra.mxu0 %v3638
    %4275 = vmatprep.subr.bf16.mxu0 %v3643
    %4276 = vmatpush1.bf16.msra.mxu0 %v3642
    %4277 = vmatprep.subr.bf16.mxu0 %v3647
    %4278 = vmatpush1.bf16.msra.mxu0 %v3646
    %4279 = vmatprep.subr.bf16.mxu0 %v3651
    %4280 = vmatpush1.bf16.msra.mxu0 %v3650
    %4281 = vmatprep.mubr.bf16.mxu0 %v2295
    %4282 = vmatmul.mubr.bf16.gmra.mrb[0].mxu0 %v2294
    %v4283 = vpop.f32.mrb[0].mxu0
    %v4284 = vadd.f32 %v4171, %v4283
    %v4285 = vpop.f32.mrb[0].mxu0
    %v4286 = vadd.f32 %v4173, %v4285
    %v4287 = vpop.f32.mrb[0].mxu0
    %v4288 = vadd.f32 %v4175, %v4287
    %v4289 = vpop.f32.mrb[0].mxu0
    %v4290 = vadd.f32 %v4177, %v4289
    %4291 = vmatprep.mubr.bf16.mxu0 %v2303
    %4292 = vmatmul.mubr.bf16.gmra.mrb[0].mxu0 %v2302
    %v4293 = vpop.f32.mrb[0].mxu0
    %v4294 = vadd.f32 %v4181, %v4293
    %v4295 = vpop.f32.mrb[0].mxu0
    %v4296 = vadd.f32 %v4183, %v4295
    %v4297 = vpop.f32.mrb[0].mxu0
    %v4298 = vadd.f32 %v4185, %v4297
    %v4299 = vpop.f32.mrb[0].mxu0
    %v4300 = vadd.f32 %v4187, %v4299
    %4301 = vmatprep.mubr.bf16.mxu0 %v2311
    %4302 = vmatmul.mubr.bf16.gmra.mrb[0].mxu0 %v2310
    %v4303 = vpop.f32.mrb[0].mxu0
    %v4304 = vadd.f32 %v4191, %v4303
    %v4305 = vpop.f32.mrb[0].mxu0
    %v4306 = vadd.f32 %v4193, %v4305
    %v4307 = vpop.f32.mrb[0].mxu0
    %v4308 = vadd.f32 %v4195, %v4307
    %v4309 = vpop.f32.mrb[0].mxu0
    %v4310 = vadd.f32 %v4197, %v4309
    %4311 = vmatprep.mubr.bf16.mxu0 %v2319
    %4312 = vmatmul.mubr.bf16.gmra.mrb[0].mxu0 %v2318
    %v4313 = vpop.f32.mrb[0].mxu0
    %v4314 = vadd.f32 %v4201, %v4313
    %v4315 = vpop.f32.mrb[0].mxu0
    %v4316 = vadd.f32 %v4203, %v4315
    %v4317 = vpop.f32.mrb[0].mxu0
    %v4318 = vadd.f32 %v4205, %v4317
    %v4319 = vpop.f32.mrb[0].mxu0
    %v4320 = vadd.f32 %v4207, %v4319
    %4321 = vmatprep.mubr.bf16.mxu0 %v2327
    %4322 = vmatmul.mubr.bf16.gmra.mrb[0].mxu0 %v2326
    %v4323 = vpop.f32.mrb[0].mxu0
    %v4324 = vadd.f32 %v4211, %v4323
    %v4325 = vpop.f32.mrb[0].mxu0
    %v4326 = vadd.f32 %v4213, %v4325
    %v4327 = vpop.f32.mrb[0].mxu0
    %v4328 = vadd.f32 %v4215, %v4327
    %v4329 = vpop.f32.mrb[0].mxu0
    %v4330 = vadd.f32 %v4217, %v4329
    %4331 = vmatprep.mubr.bf16.mxu0 %v2335
    %4332 = vmatmul.mubr.bf16.gmra.mrb[0].mxu0 %v2334
    %v4333 = vpop.f32.mrb[0].mxu0
    %v4334 = vadd.f32 %v4221, %v4333
    %v4335 = vpop.f32.mrb[0].mxu0
    %v4336 = vadd.f32 %v4223, %v4335
    %v4337 = vpop.f32.mrb[0].mxu0
    %v4338 = vadd.f32 %v4225, %v4337
    %v4339 = vpop.f32.mrb[0].mxu0
    %v4340 = vadd.f32 %v4227, %v4339
    %4341 = vmatprep.mubr.bf16.mxu0 %v2343
    %4342 = vmatmul.mubr.bf16.gmra.mrb[0].mxu0 %v2342
    %v4343 = vpop.f32.mrb[0].mxu0
    %v4344 = vadd.f32 %v4231, %v4343
    %v4345 = vpop.f32.mrb[0].mxu0
    %v4346 = vadd.f32 %v4233, %v4345
    %v4347 = vpop.f32.mrb[0].mxu0
    %v4348 = vadd.f32 %v4235, %v4347
    %v4349 = vpop.f32.mrb[0].mxu0
    %v4350 = vadd.f32 %v4237, %v4349
    %4351 = vmatprep.mubr.bf16.mxu0 %v2351
    %4352 = vmatmul.mubr.bf16.gmra.mrb[0].mxu0 %v2350
    %v4353 = vpop.f32.mrb[0].mxu0
    %v4354 = vadd.f32 %v4241, %v4353
    %v4355 = vpop.f32.mrb[0].mxu0
    %v4356 = vadd.f32 %v4243, %v4355
    %v4357 = vpop.f32.mrb[0].mxu0
    %v4358 = vadd.f32 %v4245, %v4357
    %v4359 = vpop.f32.mrb[0].mxu0
    %v4360 = vadd.f32 %v4247, %v4359
    %4361 = vdwg.mxu0
    %4362 = vmatprep.subr.bf16.mxu0 %v3401
    %4363 = vmatpush1.bf16.msra.mxu0 %v3400
    %4364 = vmatprep.subr.bf16.mxu0 %v3405
    %4365 = vmatpush1.bf16.msra.mxu0 %v3404
    %4366 = vmatprep.subr.bf16.mxu0 %v3409
    %4367 = vmatpush1.bf16.msra.mxu0 %v3408
    %4368 = vmatprep.subr.bf16.mxu0 %v3413
    %4369 = vmatpush1.bf16.msra.mxu0 %v3412
    %4370 = vmatprep.subr.bf16.mxu0 %v3417
    %4371 = vmatpush1.bf16.msra.mxu0 %v3416
    %4372 = vmatprep.subr.bf16.mxu0 %v3421
    %4373 = vmatpush1.bf16.msra.mxu0 %v3420
    %4374 = vmatprep.subr.bf16.mxu0 %v3425
    %4375 = vmatpush1.bf16.msra.mxu0 %v3424
    %4376 = vmatprep.subr.bf16.mxu0 %v3429
    %4377 = vmatpush1.bf16.msra.mxu0 %v3428
    %4378 = vmatprep.subr.bf16.mxu0 %v3433
    %4379 = vmatpush1.bf16.msra.mxu0 %v3432
    %4380 = vmatprep.subr.bf16.mxu0 %v3437
    %4381 = vmatpush1.bf16.msra.mxu0 %v3436
    %4382 = vmatprep.subr.bf16.mxu0 %v3441
    %4383 = vmatpush1.bf16.msra.mxu0 %v3440
    %4384 = vmatprep.subr.bf16.mxu0 %v3445
    %4385 = vmatpush1.bf16.msra.mxu0 %v3444
    %4386 = vmatprep.subr.bf16.mxu0 %v3449
    %4387 = vmatpush1.bf16.msra.mxu0 %v3448
    %4388 = vmatprep.subr.bf16.mxu0 %v3453
    %4389 = vmatpush1.bf16.msra.mxu0 %v3452
    %4390 = vmatprep.subr.bf16.mxu0 %v3457
    %4391 = vmatpush1.bf16.msra.mxu0 %v3456
    %4392 = vmatprep.subr.bf16.mxu0 %v3461
    %4393 = vmatpush1.bf16.msra.mxu0 %v3460
    %4394 = vmatprep.mubr.bf16.mxu0 %v2289
    %4395 = vmatmul.mubr.bf16.gmra.mrb[0].mxu0 %v2288
    %v4396 = vpop.f32.mrb[0].mxu0
    %v4397 = vadd.f32 %v2621, %v4396
    %v4398 = vpop.f32.mrb[0].mxu0
    %v4399 = vadd.f32 %v2625, %v4398
    %v4400 = vpop.f32.mrb[0].mxu0
    %v4401 = vadd.f32 %v2621, %v4400
    %v4402 = vpop.f32.mrb[0].mxu0
    %v4403 = vadd.f32 %v2625, %v4402
    %4404 = vmatprep.mubr.bf16.mxu0 %v2297
    %4405 = vmatmul.mubr.bf16.gmra.mrb[0].mxu0 %v2296
    %v4406 = vpop.f32.mrb[0].mxu0
    %v4407 = vadd.f32 %v2621, %v4406
    %v4408 = vpop.f32.mrb[0].mxu0
    %v4409 = vadd.f32 %v2625, %v4408
    %v4410 = vpop.f32.mrb[0].mxu0
    %v4411 = vadd.f32 %v2621, %v4410
    %v4412 = vpop.f32.mrb[0].mxu0
    %v4413 = vadd.f32 %v2625, %v4412
    %4414 = vmatprep.mubr.bf16.mxu0 %v2305
    %4415 = vmatmul.mubr.bf16.gmra.mrb[0].mxu0 %v2304
    %v4416 = vpop.f32.mrb[0].mxu0
    %v4417 = vadd.f32 %v2621, %v4416
    %v4418 = vpop.f32.mrb[0].mxu0
    %v4419 = vadd.f32 %v2625, %v4418
    %v4420 = vpop.f32.mrb[0].mxu0
    %v4421 = vadd.f32 %v2621, %v4420
    %v4422 = vpop.f32.mrb[0].mxu0
    %v4423 = vadd.f32 %v2625, %v4422
    %4424 = vmatprep.mubr.bf16.mxu0 %v2313
    %4425 = vmatmul.mubr.bf16.gmra.mrb[0].mxu0 %v2312
    %v4426 = vpop.f32.mrb[0].mxu0
    %v4427 = vadd.f32 %v2621, %v4426
    %v4428 = vpop.f32.mrb[0].mxu0
    %v4429 = vadd.f32 %v2625, %v4428
    %v4430 = vpop.f32.mrb[0].mxu0
    %v4431 = vadd.f32 %v2621, %v4430
    %v4432 = vpop.f32.mrb[0].mxu0
    %v4433 = vadd.f32 %v2625, %v4432
    %4434 = vmatprep.mubr.bf16.mxu0 %v2321
    %4435 = vmatmul.mubr.bf16.gmra.mrb[0].mxu0 %v2320
    %v4436 = vpop.f32.mrb[0].mxu0
    %v4437 = vadd.f32 %v2621, %v4436
    %v4438 = vpop.f32.mrb[0].mxu0
    %v4439 = vadd.f32 %v2625, %v4438
    %v4440 = vpop.f32.mrb[0].mxu0
    %v4441 = vadd.f32 %v2621, %v4440
    %v4442 = vpop.f32.mrb[0].mxu0
    %v4443 = vadd.f32 %v2625, %v4442
    %4444 = vmatprep.mubr.bf16.mxu0 %v2329
    %4445 = vmatmul.mubr.bf16.gmra.mrb[0].mxu0 %v2328
    %v4446 = vpop.f32.mrb[0].mxu0
    %v4447 = vadd.f32 %v2621, %v4446
    %v4448 = vpop.f32.mrb[0].mxu0
    %v4449 = vadd.f32 %v2625, %v4448
    %v4450 = vpop.f32.mrb[0].mxu0
    %v4451 = vadd.f32 %v2621, %v4450
    %v4452 = vpop.f32.mrb[0].mxu0
    %v4453 = vadd.f32 %v2625, %v4452
    %4454 = vmatprep.mubr.bf16.mxu0 %v2337
    %4455 = vmatmul.mubr.bf16.gmra.mrb[0].mxu0 %v2336
    %v4456 = vpop.f32.mrb[0].mxu0
    %v4457 = vadd.f32 %v2621, %v4456
    %v4458 = vpop.f32.mrb[0].mxu0
    %v4459 = vadd.f32 %v2625, %v4458
    %v4460 = vpop.f32.mrb[0].mxu0
    %v4461 = vadd.f32 %v2621, %v4460
    %v4462 = vpop.f32.mrb[0].mxu0
    %v4463 = vadd.f32 %v2625, %v4462
    %4464 = vmatprep.mubr.bf16.mxu0 %v2345
    %4465 = vmatmul.mubr.bf16.gmra.mrb[0].mxu0 %v2344
    %v4466 = vpop.f32.mrb[0].mxu0
    %v4467 = vadd.f32 %v2621, %v4466
    %v4468 = vpop.f32.mrb[0].mxu0
    %v4469 = vadd.f32 %v2625, %v4468
    %v4470 = vpop.f32.mrb[0].mxu0
    %v4471 = vadd.f32 %v2621, %v4470
    %v4472 = vpop.f32.mrb[0].mxu0
    %v4473 = vadd.f32 %v2625, %v4472
    %4474 = vdwg.mxu0
    %4475 = vmatprep.subr.bf16.mxu0 %v3465
    %4476 = vmatpush1.bf16.msra.mxu0 %v3464
    %4477 = vmatprep.subr.bf16.mxu0 %v3469
    %4478 = vmatpush1.bf16.msra.mxu0 %v3468
    %4479 = vmatprep.subr.bf16.mxu0 %v3473
    %4480 = vmatpush1.bf16.msra.mxu0 %v3472
    %4481 = vmatprep.subr.bf16.mxu0 %v3477
    %4482 = vmatpush1.bf16.msra.mxu0 %v3476
    %4483 = vmatprep.subr.bf16.mxu0 %v3481
    %4484 = vmatpush1.bf16.msra.mxu0 %v3480
    %4485 = vmatprep.subr.bf16.mxu0 %v3485
    %4486 = vmatpush1.bf16.msra.mxu0 %v3484
    %4487 = vmatprep.subr.bf16.mxu0 %v3489
    %4488 = vmatpush1.bf16.msra.mxu0 %v3488
    %4489 = vmatprep.subr.bf16.mxu0 %v3493
    %4490 = vmatpush1.bf16.msra.mxu0 %v3492
    %4491 = vmatprep.subr.bf16.mxu0 %v3497
    %4492 = vmatpush1.bf16.msra.mxu0 %v3496
    %4493 = vmatprep.subr.bf16.mxu0 %v3501
    %4494 = vmatpush1.bf16.msra.mxu0 %v3500
    %4495 = vmatprep.subr.bf16.mxu0 %v3505
    %4496 = vmatpush1.bf16.msra.mxu0 %v3504
    %4497 = vmatprep.subr.bf16.mxu0 %v3509
    %4498 = vmatpush1.bf16.msra.mxu0 %v3508
    %4499 = vmatprep.subr.bf16.mxu0 %v3513
    %4500 = vmatpush1.bf16.msra.mxu0 %v3512
    %4501 = vmatprep.subr.bf16.mxu0 %v3517
    %4502 = vmatpush1.bf16.msra.mxu0 %v3516
    %4503 = vmatprep.subr.bf16.mxu0 %v3521
    %4504 = vmatpush1.bf16.msra.mxu0 %v3520
    %4505 = vmatprep.subr.bf16.mxu0 %v3525
    %4506 = vmatpush1.bf16.msra.mxu0 %v3524
    %4507 = vmatprep.mubr.bf16.mxu0 %v2291
    %4508 = vmatmul.mubr.bf16.gmra.mrb[0].mxu0 %v2290
    %v4509 = vpop.f32.mrb[0].mxu0
    %v4510 = vadd.f32 %v4397, %v4509
    %v4511 = vpop.f32.mrb[0].mxu0
    %v4512 = vadd.f32 %v4399, %v4511
    %v4513 = vpop.f32.mrb[0].mxu0
    %v4514 = vadd.f32 %v4401, %v4513
    %v4515 = vpop.f32.mrb[0].mxu0
    %v4516 = vadd.f32 %v4403, %v4515
    %4517 = vmatprep.mubr.bf16.mxu0 %v2299
    %4518 = vmatmul.mubr.bf16.gmra.mrb[0].mxu0 %v2298
    %v4519 = vpop.f32.mrb[0].mxu0
    %v4520 = vadd.f32 %v4407, %v4519
    %v4521 = vpop.f32.mrb[0].mxu0
    %v4522 = vadd.f32 %v4409, %v4521
    %v4523 = vpop.f32.mrb[0].mxu0
    %v4524 = vadd.f32 %v4411, %v4523
    %v4525 = vpop.f32.mrb[0].mxu0
    %v4526 = vadd.f32 %v4413, %v4525
    %4527 = vmatprep.mubr.bf16.mxu0 %v2307
    %4528 = vmatmul.mubr.bf16.gmra.mrb[0].mxu0 %v2306
    %v4529 = vpop.f32.mrb[0].mxu0
    %v4530 = vadd.f32 %v4417, %v4529
    %v4531 = vpop.f32.mrb[0].mxu0
    %v4532 = vadd.f32 %v4419, %v4531
    %v4533 = vpop.f32.mrb[0].mxu0
    %v4534 = vadd.f32 %v4421, %v4533
    %v4535 = vpop.f32.mrb[0].mxu0
    %v4536 = vadd.f32 %v4423, %v4535
    %4537 = vmatprep.mubr.bf16.mxu0 %v2315
    %4538 = vmatmul.mubr.bf16.gmra.mrb[0].mxu0 %v2314
    %v4539 = vpop.f32.mrb[0].mxu0
    %v4540 = vadd.f32 %v4427, %v4539
    %v4541 = vpop.f32.mrb[0].mxu0
    %v4542 = vadd.f32 %v4429, %v4541
    %v4543 = vpop.f32.mrb[0].mxu0
    %v4544 = vadd.f32 %v4431, %v4543
    %v4545 = vpop.f32.mrb[0].mxu0
    %v4546 = vadd.f32 %v4433, %v4545
    %4547 = vmatprep.mubr.bf16.mxu0 %v2323
    %4548 = vmatmul.mubr.bf16.gmra.mrb[0].mxu0 %v2322
    %v4549 = vpop.f32.mrb[0].mxu0
    %v4550 = vadd.f32 %v4437, %v4549
    %v4551 = vpop.f32.mrb[0].mxu0
    %v4552 = vadd.f32 %v4439, %v4551
    %v4553 = vpop.f32.mrb[0].mxu0
    %v4554 = vadd.f32 %v4441, %v4553
    %v4555 = vpop.f32.mrb[0].mxu0
    %v4556 = vadd.f32 %v4443, %v4555
    %4557 = vmatprep.mubr.bf16.mxu0 %v2331
    %4558 = vmatmul.mubr.bf16.gmra.mrb[0].mxu0 %v2330
    %v4559 = vpop.f32.mrb[0].mxu0
    %v4560 = vadd.f32 %v4447, %v4559
    %v4561 = vpop.f32.mrb[0].mxu0
    %v4562 = vadd.f32 %v4449, %v4561
    %v4563 = vpop.f32.mrb[0].mxu0
    %v4564 = vadd.f32 %v4451, %v4563
    %v4565 = vpop.f32.mrb[0].mxu0
    %v4566 = vadd.f32 %v4453, %v4565
    %4567 = vmatprep.mubr.bf16.mxu0 %v2339
    %4568 = vmatmul.mubr.bf16.gmra.mrb[0].mxu0 %v2338
    %v4569 = vpop.f32.mrb[0].mxu0
    %v4570 = vadd.f32 %v4457, %v4569
    %v4571 = vpop.f32.mrb[0].mxu0
    %v4572 = vadd.f32 %v4459, %v4571
    %v4573 = vpop.f32.mrb[0].mxu0
    %v4574 = vadd.f32 %v4461, %v4573
    %v4575 = vpop.f32.mrb[0].mxu0
    %v4576 = vadd.f32 %v4463, %v4575
    %4577 = vmatprep.mubr.bf16.mxu0 %v2347
    %4578 = vmatmul.mubr.bf16.gmra.mrb[0].mxu0 %v2346
    %v4579 = vpop.f32.mrb[0].mxu0
    %v4580 = vadd.f32 %v4467, %v4579
    %v4581 = vpop.f32.mrb[0].mxu0
    %v4582 = vadd.f32 %v4469, %v4581
    %v4583 = vpop.f32.mrb[0].mxu0
    %v4584 = vadd.f32 %v4471, %v4583
    %v4585 = vpop.f32.mrb[0].mxu0
    %v4586 = vadd.f32 %v4473, %v4585
    %4587 = vdwg.mxu0
    %4588 = vmatprep.subr.bf16.mxu0 %v3529
    %4589 = vmatpush1.bf16.msra.mxu0 %v3528
    %4590 = vmatprep.subr.bf16.mxu0 %v3533
    %4591 = vmatpush1.bf16.msra.mxu0 %v3532
    %4592 = vmatprep.subr.bf16.mxu0 %v3537
    %4593 = vmatpush1.bf16.msra.mxu0 %v3536
    %4594 = vmatprep.subr.bf16.mxu0 %v3541
    %4595 = vmatpush1.bf16.msra.mxu0 %v3540
    %4596 = vmatprep.subr.bf16.mxu0 %v3545
    %4597 = vmatpush1.bf16.msra.mxu0 %v3544
    %4598 = vmatprep.subr.bf16.mxu0 %v3549
    %4599 = vmatpush1.bf16.msra.mxu0 %v3548
    %4600 = vmatprep.subr.bf16.mxu0 %v3553
    %4601 = vmatpush1.bf16.msra.mxu0 %v3552
    %4602 = vmatprep.subr.bf16.mxu0 %v3557
    %4603 = vmatpush1.bf16.msra.mxu0 %v3556
    %4604 = vmatprep.subr.bf16.mxu0 %v3561
    %4605 = vmatpush1.bf16.msra.mxu0 %v3560
    %4606 = vmatprep.subr.bf16.mxu0 %v3565
    %4607 = vmatpush1.bf16.msra.mxu0 %v3564
    %4608 = vmatprep.subr.bf16.mxu0 %v3569
    %4609 = vmatpush1.bf16.msra.mxu0 %v3568
    %4610 = vmatprep.subr.bf16.mxu0 %v3573
    %4611 = vmatpush1.bf16.msra.mxu0 %v3572
    %4612 = vmatprep.subr.bf16.mxu0 %v3577
    %4613 = vmatpush1.bf16.msra.mxu0 %v3576
    %4614 = vmatprep.subr.bf16.mxu0 %v3581
    %4615 = vmatpush1.bf16.msra.mxu0 %v3580
    %4616 = vmatprep.subr.bf16.mxu0 %v3585
    %4617 = vmatpush1.bf16.msra.mxu0 %v3584
    %4618 = vmatprep.subr.bf16.mxu0 %v3589
    %4619 = vmatpush1.bf16.msra.mxu0 %v3588
    %4620 = vmatprep.mubr.bf16.mxu0 %v2293
    %4621 = vmatmul.mubr.bf16.gmra.mrb[0].mxu0 %v2292
    %v4622 = vpop.f32.mrb[0].mxu0
    %v4623 = vadd.f32 %v4510, %v4622
    %v4624 = vpop.f32.mrb[0].mxu0
    %v4625 = vadd.f32 %v4512, %v4624
    %v4626 = vpop.f32.mrb[0].mxu0
    %v4627 = vadd.f32 %v4514, %v4626
    %v4628 = vpop.f32.mrb[0].mxu0
    %v4629 = vadd.f32 %v4516, %v4628
    %4630 = vmatprep.mubr.bf16.mxu0 %v2301
    %4631 = vmatmul.mubr.bf16.gmra.mrb[0].mxu0 %v2300
    %v4632 = vpop.f32.mrb[0].mxu0
    %v4633 = vadd.f32 %v4520, %v4632
    %v4634 = vpop.f32.mrb[0].mxu0
    %v4635 = vadd.f32 %v4522, %v4634
    %v4636 = vpop.f32.mrb[0].mxu0
    %v4637 = vadd.f32 %v4524, %v4636
    %v4638 = vpop.f32.mrb[0].mxu0
    %v4639 = vadd.f32 %v4526, %v4638
    %4640 = vmatprep.mubr.bf16.mxu0 %v2309
    %4641 = vmatmul.mubr.bf16.gmra.mrb[0].mxu0 %v2308
    %v4642 = vpop.f32.mrb[0].mxu0
    %v4643 = vadd.f32 %v4530, %v4642
    %v4644 = vpop.f32.mrb[0].mxu0
    %v4645 = vadd.f32 %v4532, %v4644
    %v4646 = vpop.f32.mrb[0].mxu0
    %v4647 = vadd.f32 %v4534, %v4646
    %v4648 = vpop.f32.mrb[0].mxu0
    %v4649 = vadd.f32 %v4536, %v4648
    %4650 = vmatprep.mubr.bf16.mxu0 %v2317
    %4651 = vmatmul.mubr.bf16.gmra.mrb[0].mxu0 %v2316
    %v4652 = vpop.f32.mrb[0].mxu0
    %v4653 = vadd.f32 %v4540, %v4652
    %v4654 = vpop.f32.mrb[0].mxu0
    %v4655 = vadd.f32 %v4542, %v4654
    %v4656 = vpop.f32.mrb[0].mxu0
    %v4657 = vadd.f32 %v4544, %v4656
    %v4658 = vpop.f32.mrb[0].mxu0
    %v4659 = vadd.f32 %v4546, %v4658
    %4660 = vmatprep.mubr.bf16.mxu0 %v2325
    %4661 = vmatmul.mubr.bf16.gmra.mrb[0].mxu0 %v2324
    %v4662 = vpop.f32.mrb[0].mxu0
    %v4663 = vadd.f32 %v4550, %v4662
    %v4664 = vpop.f32.mrb[0].mxu0
    %v4665 = vadd.f32 %v4552, %v4664
    %v4666 = vpop.f32.mrb[0].mxu0
    %v4667 = vadd.f32 %v4554, %v4666
    %v4668 = vpop.f32.mrb[0].mxu0
    %v4669 = vadd.f32 %v4556, %v4668
    %4670 = vmatprep.mubr.bf16.mxu0 %v2333
    %4671 = vmatmul.mubr.bf16.gmra.mrb[0].mxu0 %v2332
    %v4672 = vpop.f32.mrb[0].mxu0
    %v4673 = vadd.f32 %v4560, %v4672
    %v4674 = vpop.f32.mrb[0].mxu0
    %v4675 = vadd.f32 %v4562, %v4674
    %v4676 = vpop.f32.mrb[0].mxu0
    %v4677 = vadd.f32 %v4564, %v4676
    %v4678 = vpop.f32.mrb[0].mxu0
    %v4679 = vadd.f32 %v4566, %v4678
    %4680 = vmatprep.mubr.bf16.mxu0 %v2341
    %4681 = vmatmul.mubr.bf16.gmra.mrb[0].mxu0 %v2340
    %v4682 = vpop.f32.mrb[0].mxu0
    %v4683 = vadd.f32 %v4570, %v4682
    %v4684 = vpop.f32.mrb[0].mxu0
    %v4685 = vadd.f32 %v4572, %v4684
    %v4686 = vpop.f32.mrb[0].mxu0
    %v4687 = vadd.f32 %v4574, %v4686
    %v4688 = vpop.f32.mrb[0].mxu0
    %v4689 = vadd.f32 %v4576, %v4688
    %4690 = vmatprep.mubr.bf16.mxu0 %v2349
    %4691 = vmatmul.mubr.bf16.gmra.mrb[0].mxu0 %v2348
    %v4692 = vpop.f32.mrb[0].mxu0
    %v4693 = vadd.f32 %v4580, %v4692
    %v4694 = vpop.f32.mrb[0].mxu0
    %v4695 = vadd.f32 %v4582, %v4694
    %v4696 = vpop.f32.mrb[0].mxu0
    %v4697 = vadd.f32 %v4584, %v4696
    %v4698 = vpop.f32.mrb[0].mxu0
    %v4699 = vadd.f32 %v4586, %v4698
    %4700 = vdwg.mxu0
    %4701 = vmatprep.subr.bf16.mxu0 %v3593
    %4702 = vmatpush1.bf16.msra.mxu0 %v3592
    %4703 = vmatprep.subr.bf16.mxu0 %v3597
    %4704 = vmatpush1.bf16.msra.mxu0 %v3596
    %4705 = vmatprep.subr.bf16.mxu0 %v3601
    %4706 = vmatpush1.bf16.msra.mxu0 %v3600
    %4707 = vmatprep.subr.bf16.mxu0 %v3605
    %4708 = vmatpush1.bf16.msra.mxu0 %v3604
    %4709 = vmatprep.subr.bf16.mxu0 %v3609
    %4710 = vmatpush1.bf16.msra.mxu0 %v3608
    %4711 = vmatprep.subr.bf16.mxu0 %v3613
    %4712 = vmatpush1.bf16.msra.mxu0 %v3612
    %4713 = vmatprep.subr.bf16.mxu0 %v3617
    %4714 = vmatpush1.bf16.msra.mxu0 %v3616
    %4715 = vmatprep.subr.bf16.mxu0 %v3621
    %4716 = vmatpush1.bf16.msra.mxu0 %v3620
    %4717 = vmatprep.subr.bf16.mxu0 %v3625
    %4718 = vmatpush1.bf16.msra.mxu0 %v3624
    %4719 = vmatprep.subr.bf16.mxu0 %v3629
    %4720 = vmatpush1.bf16.msra.mxu0 %v3628
    %4721 = vmatprep.subr.bf16.mxu0 %v3633
    %4722 = vmatpush1.bf16.msra.mxu0 %v3632
    %4723 = vmatprep.subr.bf16.mxu0 %v3637
    %4724 = vmatpush1.bf16.msra.mxu0 %v3636
    %4725 = vmatprep.subr.bf16.mxu0 %v3641
    %4726 = vmatpush1.bf16.msra.mxu0 %v3640
    %4727 = vmatprep.subr.bf16.mxu0 %v3645
    %4728 = vmatpush1.bf16.msra.mxu0 %v3644
    %4729 = vmatprep.subr.bf16.mxu0 %v3649
    %4730 = vmatpush1.bf16.msra.mxu0 %v3648
    %4731 = vmatprep.subr.bf16.mxu0 %v3653
    %4732 = vmatpush1.bf16.msra.mxu0 %v3652
    %4733 = vmatprep.mubr.bf16.mxu0 %v2295
    %4734 = vmatmul.mubr.bf16.gmra.mrb[0].mxu0 %v2294
    %v4735 = vpop.f32.mrb[0].mxu0
    %v4736 = vadd.f32 %v4623, %v4735
    %v4737 = vpop.f32.mrb[0].mxu0
    %v4738 = vadd.f32 %v4625, %v4737
    %v4739 = vpop.f32.mrb[0].mxu0
    %v4740 = vadd.f32 %v4627, %v4739
    %v4741 = vpop.f32.mrb[0].mxu0
    %v4742 = vadd.f32 %v4629, %v4741
    %4743 = vmatprep.mubr.bf16.mxu0 %v2303
    %4744 = vmatmul.mubr.bf16.gmra.mrb[0].mxu0 %v2302
    %v4745 = vpop.f32.mrb[0].mxu0
    %v4746 = vadd.f32 %v4633, %v4745
    %v4747 = vpop.f32.mrb[0].mxu0
    %v4748 = vadd.f32 %v4635, %v4747
    %v4749 = vpop.f32.mrb[0].mxu0
    %v4750 = vadd.f32 %v4637, %v4749
    %v4751 = vpop.f32.mrb[0].mxu0
    %v4752 = vadd.f32 %v4639, %v4751
    %4753 = vmatprep.mubr.bf16.mxu0 %v2311
    %4754 = vmatmul.mubr.bf16.gmra.mrb[0].mxu0 %v2310
    %v4755 = vpop.f32.mrb[0].mxu0
    %v4756 = vadd.f32 %v4643, %v4755
    %v4757 = vpop.f32.mrb[0].mxu0
    %v4758 = vadd.f32 %v4645, %v4757
    %v4759 = vpop.f32.mrb[0].mxu0
    %v4760 = vadd.f32 %v4647, %v4759
    %v4761 = vpop.f32.mrb[0].mxu0
    %v4762 = vadd.f32 %v4649, %v4761
    %4763 = vmatprep.mubr.bf16.mxu0 %v2319
    %4764 = vmatmul.mubr.bf16.gmra.mrb[0].mxu0 %v2318
    %v4765 = vpop.f32.mrb[0].mxu0
    %v4766 = vadd.f32 %v4653, %v4765
    %v4767 = vpop.f32.mrb[0].mxu0
    %v4768 = vadd.f32 %v4655, %v4767
    %v4769 = vpop.f32.mrb[0].mxu0
    %v4770 = vadd.f32 %v4657, %v4769
    %v4771 = vpop.f32.mrb[0].mxu0
    %v4772 = vadd.f32 %v4659, %v4771
    %4773 = vmatprep.mubr.bf16.mxu0 %v2327
    %4774 = vmatmul.mubr.bf16.gmra.mrb[0].mxu0 %v2326
    %v4775 = vpop.f32.mrb[0].mxu0
    %v4776 = vadd.f32 %v4663, %v4775
    %v4777 = vpop.f32.mrb[0].mxu0
    %v4778 = vadd.f32 %v4665, %v4777
    %v4779 = vpop.f32.mrb[0].mxu0
    %v4780 = vadd.f32 %v4667, %v4779
    %v4781 = vpop.f32.mrb[0].mxu0
    %v4782 = vadd.f32 %v4669, %v4781
    %4783 = vmatprep.mubr.bf16.mxu0 %v2335
    %4784 = vmatmul.mubr.bf16.gmra.mrb[0].mxu0 %v2334
    %v4785 = vpop.f32.mrb[0].mxu0
    %v4786 = vadd.f32 %v4673, %v4785
    %v4787 = vpop.f32.mrb[0].mxu0
    %v4788 = vadd.f32 %v4675, %v4787
    %v4789 = vpop.f32.mrb[0].mxu0
    %v4790 = vadd.f32 %v4677, %v4789
    %v4791 = vpop.f32.mrb[0].mxu0
    %v4792 = vadd.f32 %v4679, %v4791
    %4793 = vmatprep.mubr.bf16.mxu0 %v2343
    %4794 = vmatmul.mubr.bf16.gmra.mrb[0].mxu0 %v2342
    %v4795 = vpop.f32.mrb[0].mxu0
    %v4796 = vadd.f32 %v4683, %v4795
    %v4797 = vpop.f32.mrb[0].mxu0
    %v4798 = vadd.f32 %v4685, %v4797
    %v4799 = vpop.f32.mrb[0].mxu0
    %v4800 = vadd.f32 %v4687, %v4799
    %v4801 = vpop.f32.mrb[0].mxu0
    %v4802 = vadd.f32 %v4689, %v4801
    %4803 = vmatprep.mubr.bf16.mxu0 %v2351
    %4804 = vmatmul.mubr.bf16.gmra.mrb[0].mxu0 %v2350
    %v4805 = vpop.f32.mrb[0].mxu0
    %v4806 = vadd.f32 %v4693, %v4805
    %v4807 = vpop.f32.mrb[0].mxu0
    %v4808 = vadd.f32 %v4695, %v4807
    %v4809 = vpop.f32.mrb[0].mxu0
    %v4810 = vadd.f32 %v4697, %v4809
    %v4811 = vpop.f32.mrb[0].mxu0
    %v4812 = vadd.f32 %v4699, %v4811
    %4813 = vdwg.mxu0
    %v4814 = vmul.f32 %v4284, 0.2
    %v4815 = vmul.f32 %v4286, 0.2
    %v4816 = vmul.f32 %v4736, 0.2
    %v4817 = vmul.f32 %v4738, 0.2
    %v4818 = vmul.f32 %v4288, 0.2
    %v4819 = vmul.f32 %v4290, 0.2
    %v4820 = vmul.f32 %v4740, 0.2
    %v4821 = vmul.f32 %v4742, 0.2
    %v4822 = vmul.f32 %v4294, 0.2
    %v4823 = vmul.f32 %v4296, 0.2
    %v4824 = vmul.f32 %v4746, 0.2
    %v4825 = vmul.f32 %v4748, 0.2
    %v4826 = vmul.f32 %v4298, 0.2
    %v4827 = vmul.f32 %v4300, 0.2
    %v4828 = vmul.f32 %v4750, 0.2
    %v4829 = vmul.f32 %v4752, 0.2
    %v4830 = vmul.f32 %v4304, 0.2
    %v4831 = vmul.f32 %v4306, 0.2
    %v4832 = vmul.f32 %v4756, 0.2
    %v4833 = vmul.f32 %v4758, 0.2
    %v4834 = vmul.f32 %v4308, 0.2
    %v4835 = vmul.f32 %v4310, 0.2
    %v4836 = vmul.f32 %v4760, 0.2
    %v4837 = vmul.f32 %v4762, 0.2
    %v4838 = vmul.f32 %v4314, 0.2
    %v4839 = vmul.f32 %v4316, 0.2
    %v4840 = vmul.f32 %v4766, 0.2
    %v4841 = vmul.f32 %v4768, 0.2
    %v4842 = vmul.f32 %v4318, 0.2
    %v4843 = vmul.f32 %v4320, 0.2
    %v4844 = vmul.f32 %v4770, 0.2
    %v4845 = vmul.f32 %v4772, 0.2
    %v4846 = vmul.f32 %v4324, 0.2
    %v4847 = vmul.f32 %v4326, 0.2
    %v4848 = vmul.f32 %v4776, 0.2
    %v4849 = vmul.f32 %v4778, 0.2
    %v4850 = vmul.f32 %v4328, 0.2
    %v4851 = vmul.f32 %v4330, 0.2
    %v4852 = vmul.f32 %v4780, 0.2
    %v4853 = vmul.f32 %v4782, 0.2
    %v4854 = vmul.f32 %v4334, 0.2
    %v4855 = vmul.f32 %v4336, 0.2
    %v4856 = vmul.f32 %v4786, 0.2
    %v4857 = vmul.f32 %v4788, 0.2
    %v4858 = vmul.f32 %v4338, 0.2
    %v4859 = vmul.f32 %v4340, 0.2
    %v4860 = vmul.f32 %v4790, 0.2
    %v4861 = vmul.f32 %v4792, 0.2
    %v4862 = vmul.f32 %v4344, 0.2
    %v4863 = vmul.f32 %v4346, 0.2
    %v4864 = vmul.f32 %v4796, 0.2
    %v4865 = vmul.f32 %v4798, 0.2
    %v4866 = vmul.f32 %v4348, 0.2
    %v4867 = vmul.f32 %v4350, 0.2
    %v4868 = vmul.f32 %v4800, 0.2
    %v4869 = vmul.f32 %v4802, 0.2
    %v4870 = vmul.f32 %v4354, 0.2
    %v4871 = vmul.f32 %v4356, 0.2
    %v4872 = vmul.f32 %v4806, 0.2
    %v4873 = vmul.f32 %v4808, 0.2
    %v4874 = vmul.f32 %v4358, 0.2
    %v4875 = vmul.f32 %v4360, 0.2
    %v4876 = vmul.f32 %v4810, 0.2
    %v4877 = vmul.f32 %v4812, 0.2
    %v4878 = vmax.f32 %v4284, %v4814
    %v4879 = vmax.f32 %v4286, %v4815
    %v4880 = vmax.f32 %v4736, %v4816
    %v4881 = vmax.f32 %v4738, %v4817
    %v4882 = vmax.f32 %v4288, %v4818
    %v4883 = vmax.f32 %v4290, %v4819
    %v4884 = vmax.f32 %v4740, %v4820
    %v4885 = vmax.f32 %v4742, %v4821
    %v4886 = vmax.f32 %v4294, %v4822
    %v4887 = vmax.f32 %v4296, %v4823
    %v4888 = vmax.f32 %v4746, %v4824
    %v4889 = vmax.f32 %v4748, %v4825
    %v4890 = vmax.f32 %v4298, %v4826
    %v4891 = vmax.f32 %v4300, %v4827
    %v4892 = vmax.f32 %v4750, %v4828
    %v4893 = vmax.f32 %v4752, %v4829
    %v4894 = vmax.f32 %v4304, %v4830
    %v4895 = vmax.f32 %v4306, %v4831
    %v4896 = vmax.f32 %v4756, %v4832
    %v4897 = vmax.f32 %v4758, %v4833
    %v4898 = vmax.f32 %v4308, %v4834
    %v4899 = vmax.f32 %v4310, %v4835
    %v4900 = vmax.f32 %v4760, %v4836
    %v4901 = vmax.f32 %v4762, %v4837
    %v4902 = vmax.f32 %v4314, %v4838
    %v4903 = vmax.f32 %v4316, %v4839
    %v4904 = vmax.f32 %v4766, %v4840
    %v4905 = vmax.f32 %v4768, %v4841
    %v4906 = vmax.f32 %v4318, %v4842
    %v4907 = vmax.f32 %v4320, %v4843
    %v4908 = vmax.f32 %v4770, %v4844
    %v4909 = vmax.f32 %v4772, %v4845
    %v4910 = vmax.f32 %v4324, %v4846
    %v4911 = vmax.f32 %v4326, %v4847
    %v4912 = vmax.f32 %v4776, %v4848
    %v4913 = vmax.f32 %v4778, %v4849
    %v4914 = vmax.f32 %v4328, %v4850
    %v4915 = vmax.f32 %v4330, %v4851
    %v4916 = vmax.f32 %v4780, %v4852
    %v4917 = vmax.f32 %v4782, %v4853
    %v4918 = vmax.f32 %v4334, %v4854
    %v4919 = vmax.f32 %v4336, %v4855
    %v4920 = vmax.f32 %v4786, %v4856
    %v4921 = vmax.f32 %v4788, %v4857
    %v4922 = vmax.f32 %v4338, %v4858
    %v4923 = vmax.f32 %v4340, %v4859
    %v4924 = vmax.f32 %v4790, %v4860
    %v4925 = vmax.f32 %v4792, %v4861
    %v4926 = vmax.f32 %v4344, %v4862
    %v4927 = vmax.f32 %v4346, %v4863
    %v4928 = vmax.f32 %v4796, %v4864
    %v4929 = vmax.f32 %v4798, %v4865
    %v4930 = vmax.f32 %v4348, %v4866
    %v4931 = vmax.f32 %v4350, %v4867
    %v4932 = vmax.f32 %v4800, %v4868
    %v4933 = vmax.f32 %v4802, %v4869
    %v4934 = vmax.f32 %v4354, %v4870
    %v4935 = vmax.f32 %v4356, %v4871
    %v4936 = vmax.f32 %v4806, %v4872
    %v4937 = vmax.f32 %v4808, %v4873
    %v4938 = vmax.f32 %v4358, %v4874
    %v4939 = vmax.f32 %v4360, %v4875
    %v4940 = vmax.f32 %v4810, %v4876
    %v4941 = vmax.f32 %v4812, %v4877
    %v4942 = vpack.c.bf16 %v4882, %v4878
    %v4943 = vpack.c.bf16 %v4883, %v4879
    %v4944 = vpack.c.bf16 %v4884, %v4880
    %v4945 = vpack.c.bf16 %v4885, %v4881
    %v4946 = vpack.c.bf16 %v4890, %v4886
    %v4947 = vpack.c.bf16 %v4891, %v4887
    %v4948 = vpack.c.bf16 %v4892, %v4888
    %v4949 = vpack.c.bf16 %v4893, %v4889
    %v4950 = vpack.c.bf16 %v4898, %v4894
    %v4951 = vpack.c.bf16 %v4899, %v4895
    %v4952 = vpack.c.bf16 %v4900, %v4896
    %v4953 = vpack.c.bf16 %v4901, %v4897
    %v4954 = vpack.c.bf16 %v4906, %v4902
    %v4955 = vpack.c.bf16 %v4907, %v4903
    %v4956 = vpack.c.bf16 %v4908, %v4904
    %v4957 = vpack.c.bf16 %v4909, %v4905
    %v4958 = vpack.c.bf16 %v4914, %v4910
    %v4959 = vpack.c.bf16 %v4915, %v4911
    %v4960 = vpack.c.bf16 %v4916, %v4912
    %v4961 = vpack.c.bf16 %v4917, %v4913
    %v4962 = vpack.c.bf16 %v4922, %v4918
    %v4963 = vpack.c.bf16 %v4923, %v4919
    %v4964 = vpack.c.bf16 %v4924, %v4920
    %v4965 = vpack.c.bf16 %v4925, %v4921
    %v4966 = vpack.c.bf16 %v4930, %v4926
    %v4967 = vpack.c.bf16 %v4931, %v4927
    %v4968 = vpack.c.bf16 %v4932, %v4928
    %v4969 = vpack.c.bf16 %v4933, %v4929
    %v4970 = vpack.c.bf16 %v4938, %v4934
    %v4971 = vpack.c.bf16 %v4939, %v4935
    %v4972 = vpack.c.bf16 %v4940, %v4936
    %v4973 = vpack.c.bf16 %v4941, %v4937
    %v4974 = vld [vmem:[#allocation7] sm:$0xff]
    %v4975 = vld [vmem:[#allocation7 + $0x8] sm:$0xff]
    %v4976 = vld [vmem:[#allocation7 + $0x10] sm:$0xff]
    %v4977 = vld [vmem:[#allocation7 + $0x18] sm:$0xff]
    %v4978 = vld [vmem:[#allocation7 + $0x20] sm:$0xff]
    %v4979 = vld [vmem:[#allocation7 + $0x28] sm:$0xff]
    %v4980 = vld [vmem:[#allocation7 + $0x30] sm:$0xff]
    %v4981 = vld [vmem:[#allocation7 + $0x38] sm:$0xff]
    %v4982 = vld [vmem:[#allocation7 + $0x40] sm:$0xff]
    %v4983 = vld [vmem:[#allocation7 + $0x48] sm:$0xff]
    %v4984 = vld [vmem:[#allocation7 + $0x50] sm:$0xff]
    %v4985 = vld [vmem:[#allocation7 + $0x58] sm:$0xff]
    %v4986 = vld [vmem:[#allocation7 + $0x60] sm:$0xff]
    %v4987 = vld [vmem:[#allocation7 + $0x68] sm:$0xff]
    %v4988 = vld [vmem:[#allocation7 + $0x70] sm:$0xff]
    %v4989 = vld [vmem:[#allocation7 + $0x78] sm:$0xff]
    %v4990 = vld [vmem:[#allocation7 + $0x80] sm:$0xff]
    %v4991 = vld [vmem:[#allocation7 + $0x88] sm:$0xff]
    %v4992 = vld [vmem:[#allocation7 + $0x90] sm:$0xff]
    %v4993 = vld [vmem:[#allocation7 + $0x98] sm:$0xff]
    %v4994 = vld [vmem:[#allocation7 + $0xa0] sm:$0xff]
    %v4995 = vld [vmem:[#allocation7 + $0xa8] sm:$0xff]
    %v4996 = vld [vmem:[#allocation7 + $0xb0] sm:$0xff]
    %v4997 = vld [vmem:[#allocation7 + $0xb8] sm:$0xff]
    %v4998 = vld [vmem:[#allocation7 + $0xc0] sm:$0xff]
    %v4999 = vld [vmem:[#allocation7 + $0xc8] sm:$0xff]
    %v5000 = vld [vmem:[#allocation7 + $0xd0] sm:$0xff]
    %v5001 = vld [vmem:[#allocation7 + $0xd8] sm:$0xff]
    %v5002 = vld [vmem:[#allocation7 + $0xe0] sm:$0xff]
    %v5003 = vld [vmem:[#allocation7 + $0xe8] sm:$0xff]
    %v5004 = vld [vmem:[#allocation7 + $0xf0] sm:$0xff]
    %v5005 = vld [vmem:[#allocation7 + $0xf8] sm:$0xff]
    %v5006 = vld [vmem:[#allocation7 + $0x100] sm:$0xff]
    %v5007 = vld [vmem:[#allocation7 + $0x108] sm:$0xff]
    %v5008 = vld [vmem:[#allocation7 + $0x110] sm:$0xff]
    %v5009 = vld [vmem:[#allocation7 + $0x118] sm:$0xff]
    %v5010 = vld [vmem:[#allocation7 + $0x120] sm:$0xff]
    %v5011 = vld [vmem:[#allocation7 + $0x128] sm:$0xff]
    %v5012 = vld [vmem:[#allocation7 + $0x130] sm:$0xff]
    %v5013 = vld [vmem:[#allocation7 + $0x138] sm:$0xff]
    %v5014 = vld [vmem:[#allocation7 + $0x140] sm:$0xff]
    %v5015 = vld [vmem:[#allocation7 + $0x148] sm:$0xff]
    %v5016 = vld [vmem:[#allocation7 + $0x150] sm:$0xff]
    %v5017 = vld [vmem:[#allocation7 + $0x158] sm:$0xff]
    %v5018 = vld [vmem:[#allocation7 + $0x160] sm:$0xff]
    %v5019 = vld [vmem:[#allocation7 + $0x168] sm:$0xff]
    %v5020 = vld [vmem:[#allocation7 + $0x170] sm:$0xff]
    %v5021 = vld [vmem:[#allocation7 + $0x178] sm:$0xff]
    %v5022 = vld [vmem:[#allocation7 + $0x180] sm:$0xff]
    %v5023 = vld [vmem:[#allocation7 + $0x188] sm:$0xff]
    %v5024 = vld [vmem:[#allocation7 + $0x190] sm:$0xff]
    %v5025 = vld [vmem:[#allocation7 + $0x198] sm:$0xff]
    %v5026 = vld [vmem:[#allocation7 + $0x1a0] sm:$0xff]
    %v5027 = vld [vmem:[#allocation7 + $0x1a8] sm:$0xff]
    %v5028 = vld [vmem:[#allocation7 + $0x1b0] sm:$0xff]
    %v5029 = vld [vmem:[#allocation7 + $0x1b8] sm:$0xff]
    %v5030 = vld [vmem:[#allocation7 + $0x1c0] sm:$0xff]
    %v5031 = vld [vmem:[#allocation7 + $0x1c8] sm:$0xff]
    %v5032 = vld [vmem:[#allocation7 + $0x1d0] sm:$0xff]
    %v5033 = vld [vmem:[#allocation7 + $0x1d8] sm:$0xff]
    %v5034 = vld [vmem:[#allocation7 + $0x1e0] sm:$0xff]
    %v5035 = vld [vmem:[#allocation7 + $0x1e8] sm:$0xff]
    %v5036 = vld [vmem:[#allocation7 + $0x1f0] sm:$0xff]
    %v5037 = vld [vmem:[#allocation7 + $0x1f8] sm:$0xff]
    %v5038 = vld [vmem:[#allocation7 + $0x200] sm:$0xff]
    %v5039 = vld [vmem:[#allocation7 + $0x208] sm:$0xff]
    %v5040 = vld [vmem:[#allocation7 + $0x210] sm:$0xff]
    %v5041 = vld [vmem:[#allocation7 + $0x218] sm:$0xff]
    %v5042 = vld [vmem:[#allocation7 + $0x220] sm:$0xff]
    %v5043 = vld [vmem:[#allocation7 + $0x228] sm:$0xff]
    %v5044 = vld [vmem:[#allocation7 + $0x230] sm:$0xff]
    %v5045 = vld [vmem:[#allocation7 + $0x238] sm:$0xff]
    %v5046 = vld [vmem:[#allocation7 + $0x240] sm:$0xff]
    %v5047 = vld [vmem:[#allocation7 + $0x248] sm:$0xff]
    %v5048 = vld [vmem:[#allocation7 + $0x250] sm:$0xff]
    %v5049 = vld [vmem:[#allocation7 + $0x258] sm:$0xff]
    %v5050 = vld [vmem:[#allocation7 + $0x260] sm:$0xff]
    %v5051 = vld [vmem:[#allocation7 + $0x268] sm:$0xff]
    %v5052 = vld [vmem:[#allocation7 + $0x270] sm:$0xff]
    %v5053 = vld [vmem:[#allocation7 + $0x278] sm:$0xff]
    %v5054 = vld [vmem:[#allocation7 + $0x280] sm:$0xff]
    %v5055 = vld [vmem:[#allocation7 + $0x288] sm:$0xff]
    %v5056 = vld [vmem:[#allocation7 + $0x290] sm:$0xff]
    %v5057 = vld [vmem:[#allocation7 + $0x298] sm:$0xff]
    %v5058 = vld [vmem:[#allocation7 + $0x2a0] sm:$0xff]
    %v5059 = vld [vmem:[#allocation7 + $0x2a8] sm:$0xff]
    %v5060 = vld [vmem:[#allocation7 + $0x2b0] sm:$0xff]
    %v5061 = vld [vmem:[#allocation7 + $0x2b8] sm:$0xff]
    %v5062 = vld [vmem:[#allocation7 + $0x2c0] sm:$0xff]
    %v5063 = vld [vmem:[#allocation7 + $0x2c8] sm:$0xff]
    %v5064 = vld [vmem:[#allocation7 + $0x2d0] sm:$0xff]
    %v5065 = vld [vmem:[#allocation7 + $0x2d8] sm:$0xff]
    %v5066 = vld [vmem:[#allocation7 + $0x2e0] sm:$0xff]
    %v5067 = vld [vmem:[#allocation7 + $0x2e8] sm:$0xff]
    %v5068 = vld [vmem:[#allocation7 + $0x2f0] sm:$0xff]
    %v5069 = vld [vmem:[#allocation7 + $0x2f8] sm:$0xff]
    %v5070 = vld [vmem:[#allocation7 + $0x300] sm:$0xff]
    %v5071 = vld [vmem:[#allocation7 + $0x308] sm:$0xff]
    %v5072 = vld [vmem:[#allocation7 + $0x310] sm:$0xff]
    %v5073 = vld [vmem:[#allocation7 + $0x318] sm:$0xff]
    %v5074 = vld [vmem:[#allocation7 + $0x320] sm:$0xff]
    %v5075 = vld [vmem:[#allocation7 + $0x328] sm:$0xff]
    %v5076 = vld [vmem:[#allocation7 + $0x330] sm:$0xff]
    %v5077 = vld [vmem:[#allocation7 + $0x338] sm:$0xff]
    %v5078 = vld [vmem:[#allocation7 + $0x340] sm:$0xff]
    %v5079 = vld [vmem:[#allocation7 + $0x348] sm:$0xff]
    %v5080 = vld [vmem:[#allocation7 + $0x350] sm:$0xff]
    %v5081 = vld [vmem:[#allocation7 + $0x358] sm:$0xff]
    %v5082 = vld [vmem:[#allocation7 + $0x360] sm:$0xff]
    %v5083 = vld [vmem:[#allocation7 + $0x368] sm:$0xff]
    %v5084 = vld [vmem:[#allocation7 + $0x370] sm:$0xff]
    %v5085 = vld [vmem:[#allocation7 + $0x378] sm:$0xff]
    %v5086 = vld [vmem:[#allocation7 + $0x380] sm:$0xff]
    %v5087 = vld [vmem:[#allocation7 + $0x388] sm:$0xff]
    %v5088 = vld [vmem:[#allocation7 + $0x390] sm:$0xff]
    %v5089 = vld [vmem:[#allocation7 + $0x398] sm:$0xff]
    %v5090 = vld [vmem:[#allocation7 + $0x3a0] sm:$0xff]
    %v5091 = vld [vmem:[#allocation7 + $0x3a8] sm:$0xff]
    %v5092 = vld [vmem:[#allocation7 + $0x3b0] sm:$0xff]
    %v5093 = vld [vmem:[#allocation7 + $0x3b8] sm:$0xff]
    %v5094 = vld [vmem:[#allocation7 + $0x3c0] sm:$0xff]
    %v5095 = vld [vmem:[#allocation7 + $0x3c8] sm:$0xff]
    %v5096 = vld [vmem:[#allocation7 + $0x3d0] sm:$0xff]
    %v5097 = vld [vmem:[#allocation7 + $0x3d8] sm:$0xff]
    %v5098 = vld [vmem:[#allocation7 + $0x3e0] sm:$0xff]
    %v5099 = vld [vmem:[#allocation7 + $0x3e8] sm:$0xff]
    %v5100 = vld [vmem:[#allocation7 + $0x3f0] sm:$0xff]
    %v5101 = vld [vmem:[#allocation7 + $0x3f8] sm:$0xff]
    %v5102 = vld [vmem:[%s6] sm:$0xf]
    %v5104 = vlaneseq
    %v5105 = vshrl.u32 %v5104, 7
    %v5106 = vsub.s32 0, %v5105
    %v5107 = vrot.slane %v5102, %v5106
    %v5108 = vlaneseq
    %v5109 = vshrl.u32 %v5108, 7
    %v5110 = vsub.s32 1, %v5109
    %v5111 = vrot.slane %v5102, %v5110
    %v5112 = vlaneseq
    %v5113 = vshrl.u32 %v5112, 7
    %v5114 = vsub.s32 2, %v5113
    %v5115 = vrot.slane %v5102, %v5114
    %v5116 = vlaneseq
    %v5117 = vshrl.u32 %v5116, 7
    %v5118 = vsub.s32 3, %v5117
    %v5119 = vrot.slane %v5102, %v5118
    %v5252 = vunpack.c.l.b16 %v4974
    %v5253 = vunpack.c.h.b16 %v4974
    %v5254 = vunpack.c.l.b16 %v4975
    %v5255 = vunpack.c.h.b16 %v4975
    %v5256 = vunpack.c.l.b16 %v4976
    %v5257 = vunpack.c.h.b16 %v4976
    %v5258 = vunpack.c.l.b16 %v4977
    %v5259 = vunpack.c.h.b16 %v4977
    %v5260 = vunpack.c.l.b16 %v4978
    %v5261 = vunpack.c.h.b16 %v4978
    %v5262 = vunpack.c.l.b16 %v4979
    %v5263 = vunpack.c.h.b16 %v4979
    %v5264 = vunpack.c.l.b16 %v4980
    %v5265 = vunpack.c.h.b16 %v4980
    %v5266 = vunpack.c.l.b16 %v4981
    %v5267 = vunpack.c.h.b16 %v4981
    %v5268 = vunpack.c.l.b16 %v4982
    %v5269 = vunpack.c.h.b16 %v4982
    %v5270 = vunpack.c.l.b16 %v4983
    %v5271 = vunpack.c.h.b16 %v4983
    %v5272 = vunpack.c.l.b16 %v4984
    %v5273 = vunpack.c.h.b16 %v4984
    %v5274 = vunpack.c.l.b16 %v4985
    %v5275 = vunpack.c.h.b16 %v4985
    %v5276 = vunpack.c.l.b16 %v4986
    %v5277 = vunpack.c.h.b16 %v4986
    %v5278 = vunpack.c.l.b16 %v4987
    %v5279 = vunpack.c.h.b16 %v4987
    %v5280 = vunpack.c.l.b16 %v4988
    %v5281 = vunpack.c.h.b16 %v4988
    %v5282 = vunpack.c.l.b16 %v4989
    %v5283 = vunpack.c.h.b16 %v4989
    %v5284 = vunpack.c.l.b16 %v4990
    %v5285 = vunpack.c.h.b16 %v4990
    %v5286 = vunpack.c.l.b16 %v4991
    %v5287 = vunpack.c.h.b16 %v4991
    %v5288 = vunpack.c.l.b16 %v4992
    %v5289 = vunpack.c.h.b16 %v4992
    %v5290 = vunpack.c.l.b16 %v4993
    %v5291 = vunpack.c.h.b16 %v4993
    %v5292 = vunpack.c.l.b16 %v4994
    %v5293 = vunpack.c.h.b16 %v4994
    %v5294 = vunpack.c.l.b16 %v4995
    %v5295 = vunpack.c.h.b16 %v4995
    %v5296 = vunpack.c.l.b16 %v4996
    %v5297 = vunpack.c.h.b16 %v4996
    %v5298 = vunpack.c.l.b16 %v4997
    %v5299 = vunpack.c.h.b16 %v4997
    %v5300 = vunpack.c.l.b16 %v4998
    %v5301 = vunpack.c.h.b16 %v4998
    %v5302 = vunpack.c.l.b16 %v4999
    %v5303 = vunpack.c.h.b16 %v4999
    %v5304 = vunpack.c.l.b16 %v5000
    %v5305 = vunpack.c.h.b16 %v5000
    %v5306 = vunpack.c.l.b16 %v5001
    %v5307 = vunpack.c.h.b16 %v5001
    %v5308 = vunpack.c.l.b16 %v5002
    %v5309 = vunpack.c.h.b16 %v5002
    %v5310 = vunpack.c.l.b16 %v5003
    %v5311 = vunpack.c.h.b16 %v5003
    %v5312 = vunpack.c.l.b16 %v5004
    %v5313 = vunpack.c.h.b16 %v5004
    %v5314 = vunpack.c.l.b16 %v5005
    %v5315 = vunpack.c.h.b16 %v5005
    %v5316 = vunpack.c.l.b16 %v5006
    %v5317 = vunpack.c.h.b16 %v5006
    %v5318 = vunpack.c.l.b16 %v5007
    %v5319 = vunpack.c.h.b16 %v5007
    %v5320 = vunpack.c.l.b16 %v5008
    %v5321 = vunpack.c.h.b16 %v5008
    %v5322 = vunpack.c.l.b16 %v5009
    %v5323 = vunpack.c.h.b16 %v5009
    %v5324 = vunpack.c.l.b16 %v5010
    %v5325 = vunpack.c.h.b16 %v5010
    %v5326 = vunpack.c.l.b16 %v5011
    %v5327 = vunpack.c.h.b16 %v5011
    %v5328 = vunpack.c.l.b16 %v5012
    %v5329 = vunpack.c.h.b16 %v5012
    %v5330 = vunpack.c.l.b16 %v5013
    %v5331 = vunpack.c.h.b16 %v5013
    %v5332 = vunpack.c.l.b16 %v5014
    %v5333 = vunpack.c.h.b16 %v5014
    %v5334 = vunpack.c.l.b16 %v5015
    %v5335 = vunpack.c.h.b16 %v5015
    %v5336 = vunpack.c.l.b16 %v5016
    %v5337 = vunpack.c.h.b16 %v5016
    %v5338 = vunpack.c.l.b16 %v5017
    %v5339 = vunpack.c.h.b16 %v5017
    %v5340 = vunpack.c.l.b16 %v5018
    %v5341 = vunpack.c.h.b16 %v5018
    %v5342 = vunpack.c.l.b16 %v5019
    %v5343 = vunpack.c.h.b16 %v5019
    %v5344 = vunpack.c.l.b16 %v5020
    %v5345 = vunpack.c.h.b16 %v5020
    %v5346 = vunpack.c.l.b16 %v5021
    %v5347 = vunpack.c.h.b16 %v5021
    %v5348 = vunpack.c.l.b16 %v5022
    %v5349 = vunpack.c.h.b16 %v5022
    %v5350 = vunpack.c.l.b16 %v5023
    %v5351 = vunpack.c.h.b16 %v5023
    %v5352 = vunpack.c.l.b16 %v5024
    %v5353 = vunpack.c.h.b16 %v5024
    %v5354 = vunpack.c.l.b16 %v5025
    %v5355 = vunpack.c.h.b16 %v5025
    %v5356 = vunpack.c.l.b16 %v5026
    %v5357 = vunpack.c.h.b16 %v5026
    %v5358 = vunpack.c.l.b16 %v5027
    %v5359 = vunpack.c.h.b16 %v5027
    %v5360 = vunpack.c.l.b16 %v5028
    %v5361 = vunpack.c.h.b16 %v5028
    %v5362 = vunpack.c.l.b16 %v5029
    %v5363 = vunpack.c.h.b16 %v5029
    %v5364 = vunpack.c.l.b16 %v5030
    %v5365 = vunpack.c.h.b16 %v5030
    %v5366 = vunpack.c.l.b16 %v5031
    %v5367 = vunpack.c.h.b16 %v5031
    %v5368 = vunpack.c.l.b16 %v5032
    %v5369 = vunpack.c.h.b16 %v5032
    %v5370 = vunpack.c.l.b16 %v5033
    %v5371 = vunpack.c.h.b16 %v5033
    %v5372 = vunpack.c.l.b16 %v5034
    %v5373 = vunpack.c.h.b16 %v5034
    %v5374 = vunpack.c.l.b16 %v5035
    %v5375 = vunpack.c.h.b16 %v5035
    %v5376 = vunpack.c.l.b16 %v5036
    %v5377 = vunpack.c.h.b16 %v5036
    %v5378 = vunpack.c.l.b16 %v5037
    %v5379 = vunpack.c.h.b16 %v5037
    %v5380 = vunpack.c.l.b16 %v5038
    %v5381 = vunpack.c.h.b16 %v5038
    %v5382 = vunpack.c.l.b16 %v5039
    %v5383 = vunpack.c.h.b16 %v5039
    %v5384 = vunpack.c.l.b16 %v5040
    %v5385 = vunpack.c.h.b16 %v5040
    %v5386 = vunpack.c.l.b16 %v5041
    %v5387 = vunpack.c.h.b16 %v5041
    %v5388 = vunpack.c.l.b16 %v5042
    %v5389 = vunpack.c.h.b16 %v5042
    %v5390 = vunpack.c.l.b16 %v5043
    %v5391 = vunpack.c.h.b16 %v5043
    %v5392 = vunpack.c.l.b16 %v5044
    %v5393 = vunpack.c.h.b16 %v5044
    %v5394 = vunpack.c.l.b16 %v5045
    %v5395 = vunpack.c.h.b16 %v5045
    %v5396 = vunpack.c.l.b16 %v5046
    %v5397 = vunpack.c.h.b16 %v5046
    %v5398 = vunpack.c.l.b16 %v5047
    %v5399 = vunpack.c.h.b16 %v5047
    %v5400 = vunpack.c.l.b16 %v5048
    %v5401 = vunpack.c.h.b16 %v5048
    %v5402 = vunpack.c.l.b16 %v5049
    %v5403 = vunpack.c.h.b16 %v5049
    %v5404 = vunpack.c.l.b16 %v5050
    %v5405 = vunpack.c.h.b16 %v5050
    %v5406 = vunpack.c.l.b16 %v5051
    %v5407 = vunpack.c.h.b16 %v5051
    %v5408 = vunpack.c.l.b16 %v5052
    %v5409 = vunpack.c.h.b16 %v5052
    %v5410 = vunpack.c.l.b16 %v5053
    %v5411 = vunpack.c.h.b16 %v5053
    %v5412 = vunpack.c.l.b16 %v5054
    %v5413 = vunpack.c.h.b16 %v5054
    %v5414 = vunpack.c.l.b16 %v5055
    %v5415 = vunpack.c.h.b16 %v5055
    %v5416 = vunpack.c.l.b16 %v5056
    %v5417 = vunpack.c.h.b16 %v5056
    %v5418 = vunpack.c.l.b16 %v5057
    %v5419 = vunpack.c.h.b16 %v5057
    %v5420 = vunpack.c.l.b16 %v5058
    %v5421 = vunpack.c.h.b16 %v5058
    %v5422 = vunpack.c.l.b16 %v5059
    %v5423 = vunpack.c.h.b16 %v5059
    %v5424 = vunpack.c.l.b16 %v5060
    %v5425 = vunpack.c.h.b16 %v5060
    %v5426 = vunpack.c.l.b16 %v5061
    %v5427 = vunpack.c.h.b16 %v5061
    %v5428 = vunpack.c.l.b16 %v5062
    %v5429 = vunpack.c.h.b16 %v5062
    %v5430 = vunpack.c.l.b16 %v5063
    %v5431 = vunpack.c.h.b16 %v5063
    %v5432 = vunpack.c.l.b16 %v5064
    %v5433 = vunpack.c.h.b16 %v5064
    %v5434 = vunpack.c.l.b16 %v5065
    %v5435 = vunpack.c.h.b16 %v5065
    %v5436 = vunpack.c.l.b16 %v5066
    %v5437 = vunpack.c.h.b16 %v5066
    %v5438 = vunpack.c.l.b16 %v5067
    %v5439 = vunpack.c.h.b16 %v5067
    %v5440 = vunpack.c.l.b16 %v5068
    %v5441 = vunpack.c.h.b16 %v5068
    %v5442 = vunpack.c.l.b16 %v5069
    %v5443 = vunpack.c.h.b16 %v5069
    %v5444 = vunpack.c.l.b16 %v5070
    %v5445 = vunpack.c.h.b16 %v5070
    %v5446 = vunpack.c.l.b16 %v5071
    %v5447 = vunpack.c.h.b16 %v5071
    %v5448 = vunpack.c.l.b16 %v5072
    %v5449 = vunpack.c.h.b16 %v5072
    %v5450 = vunpack.c.l.b16 %v5073
    %v5451 = vunpack.c.h.b16 %v5073
    %v5452 = vunpack.c.l.b16 %v5074
    %v5453 = vunpack.c.h.b16 %v5074
    %v5454 = vunpack.c.l.b16 %v5075
    %v5455 = vunpack.c.h.b16 %v5075
    %v5456 = vunpack.c.l.b16 %v5076
    %v5457 = vunpack.c.h.b16 %v5076
    %v5458 = vunpack.c.l.b16 %v5077
    %v5459 = vunpack.c.h.b16 %v5077
    %v5460 = vunpack.c.l.b16 %v5078
    %v5461 = vunpack.c.h.b16 %v5078
    %v5462 = vunpack.c.l.b16 %v5079
    %v5463 = vunpack.c.h.b16 %v5079
    %v5464 = vunpack.c.l.b16 %v5080
    %v5465 = vunpack.c.h.b16 %v5080
    %v5466 = vunpack.c.l.b16 %v5081
    %v5467 = vunpack.c.h.b16 %v5081
    %v5468 = vunpack.c.l.b16 %v5082
    %v5469 = vunpack.c.h.b16 %v5082
    %v5470 = vunpack.c.l.b16 %v5083
    %v5471 = vunpack.c.h.b16 %v5083
    %v5472 = vunpack.c.l.b16 %v5084
    %v5473 = vunpack.c.h.b16 %v5084
    %v5474 = vunpack.c.l.b16 %v5085
    %v5475 = vunpack.c.h.b16 %v5085
    %v5476 = vunpack.c.l.b16 %v5086
    %v5477 = vunpack.c.h.b16 %v5086
    %v5478 = vunpack.c.l.b16 %v5087
    %v5479 = vunpack.c.h.b16 %v5087
    %v5480 = vunpack.c.l.b16 %v5088
    %v5481 = vunpack.c.h.b16 %v5088
    %v5482 = vunpack.c.l.b16 %v5089
    %v5483 = vunpack.c.h.b16 %v5089
    %v5484 = vunpack.c.l.b16 %v5090
    %v5485 = vunpack.c.h.b16 %v5090
    %v5486 = vunpack.c.l.b16 %v5091
    %v5487 = vunpack.c.h.b16 %v5091
    %v5488 = vunpack.c.l.b16 %v5092
    %v5489 = vunpack.c.h.b16 %v5092
    %v5490 = vunpack.c.l.b16 %v5093
    %v5491 = vunpack.c.h.b16 %v5093
    %v5492 = vunpack.c.l.b16 %v5094
    %v5493 = vunpack.c.h.b16 %v5094
    %v5494 = vunpack.c.l.b16 %v5095
    %v5495 = vunpack.c.h.b16 %v5095
    %v5496 = vunpack.c.l.b16 %v5096
    %v5497 = vunpack.c.h.b16 %v5096
    %v5498 = vunpack.c.l.b16 %v5097
    %v5499 = vunpack.c.h.b16 %v5097
    %v5500 = vunpack.c.l.b16 %v5098
    %v5501 = vunpack.c.h.b16 %v5098
    %v5502 = vunpack.c.l.b16 %v5099
    %v5503 = vunpack.c.h.b16 %v5099
    %v5504 = vunpack.c.l.b16 %v5100
    %v5505 = vunpack.c.h.b16 %v5100
    %v5506 = vunpack.c.l.b16 %v5101
    %v5507 = vunpack.c.h.b16 %v5101
    %v5508 = vpack.c.b16 %v5256, %v5252
    %v5509 = vpack.c.b16 %v5257, %v5253
    %v5510 = vpack.c.b16 %v5258, %v5254
    %v5511 = vpack.c.b16 %v5259, %v5255
    %v5512 = vpack.c.b16 %v5264, %v5260
    %v5513 = vpack.c.b16 %v5265, %v5261
    %v5514 = vpack.c.b16 %v5266, %v5262
    %v5515 = vpack.c.b16 %v5267, %v5263
    %v5516 = vpack.c.b16 %v5272, %v5268
    %v5517 = vpack.c.b16 %v5273, %v5269
    %v5518 = vpack.c.b16 %v5274, %v5270
    %v5519 = vpack.c.b16 %v5275, %v5271
    %v5520 = vpack.c.b16 %v5280, %v5276
    %v5521 = vpack.c.b16 %v5281, %v5277
    %v5522 = vpack.c.b16 %v5282, %v5278
    %v5523 = vpack.c.b16 %v5283, %v5279
    %v5524 = vpack.c.b16 %v5288, %v5284
    %v5525 = vpack.c.b16 %v5289, %v5285
    %v5526 = vpack.c.b16 %v5290, %v5286
    %v5527 = vpack.c.b16 %v5291, %v5287
    %v5528 = vpack.c.b16 %v5296, %v5292
    %v5529 = vpack.c.b16 %v5297, %v5293
    %v5530 = vpack.c.b16 %v5298, %v5294
    %v5531 = vpack.c.b16 %v5299, %v5295
    %v5532 = vpack.c.b16 %v5304, %v5300
    %v5533 = vpack.c.b16 %v5305, %v5301
    %v5534 = vpack.c.b16 %v5306, %v5302
    %v5535 = vpack.c.b16 %v5307, %v5303
    %v5536 = vpack.c.b16 %v5312, %v5308
    %v5537 = vpack.c.b16 %v5313, %v5309
    %v5538 = vpack.c.b16 %v5314, %v5310
    %v5539 = vpack.c.b16 %v5315, %v5311
    %v5540 = vpack.c.b16 %v5320, %v5316
    %v5541 = vpack.c.b16 %v5321, %v5317
    %v5542 = vpack.c.b16 %v5322, %v5318
    %v5543 = vpack.c.b16 %v5323, %v5319
    %v5544 = vpack.c.b16 %v5328, %v5324
    %v5545 = vpack.c.b16 %v5329, %v5325
    %v5546 = vpack.c.b16 %v5330, %v5326
    %v5547 = vpack.c.b16 %v5331, %v5327
    %v5548 = vpack.c.b16 %v5336, %v5332
    %v5549 = vpack.c.b16 %v5337, %v5333
    %v5550 = vpack.c.b16 %v5338, %v5334
    %v5551 = vpack.c.b16 %v5339, %v5335
    %v5552 = vpack.c.b16 %v5344, %v5340
    %v5553 = vpack.c.b16 %v5345, %v5341
    %v5554 = vpack.c.b16 %v5346, %v5342
    %v5555 = vpack.c.b16 %v5347, %v5343
    %v5556 = vpack.c.b16 %v5352, %v5348
    %v5557 = vpack.c.b16 %v5353, %v5349
    %v5558 = vpack.c.b16 %v5354, %v5350
    %v5559 = vpack.c.b16 %v5355, %v5351
    %v5560 = vpack.c.b16 %v5360, %v5356
    %v5561 = vpack.c.b16 %v5361, %v5357
    %v5562 = vpack.c.b16 %v5362, %v5358
    %v5563 = vpack.c.b16 %v5363, %v5359
    %v5564 = vpack.c.b16 %v5368, %v5364
    %v5565 = vpack.c.b16 %v5369, %v5365
    %v5566 = vpack.c.b16 %v5370, %v5366
    %v5567 = vpack.c.b16 %v5371, %v5367
    %v5568 = vpack.c.b16 %v5376, %v5372
    %v5569 = vpack.c.b16 %v5377, %v5373
    %v5570 = vpack.c.b16 %v5378, %v5374
    %v5571 = vpack.c.b16 %v5379, %v5375
    %v5572 = vpack.c.b16 %v5384, %v5380
    %v5573 = vpack.c.b16 %v5385, %v5381
    %v5574 = vpack.c.b16 %v5386, %v5382
    %v5575 = vpack.c.b16 %v5387, %v5383
    %v5576 = vpack.c.b16 %v5392, %v5388
    %v5577 = vpack.c.b16 %v5393, %v5389
    %v5578 = vpack.c.b16 %v5394, %v5390
    %v5579 = vpack.c.b16 %v5395, %v5391
    %v5580 = vpack.c.b16 %v5400, %v5396
    %v5581 = vpack.c.b16 %v5401, %v5397
    %v5582 = vpack.c.b16 %v5402, %v5398
    %v5583 = vpack.c.b16 %v5403, %v5399
    %v5584 = vpack.c.b16 %v5408, %v5404
    %v5585 = vpack.c.b16 %v5409, %v5405
    %v5586 = vpack.c.b16 %v5410, %v5406
    %v5587 = vpack.c.b16 %v5411, %v5407
    %v5588 = vpack.c.b16 %v5416, %v5412
    %v5589 = vpack.c.b16 %v5417, %v5413
    %v5590 = vpack.c.b16 %v5418, %v5414
    %v5591 = vpack.c.b16 %v5419, %v5415
    %v5592 = vpack.c.b16 %v5424, %v5420
    %v5593 = vpack.c.b16 %v5425, %v5421
    %v5594 = vpack.c.b16 %v5426, %v5422
    %v5595 = vpack.c.b16 %v5427, %v5423
    %v5596 = vpack.c.b16 %v5432, %v5428
    %v5597 = vpack.c.b16 %v5433, %v5429
    %v5598 = vpack.c.b16 %v5434, %v5430
    %v5599 = vpack.c.b16 %v5435, %v5431
    %v5600 = vpack.c.b16 %v5440, %v5436
    %v5601 = vpack.c.b16 %v5441, %v5437
    %v5602 = vpack.c.b16 %v5442, %v5438
    %v5603 = vpack.c.b16 %v5443, %v5439
    %v5604 = vpack.c.b16 %v5448, %v5444
    %v5605 = vpack.c.b16 %v5449, %v5445
    %v5606 = vpack.c.b16 %v5450, %v5446
    %v5607 = vpack.c.b16 %v5451, %v5447
    %v5608 = vpack.c.b16 %v5456, %v5452
    %v5609 = vpack.c.b16 %v5457, %v5453
    %v5610 = vpack.c.b16 %v5458, %v5454
    %v5611 = vpack.c.b16 %v5459, %v5455
    %v5612 = vpack.c.b16 %v5464, %v5460
    %v5613 = vpack.c.b16 %v5465, %v5461
    %v5614 = vpack.c.b16 %v5466, %v5462
    %v5615 = vpack.c.b16 %v5467, %v5463
    %v5616 = vpack.c.b16 %v5472, %v5468
    %v5617 = vpack.c.b16 %v5473, %v5469
    %v5618 = vpack.c.b16 %v5474, %v5470
    %v5619 = vpack.c.b16 %v5475, %v5471
    %v5620 = vpack.c.b16 %v5480, %v5476
    %v5621 = vpack.c.b16 %v5481, %v5477
    %v5622 = vpack.c.b16 %v5482, %v5478
    %v5623 = vpack.c.b16 %v5483, %v5479
    %v5624 = vpack.c.b16 %v5488, %v5484
    %v5625 = vpack.c.b16 %v5489, %v5485
    %v5626 = vpack.c.b16 %v5490, %v5486
    %v5627 = vpack.c.b16 %v5491, %v5487
    %v5628 = vpack.c.b16 %v5496, %v5492
    %v5629 = vpack.c.b16 %v5497, %v5493
    %v5630 = vpack.c.b16 %v5498, %v5494
    %v5631 = vpack.c.b16 %v5499, %v5495
    %v5632 = vpack.c.b16 %v5504, %v5500
    %v5633 = vpack.c.b16 %v5505, %v5501
    %v5634 = vpack.c.b16 %v5506, %v5502
    %v5635 = vpack.c.b16 %v5507, %v5503
    %5764 = vmatprep.subr.bf16.mxu0 %v5509
    %5765 = vmatpush1.bf16.msra.mxu0 %v5508
    %5766 = vmatprep.subr.bf16.mxu0 %v5513
    %5767 = vmatpush1.bf16.msra.mxu0 %v5512
    %5768 = vmatprep.subr.bf16.mxu0 %v5517
    %5769 = vmatpush1.bf16.msra.mxu0 %v5516
    %5770 = vmatprep.subr.bf16.mxu0 %v5521
    %5771 = vmatpush1.bf16.msra.mxu0 %v5520
    %5772 = vmatprep.subr.bf16.mxu0 %v5525
    %5773 = vmatpush1.bf16.msra.mxu0 %v5524
    %5774 = vmatprep.subr.bf16.mxu0 %v5529
    %5775 = vmatpush1.bf16.msra.mxu0 %v5528
    %5776 = vmatprep.subr.bf16.mxu0 %v5533
    %5777 = vmatpush1.bf16.msra.mxu0 %v5532
    %5778 = vmatprep.subr.bf16.mxu0 %v5537
    %5779 = vmatpush1.bf16.msra.mxu0 %v5536
    %5780 = vmatprep.subr.bf16.mxu0 %v5541
    %5781 = vmatpush1.bf16.msra.mxu0 %v5540
    %5782 = vmatprep.subr.bf16.mxu0 %v5545
    %5783 = vmatpush1.bf16.msra.mxu0 %v5544
    %5784 = vmatprep.subr.bf16.mxu0 %v5549
    %5785 = vmatpush1.bf16.msra.mxu0 %v5548
    %5786 = vmatprep.subr.bf16.mxu0 %v5553
    %5787 = vmatpush1.bf16.msra.mxu0 %v5552
    %5788 = vmatprep.subr.bf16.mxu0 %v5557
    %5789 = vmatpush1.bf16.msra.mxu0 %v5556
    %5790 = vmatprep.subr.bf16.mxu0 %v5561
    %5791 = vmatpush1.bf16.msra.mxu0 %v5560
    %5792 = vmatprep.subr.bf16.mxu0 %v5565
    %5793 = vmatpush1.bf16.msra.mxu0 %v5564
    %5794 = vmatprep.subr.bf16.mxu0 %v5569
    %5795 = vmatpush1.bf16.msra.mxu0 %v5568
    %5796 = vmatprep.mubr.bf16.mxu0 %v4943
    %5797 = vmatmul.mubr.bf16.gmra.mrb[0].mxu0 %v4942
    %v5798 = vpop.f32.mrb[0].mxu0
    %v5799 = vadd.f32 %v5107, %v5798
    %v5800 = vpop.f32.mrb[0].mxu0
    %v5801 = vadd.f32 %v5111, %v5800
    %v5802 = vpop.f32.mrb[0].mxu0
    %v5803 = vadd.f32 %v5107, %v5802
    %v5804 = vpop.f32.mrb[0].mxu0
    %v5805 = vadd.f32 %v5111, %v5804
    %5806 = vmatprep.mubr.bf16.mxu0 %v4947
    %5807 = vmatmul.mubr.bf16.gmra.mrb[0].mxu0 %v4946
    %v5808 = vpop.f32.mrb[0].mxu0
    %v5809 = vadd.f32 %v5107, %v5808
    %v5810 = vpop.f32.mrb[0].mxu0
    %v5811 = vadd.f32 %v5111, %v5810
    %v5812 = vpop.f32.mrb[0].mxu0
    %v5813 = vadd.f32 %v5107, %v5812
    %v5814 = vpop.f32.mrb[0].mxu0
    %v5815 = vadd.f32 %v5111, %v5814
    %5816 = vmatprep.mubr.bf16.mxu0 %v4951
    %5817 = vmatmul.mubr.bf16.gmra.mrb[0].mxu0 %v4950
    %v5818 = vpop.f32.mrb[0].mxu0
    %v5819 = vadd.f32 %v5107, %v5818
    %v5820 = vpop.f32.mrb[0].mxu0
    %v5821 = vadd.f32 %v5111, %v5820
    %v5822 = vpop.f32.mrb[0].mxu0
    %v5823 = vadd.f32 %v5107, %v5822
    %v5824 = vpop.f32.mrb[0].mxu0
    %v5825 = vadd.f32 %v5111, %v5824
    %5826 = vmatprep.mubr.bf16.mxu0 %v4955
    %5827 = vmatmul.mubr.bf16.gmra.mrb[0].mxu0 %v4954
    %v5828 = vpop.f32.mrb[0].mxu0
    %v5829 = vadd.f32 %v5107, %v5828
    %v5830 = vpop.f32.mrb[0].mxu0
    %v5831 = vadd.f32 %v5111, %v5830
    %v5832 = vpop.f32.mrb[0].mxu0
    %v5833 = vadd.f32 %v5107, %v5832
    %v5834 = vpop.f32.mrb[0].mxu0
    %v5835 = vadd.f32 %v5111, %v5834
    %5836 = vmatprep.mubr.bf16.mxu0 %v4959
    %5837 = vmatmul.mubr.bf16.gmra.mrb[0].mxu0 %v4958
    %v5838 = vpop.f32.mrb[0].mxu0
    %v5839 = vadd.f32 %v5107, %v5838
    %v5840 = vpop.f32.mrb[0].mxu0
    %v5841 = vadd.f32 %v5111, %v5840
    %v5842 = vpop.f32.mrb[0].mxu0
    %v5843 = vadd.f32 %v5107, %v5842
    %v5844 = vpop.f32.mrb[0].mxu0
    %v5845 = vadd.f32 %v5111, %v5844
    %5846 = vmatprep.mubr.bf16.mxu0 %v4963
    %5847 = vmatmul.mubr.bf16.gmra.mrb[0].mxu0 %v4962
    %v5848 = vpop.f32.mrb[0].mxu0
    %v5849 = vadd.f32 %v5107, %v5848
    %v5850 = vpop.f32.mrb[0].mxu0
    %v5851 = vadd.f32 %v5111, %v5850
    %v5852 = vpop.f32.mrb[0].mxu0
    %v5853 = vadd.f32 %v5107, %v5852
    %v5854 = vpop.f32.mrb[0].mxu0
    %v5855 = vadd.f32 %v5111, %v5854
    %5856 = vmatprep.mubr.bf16.mxu0 %v4967
    %5857 = vmatmul.mubr.bf16.gmra.mrb[0].mxu0 %v4966
    %v5858 = vpop.f32.mrb[0].mxu0
    %v5859 = vadd.f32 %v5107, %v5858
    %v5860 = vpop.f32.mrb[0].mxu0
    %v5861 = vadd.f32 %v5111, %v5860
    %v5862 = vpop.f32.mrb[0].mxu0
    %v5863 = vadd.f32 %v5107, %v5862
    %v5864 = vpop.f32.mrb[0].mxu0
    %v5865 = vadd.f32 %v5111, %v5864
    %5866 = vmatprep.mubr.bf16.mxu0 %v4971
    %5867 = vmatmul.mubr.bf16.gmra.mrb[0].mxu0 %v4970
    %v5868 = vpop.f32.mrb[0].mxu0
    %v5869 = vadd.f32 %v5107, %v5868
    %v5870 = vpop.f32.mrb[0].mxu0
    %v5871 = vadd.f32 %v5111, %v5870
    %v5872 = vpop.f32.mrb[0].mxu0
    %v5873 = vadd.f32 %v5107, %v5872
    %v5874 = vpop.f32.mrb[0].mxu0
    %v5875 = vadd.f32 %v5111, %v5874
    %5876 = vdwg.mxu0
    %5877 = vmatprep.subr.bf16.mxu0 %v5573
    %5878 = vmatpush1.bf16.msra.mxu0 %v5572
    %5879 = vmatprep.subr.bf16.mxu0 %v5577
    %5880 = vmatpush1.bf16.msra.mxu0 %v5576
    %5881 = vmatprep.subr.bf16.mxu0 %v5581
    %5882 = vmatpush1.bf16.msra.mxu0 %v5580
    %5883 = vmatprep.subr.bf16.mxu0 %v5585
    %5884 = vmatpush1.bf16.msra.mxu0 %v5584
    %5885 = vmatprep.subr.bf16.mxu0 %v5589
    %5886 = vmatpush1.bf16.msra.mxu0 %v5588
    %5887 = vmatprep.subr.bf16.mxu0 %v5593
    %5888 = vmatpush1.bf16.msra.mxu0 %v5592
    %5889 = vmatprep.subr.bf16.mxu0 %v5597
    %5890 = vmatpush1.bf16.msra.mxu0 %v5596
    %5891 = vmatprep.subr.bf16.mxu0 %v5601
    %5892 = vmatpush1.bf16.msra.mxu0 %v5600
    %5893 = vmatprep.subr.bf16.mxu0 %v5605
    %5894 = vmatpush1.bf16.msra.mxu0 %v5604
    %5895 = vmatprep.subr.bf16.mxu0 %v5609
    %5896 = vmatpush1.bf16.msra.mxu0 %v5608
    %5897 = vmatprep.subr.bf16.mxu0 %v5613
    %5898 = vmatpush1.bf16.msra.mxu0 %v5612
    %5899 = vmatprep.subr.bf16.mxu0 %v5617
    %5900 = vmatpush1.bf16.msra.mxu0 %v5616
    %5901 = vmatprep.subr.bf16.mxu0 %v5621
    %5902 = vmatpush1.bf16.msra.mxu0 %v5620
    %5903 = vmatprep.subr.bf16.mxu0 %v5625
    %5904 = vmatpush1.bf16.msra.mxu0 %v5624
    %5905 = vmatprep.subr.bf16.mxu0 %v5629
    %5906 = vmatpush1.bf16.msra.mxu0 %v5628
    %5907 = vmatprep.subr.bf16.mxu0 %v5633
    %5908 = vmatpush1.bf16.msra.mxu0 %v5632
    %5909 = vmatprep.mubr.bf16.mxu0 %v4945
    %5910 = vmatmul.mubr.bf16.gmra.mrb[0].mxu0 %v4944
    %v5911 = vpop.f32.mrb[0].mxu0
    %v5912 = vadd.f32 %v5799, %v5911
    %v5913 = vpop.f32.mrb[0].mxu0
    %v5914 = vadd.f32 %v5801, %v5913
    %v5915 = vpop.f32.mrb[0].mxu0
    %v5916 = vadd.f32 %v5803, %v5915
    %v5917 = vpop.f32.mrb[0].mxu0
    %v5918 = vadd.f32 %v5805, %v5917
    %5919 = vmatprep.mubr.bf16.mxu0 %v4949
    %5920 = vmatmul.mubr.bf16.gmra.mrb[0].mxu0 %v4948
    %v5921 = vpop.f32.mrb[0].mxu0
    %v5922 = vadd.f32 %v5809, %v5921
    %v5923 = vpop.f32.mrb[0].mxu0
    %v5924 = vadd.f32 %v5811, %v5923
    %v5925 = vpop.f32.mrb[0].mxu0
    %v5926 = vadd.f32 %v5813, %v5925
    %v5927 = vpop.f32.mrb[0].mxu0
    %v5928 = vadd.f32 %v5815, %v5927
    %5929 = vmatprep.mubr.bf16.mxu0 %v4953
    %5930 = vmatmul.mubr.bf16.gmra.mrb[0].mxu0 %v4952
    %v5931 = vpop.f32.mrb[0].mxu0
    %v5932 = vadd.f32 %v5819, %v5931
    %v5933 = vpop.f32.mrb[0].mxu0
    %v5934 = vadd.f32 %v5821, %v5933
    %v5935 = vpop.f32.mrb[0].mxu0
    %v5936 = vadd.f32 %v5823, %v5935
    %v5937 = vpop.f32.mrb[0].mxu0
    %v5938 = vadd.f32 %v5825, %v5937
    %5939 = vmatprep.mubr.bf16.mxu0 %v4957
    %5940 = vmatmul.mubr.bf16.gmra.mrb[0].mxu0 %v4956
    %v5941 = vpop.f32.mrb[0].mxu0
    %v5942 = vadd.f32 %v5829, %v5941
    %v5943 = vpop.f32.mrb[0].mxu0
    %v5944 = vadd.f32 %v5831, %v5943
    %v5945 = vpop.f32.mrb[0].mxu0
    %v5946 = vadd.f32 %v5833, %v5945
    %v5947 = vpop.f32.mrb[0].mxu0
    %v5948 = vadd.f32 %v5835, %v5947
    %5949 = vmatprep.mubr.bf16.mxu0 %v4961
    %5950 = vmatmul.mubr.bf16.gmra.mrb[0].mxu0 %v4960
    %v5951 = vpop.f32.mrb[0].mxu0
    %v5952 = vadd.f32 %v5839, %v5951
    %v5953 = vpop.f32.mrb[0].mxu0
    %v5954 = vadd.f32 %v5841, %v5953
    %v5955 = vpop.f32.mrb[0].mxu0
    %v5956 = vadd.f32 %v5843, %v5955
    %v5957 = vpop.f32.mrb[0].mxu0
    %v5958 = vadd.f32 %v5845, %v5957
    %5959 = vmatprep.mubr.bf16.mxu0 %v4965
    %5960 = vmatmul.mubr.bf16.gmra.mrb[0].mxu0 %v4964
    %v5961 = vpop.f32.mrb[0].mxu0
    %v5962 = vadd.f32 %v5849, %v5961
    %v5963 = vpop.f32.mrb[0].mxu0
    %v5964 = vadd.f32 %v5851, %v5963
    %v5965 = vpop.f32.mrb[0].mxu0
    %v5966 = vadd.f32 %v5853, %v5965
    %v5967 = vpop.f32.mrb[0].mxu0
    %v5968 = vadd.f32 %v5855, %v5967
    %5969 = vmatprep.mubr.bf16.mxu0 %v4969
    %5970 = vmatmul.mubr.bf16.gmra.mrb[0].mxu0 %v4968
    %v5971 = vpop.f32.mrb[0].mxu0
    %v5972 = vadd.f32 %v5859, %v5971
    %v5973 = vpop.f32.mrb[0].mxu0
    %v5974 = vadd.f32 %v5861, %v5973
    %v5975 = vpop.f32.mrb[0].mxu0
    %v5976 = vadd.f32 %v5863, %v5975
    %v5977 = vpop.f32.mrb[0].mxu0
    %v5978 = vadd.f32 %v5865, %v5977
    %5979 = vmatprep.mubr.bf16.mxu0 %v4973
    %5980 = vmatmul.mubr.bf16.gmra.mrb[0].mxu0 %v4972
    %v5981 = vpop.f32.mrb[0].mxu0
    %v5982 = vadd.f32 %v5869, %v5981
    %v5983 = vpop.f32.mrb[0].mxu0
    %v5984 = vadd.f32 %v5871, %v5983
    %v5985 = vpop.f32.mrb[0].mxu0
    %v5986 = vadd.f32 %v5873, %v5985
    %v5987 = vpop.f32.mrb[0].mxu0
    %v5988 = vadd.f32 %v5875, %v5987
    %5989 = vdwg.mxu0
    %5990 = vmatprep.subr.bf16.mxu0 %v5511
    %5991 = vmatpush1.bf16.msra.mxu0 %v5510
    %5992 = vmatprep.subr.bf16.mxu0 %v5515
    %5993 = vmatpush1.bf16.msra.mxu0 %v5514
    %5994 = vmatprep.subr.bf16.mxu0 %v5519
    %5995 = vmatpush1.bf16.msra.mxu0 %v5518
    %5996 = vmatprep.subr.bf16.mxu0 %v5523
    %5997 = vmatpush1.bf16.msra.mxu0 %v5522
    %5998 = vmatprep.subr.bf16.mxu0 %v5527
    %5999 = vmatpush1.bf16.msra.mxu0 %v5526
    %6000 = vmatprep.subr.bf16.mxu0 %v5531
    %6001 = vmatpush1.bf16.msra.mxu0 %v5530
    %6002 = vmatprep.subr.bf16.mxu0 %v5535
    %6003 = vmatpush1.bf16.msra.mxu0 %v5534
    %6004 = vmatprep.subr.bf16.mxu0 %v5539
    %6005 = vmatpush1.bf16.msra.mxu0 %v5538
    %6006 = vmatprep.subr.bf16.mxu0 %v5543
    %6007 = vmatpush1.bf16.msra.mxu0 %v5542
    %6008 = vmatprep.subr.bf16.mxu0 %v5547
    %6009 = vmatpush1.bf16.msra.mxu0 %v5546
    %6010 = vmatprep.subr.bf16.mxu0 %v5551
    %6011 = vmatpush1.bf16.msra.mxu0 %v5550
    %6012 = vmatprep.subr.bf16.mxu0 %v5555
    %6013 = vmatpush1.bf16.msra.mxu0 %v5554
    %6014 = vmatprep.subr.bf16.mxu0 %v5559
    %6015 = vmatpush1.bf16.msra.mxu0 %v5558
    %6016 = vmatprep.subr.bf16.mxu0 %v5563
    %6017 = vmatpush1.bf16.msra.mxu0 %v5562
    %6018 = vmatprep.subr.bf16.mxu0 %v5567
    %6019 = vmatpush1.bf16.msra.mxu0 %v5566
    %6020 = vmatprep.subr.bf16.mxu0 %v5571
    %6021 = vmatpush1.bf16.msra.mxu0 %v5570
    %6022 = vmatprep.mubr.bf16.mxu0 %v4943
    %6023 = vmatmul.mubr.bf16.gmra.mrb[0].mxu0 %v4942
    %v6024 = vpop.f32.mrb[0].mxu0
    %v6025 = vadd.f32 %v5115, %v6024
    %v6026 = vpop.f32.mrb[0].mxu0
    %v6027 = vadd.f32 %v5119, %v6026
    %v6028 = vpop.f32.mrb[0].mxu0
    %v6029 = vadd.f32 %v5115, %v6028
    %v6030 = vpop.f32.mrb[0].mxu0
    %v6031 = vadd.f32 %v5119, %v6030
    %6032 = vmatprep.mubr.bf16.mxu0 %v4947
    %6033 = vmatmul.mubr.bf16.gmra.mrb[0].mxu0 %v4946
    %v6034 = vpop.f32.mrb[0].mxu0
    %v6035 = vadd.f32 %v5115, %v6034
    %v6036 = vpop.f32.mrb[0].mxu0
    %v6037 = vadd.f32 %v5119, %v6036
    %v6038 = vpop.f32.mrb[0].mxu0
    %v6039 = vadd.f32 %v5115, %v6038
    %v6040 = vpop.f32.mrb[0].mxu0
    %v6041 = vadd.f32 %v5119, %v6040
    %6042 = vmatprep.mubr.bf16.mxu0 %v4951
    %6043 = vmatmul.mubr.bf16.gmra.mrb[0].mxu0 %v4950
    %v6044 = vpop.f32.mrb[0].mxu0
    %v6045 = vadd.f32 %v5115, %v6044
    %v6046 = vpop.f32.mrb[0].mxu0
    %v6047 = vadd.f32 %v5119, %v6046
    %v6048 = vpop.f32.mrb[0].mxu0
    %v6049 = vadd.f32 %v5115, %v6048
    %v6050 = vpop.f32.mrb[0].mxu0
    %v6051 = vadd.f32 %v5119, %v6050
    %6052 = vmatprep.mubr.bf16.mxu0 %v4955
    %6053 = vmatmul.mubr.bf16.gmra.mrb[0].mxu0 %v4954
    %v6054 = vpop.f32.mrb[0].mxu0
    %v6055 = vadd.f32 %v5115, %v6054
    %v6056 = vpop.f32.mrb[0].mxu0
    %v6057 = vadd.f32 %v5119, %v6056
    %v6058 = vpop.f32.mrb[0].mxu0
    %v6059 = vadd.f32 %v5115, %v6058
    %v6060 = vpop.f32.mrb[0].mxu0
    %v6061 = vadd.f32 %v5119, %v6060
    %6062 = vmatprep.mubr.bf16.mxu0 %v4959
    %6063 = vmatmul.mubr.bf16.gmra.mrb[0].mxu0 %v4958
    %v6064 = vpop.f32.mrb[0].mxu0
    %v6065 = vadd.f32 %v5115, %v6064
    %v6066 = vpop.f32.mrb[0].mxu0
    %v6067 = vadd.f32 %v5119, %v6066
    %v6068 = vpop.f32.mrb[0].mxu0
    %v6069 = vadd.f32 %v5115, %v6068
    %v6070 = vpop.f32.mrb[0].mxu0
    %v6071 = vadd.f32 %v5119, %v6070
    %6072 = vmatprep.mubr.bf16.mxu0 %v4963
    %6073 = vmatmul.mubr.bf16.gmra.mrb[0].mxu0 %v4962
    %v6074 = vpop.f32.mrb[0].mxu0
    %v6075 = vadd.f32 %v5115, %v6074
    %v6076 = vpop.f32.mrb[0].mxu0
    %v6077 = vadd.f32 %v5119, %v6076
    %v6078 = vpop.f32.mrb[0].mxu0
    %v6079 = vadd.f32 %v5115, %v6078
    %v6080 = vpop.f32.mrb[0].mxu0
    %v6081 = vadd.f32 %v5119, %v6080
    %6082 = vmatprep.mubr.bf16.mxu0 %v4967
    %6083 = vmatmul.mubr.bf16.gmra.mrb[0].mxu0 %v4966
    %v6084 = vpop.f32.mrb[0].mxu0
    %v6085 = vadd.f32 %v5115, %v6084
    %v6086 = vpop.f32.mrb[0].mxu0
    %v6087 = vadd.f32 %v5119, %v6086
    %v6088 = vpop.f32.mrb[0].mxu0
    %v6089 = vadd.f32 %v5115, %v6088
    %v6090 = vpop.f32.mrb[0].mxu0
    %v6091 = vadd.f32 %v5119, %v6090
    %6092 = vmatprep.mubr.bf16.mxu0 %v4971
    %6093 = vmatmul.mubr.bf16.gmra.mrb[0].mxu0 %v4970
    %v6094 = vpop.f32.mrb[0].mxu0
    %v6095 = vadd.f32 %v5115, %v6094
    %v6096 = vpop.f32.mrb[0].mxu0
    %v6097 = vadd.f32 %v5119, %v6096
    %v6098 = vpop.f32.mrb[0].mxu0
    %v6099 = vadd.f32 %v5115, %v6098
    %v6100 = vpop.f32.mrb[0].mxu0
    %v6101 = vadd.f32 %v5119, %v6100
    %6102 = vdwg.mxu0
    %6103 = vmatprep.subr.bf16.mxu0 %v5575
    %6104 = vmatpush1.bf16.msra.mxu0 %v5574
    %6105 = vmatprep.subr.bf16.mxu0 %v5579
    %6106 = vmatpush1.bf16.msra.mxu0 %v5578
    %6107 = vmatprep.subr.bf16.mxu0 %v5583
    %6108 = vmatpush1.bf16.msra.mxu0 %v5582
    %6109 = vmatprep.subr.bf16.mxu0 %v5587
    %6110 = vmatpush1.bf16.msra.mxu0 %v5586
    %6111 = vmatprep.subr.bf16.mxu0 %v5591
    %6112 = vmatpush1.bf16.msra.mxu0 %v5590
    %6113 = vmatprep.subr.bf16.mxu0 %v5595
    %6114 = vmatpush1.bf16.msra.mxu0 %v5594
    %6115 = vmatprep.subr.bf16.mxu0 %v5599
    %6116 = vmatpush1.bf16.msra.mxu0 %v5598
    %6117 = vmatprep.subr.bf16.mxu0 %v5603
    %6118 = vmatpush1.bf16.msra.mxu0 %v5602
    %6119 = vmatprep.subr.bf16.mxu0 %v5607
    %6120 = vmatpush1.bf16.msra.mxu0 %v5606
    %6121 = vmatprep.subr.bf16.mxu0 %v5611
    %6122 = vmatpush1.bf16.msra.mxu0 %v5610
    %6123 = vmatprep.subr.bf16.mxu0 %v5615
    %6124 = vmatpush1.bf16.msra.mxu0 %v5614
    %6125 = vmatprep.subr.bf16.mxu0 %v5619
    %6126 = vmatpush1.bf16.msra.mxu0 %v5618
    %6127 = vmatprep.subr.bf16.mxu0 %v5623
    %6128 = vmatpush1.bf16.msra.mxu0 %v5622
    %6129 = vmatprep.subr.bf16.mxu0 %v5627
    %6130 = vmatpush1.bf16.msra.mxu0 %v5626
    %6131 = vmatprep.subr.bf16.mxu0 %v5631
    %6132 = vmatpush1.bf16.msra.mxu0 %v5630
    %6133 = vmatprep.subr.bf16.mxu0 %v5635
    %6134 = vmatpush1.bf16.msra.mxu0 %v5634
    %6135 = vmatprep.mubr.bf16.mxu0 %v4945
    %6136 = vmatmul.mubr.bf16.gmra.mrb[0].mxu0 %v4944
    %v6137 = vpop.f32.mrb[0].mxu0
    %v6138 = vadd.f32 %v6025, %v6137
    %v6139 = vpop.f32.mrb[0].mxu0
    %v6140 = vadd.f32 %v6027, %v6139
    %v6141 = vpop.f32.mrb[0].mxu0
    %v6142 = vadd.f32 %v6029, %v6141
    %v6143 = vpop.f32.mrb[0].mxu0
    %v6144 = vadd.f32 %v6031, %v6143
    %6145 = vmatprep.mubr.bf16.mxu0 %v4949
    %6146 = vmatmul.mubr.bf16.gmra.mrb[0].mxu0 %v4948
    %v6147 = vpop.f32.mrb[0].mxu0
    %v6148 = vadd.f32 %v6035, %v6147
    %v6149 = vpop.f32.mrb[0].mxu0
    %v6150 = vadd.f32 %v6037, %v6149
    %v6151 = vpop.f32.mrb[0].mxu0
    %v6152 = vadd.f32 %v6039, %v6151
    %v6153 = vpop.f32.mrb[0].mxu0
    %v6154 = vadd.f32 %v6041, %v6153
    %6155 = vmatprep.mubr.bf16.mxu0 %v4953
    %6156 = vmatmul.mubr.bf16.gmra.mrb[0].mxu0 %v4952
    %v6157 = vpop.f32.mrb[0].mxu0
    %v6158 = vadd.f32 %v6045, %v6157
    %v6159 = vpop.f32.mrb[0].mxu0
    %v6160 = vadd.f32 %v6047, %v6159
    %v6161 = vpop.f32.mrb[0].mxu0
    %v6162 = vadd.f32 %v6049, %v6161
    %v6163 = vpop.f32.mrb[0].mxu0
    %v6164 = vadd.f32 %v6051, %v6163
    %6165 = vmatprep.mubr.bf16.mxu0 %v4957
    %6166 = vmatmul.mubr.bf16.gmra.mrb[0].mxu0 %v4956
    %v6167 = vpop.f32.mrb[0].mxu0
    %v6168 = vadd.f32 %v6055, %v6167
    %v6169 = vpop.f32.mrb[0].mxu0
    %v6170 = vadd.f32 %v6057, %v6169
    %v6171 = vpop.f32.mrb[0].mxu0
    %v6172 = vadd.f32 %v6059, %v6171
    %v6173 = vpop.f32.mrb[0].mxu0
    %v6174 = vadd.f32 %v6061, %v6173
    %6175 = vmatprep.mubr.bf16.mxu0 %v4961
    %6176 = vmatmul.mubr.bf16.gmra.mrb[0].mxu0 %v4960
    %v6177 = vpop.f32.mrb[0].mxu0
    %v6178 = vadd.f32 %v6065, %v6177
    %v6179 = vpop.f32.mrb[0].mxu0
    %v6180 = vadd.f32 %v6067, %v6179
    %v6181 = vpop.f32.mrb[0].mxu0
    %v6182 = vadd.f32 %v6069, %v6181
    %v6183 = vpop.f32.mrb[0].mxu0
    %v6184 = vadd.f32 %v6071, %v6183
    %6185 = vmatprep.mubr.bf16.mxu0 %v4965
    %6186 = vmatmul.mubr.bf16.gmra.mrb[0].mxu0 %v4964
    %v6187 = vpop.f32.mrb[0].mxu0
    %v6188 = vadd.f32 %v6075, %v6187
    %v6189 = vpop.f32.mrb[0].mxu0
    %v6190 = vadd.f32 %v6077, %v6189
    %v6191 = vpop.f32.mrb[0].mxu0
    %v6192 = vadd.f32 %v6079, %v6191
    %v6193 = vpop.f32.mrb[0].mxu0
    %v6194 = vadd.f32 %v6081, %v6193
    %6195 = vmatprep.mubr.bf16.mxu0 %v4969
    %6196 = vmatmul.mubr.bf16.gmra.mrb[0].mxu0 %v4968
    %v6197 = vpop.f32.mrb[0].mxu0
    %v6198 = vadd.f32 %v6085, %v6197
    %v6199 = vpop.f32.mrb[0].mxu0
    %v6200 = vadd.f32 %v6087, %v6199
    %v6201 = vpop.f32.mrb[0].mxu0
    %v6202 = vadd.f32 %v6089, %v6201
    %v6203 = vpop.f32.mrb[0].mxu0
    %v6204 = vadd.f32 %v6091, %v6203
    %6205 = vmatprep.mubr.bf16.mxu0 %v4973
    %6206 = vmatmul.mubr.bf16.gmra.mrb[0].mxu0 %v4972
    %v6207 = vpop.f32.mrb[0].mxu0
    %v6208 = vadd.f32 %v6095, %v6207
    %v6209 = vpop.f32.mrb[0].mxu0
    %v6210 = vadd.f32 %v6097, %v6209
    %v6211 = vpop.f32.mrb[0].mxu0
    %v6212 = vadd.f32 %v6099, %v6211
    %v6213 = vpop.f32.mrb[0].mxu0
    %v6214 = vadd.f32 %v6101, %v6213
    %6215 = vdwg.mxu0
    %v6216 = vmul.f32 %v5912, 0.2
    %v6217 = vmul.f32 %v5914, 0.2
    %v6218 = vmul.f32 %v6138, 0.2
    %v6219 = vmul.f32 %v6140, 0.2
    %v6220 = vmul.f32 %v5916, 0.2
    %v6221 = vmul.f32 %v5918, 0.2
    %v6222 = vmul.f32 %v6142, 0.2
    %v6223 = vmul.f32 %v6144, 0.2
    %v6224 = vmul.f32 %v5922, 0.2
    %v6225 = vmul.f32 %v5924, 0.2
    %v6226 = vmul.f32 %v6148, 0.2
    %v6227 = vmul.f32 %v6150, 0.2
    %v6228 = vmul.f32 %v5926, 0.2
    %v6229 = vmul.f32 %v5928, 0.2
    %v6230 = vmul.f32 %v6152, 0.2
    %v6231 = vmul.f32 %v6154, 0.2
    %v6232 = vmul.f32 %v5932, 0.2
    %v6233 = vmul.f32 %v5934, 0.2
    %v6234 = vmul.f32 %v6158, 0.2
    %v6235 = vmul.f32 %v6160, 0.2
    %v6236 = vmul.f32 %v5936, 0.2
    %v6237 = vmul.f32 %v5938, 0.2
    %v6238 = vmul.f32 %v6162, 0.2
    %v6239 = vmul.f32 %v6164, 0.2
    %v6240 = vmul.f32 %v5942, 0.2
    %v6241 = vmul.f32 %v5944, 0.2
    %v6242 = vmul.f32 %v6168, 0.2
    %v6243 = vmul.f32 %v6170, 0.2
    %v6244 = vmul.f32 %v5946, 0.2
    %v6245 = vmul.f32 %v5948, 0.2
    %v6246 = vmul.f32 %v6172, 0.2
    %v6247 = vmul.f32 %v6174, 0.2
    %v6248 = vmul.f32 %v5952, 0.2
    %v6249 = vmul.f32 %v5954, 0.2
    %v6250 = vmul.f32 %v6178, 0.2
    %v6251 = vmul.f32 %v6180, 0.2
    %v6252 = vmul.f32 %v5956, 0.2
    %v6253 = vmul.f32 %v5958, 0.2
    %v6254 = vmul.f32 %v6182, 0.2
    %v6255 = vmul.f32 %v6184, 0.2
    %v6256 = vmul.f32 %v5962, 0.2
    %v6257 = vmul.f32 %v5964, 0.2
    %v6258 = vmul.f32 %v6188, 0.2
    %v6259 = vmul.f32 %v6190, 0.2
    %v6260 = vmul.f32 %v5966, 0.2
    %v6261 = vmul.f32 %v5968, 0.2
    %v6262 = vmul.f32 %v6192, 0.2
    %v6263 = vmul.f32 %v6194, 0.2
    %v6264 = vmul.f32 %v5972, 0.2
    %v6265 = vmul.f32 %v5974, 0.2
    %v6266 = vmul.f32 %v6198, 0.2
    %v6267 = vmul.f32 %v6200, 0.2
    %v6268 = vmul.f32 %v5976, 0.2
    %v6269 = vmul.f32 %v5978, 0.2
    %v6270 = vmul.f32 %v6202, 0.2
    %v6271 = vmul.f32 %v6204, 0.2
    %v6272 = vmul.f32 %v5982, 0.2
    %v6273 = vmul.f32 %v5984, 0.2
    %v6274 = vmul.f32 %v6208, 0.2
    %v6275 = vmul.f32 %v6210, 0.2
    %v6276 = vmul.f32 %v5986, 0.2
    %v6277 = vmul.f32 %v5988, 0.2
    %v6278 = vmul.f32 %v6212, 0.2
    %v6279 = vmul.f32 %v6214, 0.2
    %v6280 = vmax.f32 %v5912, %v6216
    %v6281 = vmax.f32 %v5914, %v6217
    %v6282 = vmax.f32 %v6138, %v6218
    %v6283 = vmax.f32 %v6140, %v6219
    %v6284 = vmax.f32 %v5916, %v6220
    %v6285 = vmax.f32 %v5918, %v6221
    %v6286 = vmax.f32 %v6142, %v6222
    %v6287 = vmax.f32 %v6144, %v6223
    %v6288 = vmax.f32 %v5922, %v6224
    %v6289 = vmax.f32 %v5924, %v6225
    %v6290 = vmax.f32 %v6148, %v6226
    %v6291 = vmax.f32 %v6150, %v6227
    %v6292 = vmax.f32 %v5926, %v6228
    %v6293 = vmax.f32 %v5928, %v6229
    %v6294 = vmax.f32 %v6152, %v6230
    %v6295 = vmax.f32 %v6154, %v6231
    %v6296 = vmax.f32 %v5932, %v6232
    %v6297 = vmax.f32 %v5934, %v6233
    %v6298 = vmax.f32 %v6158, %v6234
    %v6299 = vmax.f32 %v6160, %v6235
    %v6300 = vmax.f32 %v5936, %v6236
    %v6301 = vmax.f32 %v5938, %v6237
    %v6302 = vmax.f32 %v6162, %v6238
    %v6303 = vmax.f32 %v6164, %v6239
    %v6304 = vmax.f32 %v5942, %v6240
    %v6305 = vmax.f32 %v5944, %v6241
    %v6306 = vmax.f32 %v6168, %v6242
    %v6307 = vmax.f32 %v6170, %v6243
    %v6308 = vmax.f32 %v5946, %v6244
    %v6309 = vmax.f32 %v5948, %v6245
    %v6310 = vmax.f32 %v6172, %v6246
    %v6311 = vmax.f32 %v6174, %v6247
    %v6312 = vmax.f32 %v5952, %v6248
    %v6313 = vmax.f32 %v5954, %v6249
    %v6314 = vmax.f32 %v6178, %v6250
    %v6315 = vmax.f32 %v6180, %v6251
    %v6316 = vmax.f32 %v5956, %v6252
    %v6317 = vmax.f32 %v5958, %v6253
    %v6318 = vmax.f32 %v6182, %v6254
    %v6319 = vmax.f32 %v6184, %v6255
    %v6320 = vmax.f32 %v5962, %v6256
    %v6321 = vmax.f32 %v5964, %v6257
    %v6322 = vmax.f32 %v6188, %v6258
    %v6323 = vmax.f32 %v6190, %v6259
    %v6324 = vmax.f32 %v5966, %v6260
    %v6325 = vmax.f32 %v5968, %v6261
    %v6326 = vmax.f32 %v6192, %v6262
    %v6327 = vmax.f32 %v6194, %v6263
    %v6328 = vmax.f32 %v5972, %v6264
    %v6329 = vmax.f32 %v5974, %v6265
    %v6330 = vmax.f32 %v6198, %v6266
    %v6331 = vmax.f32 %v6200, %v6267
    %v6332 = vmax.f32 %v5976, %v6268
    %v6333 = vmax.f32 %v5978, %v6269
    %v6334 = vmax.f32 %v6202, %v6270
    %v6335 = vmax.f32 %v6204, %v6271
    %v6336 = vmax.f32 %v5982, %v6272
    %v6337 = vmax.f32 %v5984, %v6273
    %v6338 = vmax.f32 %v6208, %v6274
    %v6339 = vmax.f32 %v6210, %v6275
    %v6340 = vmax.f32 %v5986, %v6276
    %v6341 = vmax.f32 %v5988, %v6277
    %v6342 = vmax.f32 %v6212, %v6278
    %v6343 = vmax.f32 %v6214, %v6279
    %v6344 = vld [vmem:[%s7] sm:$0xf]
    %v6345 = vpack.c.bf16 %v6284, %v6280
    %v6346 = vpack.c.bf16 %v6285, %v6281
    %v6347 = vpack.c.bf16 %v6286, %v6282
    %v6348 = vpack.c.bf16 %v6287, %v6283
    %v6349 = vpack.c.bf16 %v6292, %v6288
    %v6350 = vpack.c.bf16 %v6293, %v6289
    %v6351 = vpack.c.bf16 %v6294, %v6290
    %v6352 = vpack.c.bf16 %v6295, %v6291
    %v6353 = vpack.c.bf16 %v6300, %v6296
    %v6354 = vpack.c.bf16 %v6301, %v6297
    %v6355 = vpack.c.bf16 %v6302, %v6298
    %v6356 = vpack.c.bf16 %v6303, %v6299
    %v6357 = vpack.c.bf16 %v6308, %v6304
    %v6358 = vpack.c.bf16 %v6309, %v6305
    %v6359 = vpack.c.bf16 %v6310, %v6306
    %v6360 = vpack.c.bf16 %v6311, %v6307
    %v6361 = vpack.c.bf16 %v6316, %v6312
    %v6362 = vpack.c.bf16 %v6317, %v6313
    %v6363 = vpack.c.bf16 %v6318, %v6314
    %v6364 = vpack.c.bf16 %v6319, %v6315
    %v6365 = vpack.c.bf16 %v6324, %v6320
    %v6366 = vpack.c.bf16 %v6325, %v6321
    %v6367 = vpack.c.bf16 %v6326, %v6322
    %v6368 = vpack.c.bf16 %v6327, %v6323
    %v6369 = vpack.c.bf16 %v6332, %v6328
    %v6370 = vpack.c.bf16 %v6333, %v6329
    %v6371 = vpack.c.bf16 %v6334, %v6330
    %v6372 = vpack.c.bf16 %v6335, %v6331
    %v6373 = vpack.c.bf16 %v6340, %v6336
    %v6374 = vpack.c.bf16 %v6341, %v6337
    %v6375 = vpack.c.bf16 %v6342, %v6338
    %v6376 = vpack.c.bf16 %v6343, %v6339
    %v6377 = vld [vmem:[#allocation2] sm:$0x1]
    %6379 = vset.pattern.permute.xlu0 0
    %6380 = vperm.xlu0 %6379, %v6377
    %v6381 = vpop.permute.xlu0 %6380
    %v6383 = vlaneseq
    %v6384 = vshrl.u32 %v6383, 7
    %v6385 = vsub.s32 0, %v6384
    %v6386 = vrot.slane %v6381, %v6385
    %v6389 = vunpack.c.l.s4 1966171168
    %v6390 = vunpack.c.0.s8 %v6389
    %v6391 = vlaneseq
    %v6392 = vshrl.u32 %v6391, 7
    %v6393 = vsub.s32 %v6390, %v6392
    %v6394 = vrot.slane %v6344, %v6393
    %v6395 = vcombine.high %v6394, %v6394
    %v6397 = vunpack.c.l.s4 1966171168
    %v6398 = vunpack.c.0.s8 %v6397
    %v6399 = vlaneseq
    %v6400 = vshrl.u32 %v6399, 7
    %v6401 = vsub.s32 %v6398, %v6400
    %v6402 = vrot.slane %v6394, %v6401
    %v6404 = vunpack.c.l.s4 1966171168
    %v6405 = vunpack.c.0.s8 %v6404
    %v6406 = vlaneseq
    %v6407 = vshrl.u32 %v6406, 7
    %v6408 = vsub.s32 %v6405, %v6407
    %v6409 = vrot.slane %v6395, %v6408
    %v6410 = vcombine.high %v6402, %v6402
    %v6411 = vcombine.high %v6409, %v6409
    %6416 = vmatprep.subr.bf16.mxu0 %v6346
    %6417 = vmatpush1.bf16.xpose.msra.mxu0 %v6345
    %6418 = vmatprep.subr.bf16.mxu0 %v6350
    %6419 = vmatpush1.bf16.xpose.msra.mxu0 %v6349
    %6420 = vmatprep.subr.bf16.mxu0 %v6354
    %6421 = vmatpush1.bf16.xpose.msra.mxu0 %v6353
    %6422 = vmatprep.subr.bf16.mxu0 %v6358
    %6423 = vmatpush1.bf16.xpose.msra.mxu0 %v6357
    %6424 = vmatprep.subr.bf16.mxu0 %v6362
    %6425 = vmatpush1.bf16.xpose.msra.mxu0 %v6361
    %6426 = vmatprep.subr.bf16.mxu0 %v6366
    %6427 = vmatpush1.bf16.xpose.msra.mxu0 %v6365
    %6428 = vmatprep.subr.bf16.mxu0 %v6370
    %6429 = vmatpush1.bf16.xpose.msra.mxu0 %v6369
    %6430 = vmatprep.subr.bf16.mxu0 %v6374
    %6431 = vmatpush1.bf16.xpose.msra.mxu0 %v6373
    %6432 = vmatprep.subr.bf16.mxu0 0
    %6433 = vmatpush1.bf16.xpose.msra.mxu0 0
    %6434 = vmatprep.subr.bf16.mxu0 0
    %6435 = vmatpush1.bf16.xpose.msra.mxu0 0
    %6436 = vmatprep.subr.bf16.mxu0 0
    %6437 = vmatpush1.bf16.xpose.msra.mxu0 0
    %6438 = vmatprep.subr.bf16.mxu0 0
    %6439 = vmatpush1.bf16.xpose.msra.mxu0 0
    %6440 = vmatprep.subr.bf16.mxu0 0
    %6441 = vmatpush1.bf16.xpose.msra.mxu0 0
    %6442 = vmatprep.subr.bf16.mxu0 0
    %6443 = vmatpush1.bf16.xpose.msra.mxu0 0
    %6444 = vmatprep.subr.bf16.mxu0 0
    %6445 = vmatpush1.bf16.xpose.msra.mxu0 0
    %6446 = vmatprep.subr.bf16.mxu0 0
    %6447 = vmatpush1.bf16.xpose.msra.mxu0 0
    %6448 = vmatprep.mubr.bf16.mxu0 %v6409
    %6449 = vmatmul.mubr.bf16.gmra.mrb[0].mxu0 %v6402
    %v6450 = vpop.f32.mrb[0].mxu0
    %v6451 = vadd.f32 %v6386, %v6450
    %v6452 = vpop.f32.mrb[0].mxu0
    %v6453 = vpop.f32.mrb[0].mxu0
    %v6454 = vpop.f32.mrb[0].mxu0
    %6455 = vdwg.mxu0
    %6456 = vmatprep.subr.bf16.mxu0 %v6348
    %6457 = vmatpush1.bf16.xpose.msra.mxu0 %v6347
    %6458 = vmatprep.subr.bf16.mxu0 %v6352
    %6459 = vmatpush1.bf16.xpose.msra.mxu0 %v6351
    %6460 = vmatprep.subr.bf16.mxu0 %v6356
    %6461 = vmatpush1.bf16.xpose.msra.mxu0 %v6355
    %6462 = vmatprep.subr.bf16.mxu0 %v6360
    %6463 = vmatpush1.bf16.xpose.msra.mxu0 %v6359
    %6464 = vmatprep.subr.bf16.mxu0 %v6364
    %6465 = vmatpush1.bf16.xpose.msra.mxu0 %v6363
    %6466 = vmatprep.subr.bf16.mxu0 %v6368
    %6467 = vmatpush1.bf16.xpose.msra.mxu0 %v6367
    %6468 = vmatprep.subr.bf16.mxu0 %v6372
    %6469 = vmatpush1.bf16.xpose.msra.mxu0 %v6371
    %6470 = vmatprep.subr.bf16.mxu0 %v6376
    %6471 = vmatpush1.bf16.xpose.msra.mxu0 %v6375
    %6472 = vmatprep.subr.bf16.mxu0 0
    %6473 = vmatpush1.bf16.xpose.msra.mxu0 0
    %6474 = vmatprep.subr.bf16.mxu0 0
    %6475 = vmatpush1.bf16.xpose.msra.mxu0 0
    %6476 = vmatprep.subr.bf16.mxu0 0
    %6477 = vmatpush1.bf16.xpose.msra.mxu0 0
    %6478 = vmatprep.subr.bf16.mxu0 0
    %6479 = vmatpush1.bf16.xpose.msra.mxu0 0
    %6480 = vmatprep.subr.bf16.mxu0 0
    %6481 = vmatpush1.bf16.xpose.msra.mxu0 0
    %6482 = vmatprep.subr.bf16.mxu0 0
    %6483 = vmatpush1.bf16.xpose.msra.mxu0 0
    %6484 = vmatprep.subr.bf16.mxu0 0
    %6485 = vmatpush1.bf16.xpose.msra.mxu0 0
    %6486 = vmatprep.subr.bf16.mxu0 0
    %6487 = vmatpush1.bf16.xpose.msra.mxu0 0
    %6488 = vmatprep.mubr.bf16.mxu0 %v6411
    %6489 = vmatmul.mubr.bf16.gmra.mrb[0].mxu0 %v6410
    %v6490 = vpop.f32.mrb[0].mxu0
    %v6491 = vadd.f32 %v6451, %v6490
    %v6492 = vpop.f32.mrb[0].mxu0
    %v6493 = vpop.f32.mrb[0].mxu0
    %v6494 = vpop.f32.mrb[0].mxu0
    %6495 = vdwg.mxu0
    %v6496 = vxor.u32 %v6491, 2147483648
    %v6497 = vmul.f32 %v6496, 1.442695
    %v6498 = vpow.pop %v6497
    %v6499 = vadd.f32 %v6498, 1.0
    %v6500 = vrcp.pop %v6499
    %v6501 = vmul.f32 1.0, %v6500
    %6502 = vst [vmem:[%s9] sm:$0x1] %v6501
    // Predicated region
    $region50: #{discriminator_forward.1} parent=1 // pred_check
      _
    $region51: #{discriminator_forward.1} parent=1 // pred_check_branch
      %6504 = sbr.rel (0) target = $region53
    $region52: #{discriminator_forward.1} parent=1 // pred_region
      _
    $region53: #{discriminator_forward.1} parent=1 // pred_fallthru
      _
    // Predicated region
    $region54: #{discriminator_forward.1} parent=1 // pred_check
      _
    $region55: #{discriminator_forward.1} parent=1 // pred_check_branch
      %6506 = sbr.rel (0) target = $region57
    $region56: #{discriminator_forward.1} parent=1 // pred_region
      _
    $region57: #{discriminator_forward.1} parent=1 // pred_fallthru
      _
    %6507 = vsyncpa [#allocation4], 1
    %6508 = vsyncpa [#allocation6], 1

</llo_original>
